<compile_context>
chip_gen: v6e
topology: v6e:2x2x1
jax: 0.10.0
libtpu: 0.0.40
codegen_flags: <defaults>
</compile_context>

<pallas_src>
import math

import jax
import jax.numpy as jnp
from jax.experimental import pallas as pl
from jax.experimental.pallas import tpu as pltpu

# ---------------- small synthetic DistilBERT config ----------------
VOCAB    = 50
WORD_PAD = 56          # word rows padded so the position block starts sublane-aligned
MAX_POS  = 16
HIDDEN   = 32
N_LAYERS = 2
N_HEADS  = 4
HEAD_DIM = HIDDEN // N_HEADS
FFN      = 64
OUT_DIM  = 6           # output_dim = 6 in the reference module
OUT_PAD  = 128         # lane-dense classifier output (sliced back to OUT_DIM outside)
LN_EPS   = 1e-12       # DistilBERT LayerNorm eps
NEG_INF  = -1e9
B, S     = 2, 8
M        = B * S

# ---------------- packed-slab layout ----------------
# f32 vector slab rows ([rows, 128], one vector per row)
R_EMB_G, R_EMB_B = 0, 1
_VEC_PER_LAYER = 10
(R_BQ, R_BK, R_BV, R_BO, R_LN1G, R_LN1B, R_B1, R_B2, R_LN2G, R_LN2B) = range(10)
R_FCB    = 2 + N_LAYERS * _VEC_PER_LAYER      # 22
R_HEADM  = 24                                 # N_HEADS rows: per-head lane masks
R_BATCHB = 32                                 # M rows: cross-batch additive bias
VEC_ROWS = 48

# bf16 weight slab entries ([entries, 64, 128], weights stored top-left)
W_Q, W_K, W_V, W_O, W_1, W_2 = range(6)
W_FC      = N_LAYERS * 6                      # 12
W_ENTRIES = W_FC + 1                          # 13


def _layer_row(l):
    return 2 + l * _VEC_PER_LAYER


# ---------------- single fused forward kernel ----------------
def _fused_forward_kernel(ids_ref, mask_ref, emb_ref, vec_ref, w_ref, o_ref):
    f32, bf16 = jnp.float32, jnp.bfloat16

    def vec(row, width):
        return vec_ref[row:row + 1, :width]                     # [1, width] f32

    def weight(idx, rows, cols):
        return w_ref[idx][:rows, :cols]                         # bf16, top-left slice

    def matmul(a, w_bf16):
        # bf16 MXU operands, f32 accumulation (weights already bf16 from the slab)
        return jnp.dot(a.astype(bf16), w_bf16, preferred_element_type=f32)

    def layernorm(x, g, b):
        mean = jnp.mean(x, axis=-1, keepdims=True)
        xc = x - mean
        var = jnp.mean(xc * xc, axis=-1, keepdims=True)
        return xc * jax.lax.rsqrt(var + LN_EPS) * g + b

    # ---- embedding gather (word + position) fused in-kernel ----
    pos = emb_ref[WORD_PAD:WORD_PAD + S, :]                      # [S, H]
    pos_all = jnp.concatenate([pos] * B, axis=0)                 # [M, H]
    word = jnp.concatenate(
        [emb_ref[pl.ds(ids_ref[i], 1), :] for i in range(M)], axis=0)   # [M, H]
    h = layernorm(word.astype(f32) + pos_all,
                  vec(R_EMB_G, HIDDEN), vec(R_EMB_B, HIDDEN))

    # ---- constants hoisted out of the layer loop ----
    # additive attention bias over the full (query, key) = (M, M) score matrix:
    # 0 where key is in the same batch row AND unmasked, else -1e9.
    batch_bias = vec_ref[R_BATCHB:R_BATCHB + M, :M]              # [M, M] (0 / -1e9)
    key_ok = mask_ref[...] > 0.5                                 # [1, M] -> bcast rows
    bias2 = jnp.where(key_ok, batch_bias, NEG_INF).astype(f32)   # [M, M]
    bias3 = jnp.broadcast_to(bias2[None, :, :], (N_HEADS, M, M))
    # per-head multiplicative lane masks: head h owns lanes [h*HEAD_DIM, (h+1)*HEAD_DIM)
    head_mask = vec_ref[R_HEADM:R_HEADM + N_HEADS, :HIDDEN][:, None, :]  # [NH, 1, H]
    gelu_c = math.sqrt(2.0 / math.pi)

    for l in range(N_LAYERS):
        wb = l * 6
        rb = _layer_row(l)

        # Q/K/V projections (Wq, bq pre-scaled by 1/sqrt(head_dim) at pack time)
        q = matmul(h, weight(wb + W_Q, HIDDEN, HIDDEN)) + vec(rb + R_BQ, HIDDEN)
        k = matmul(h, weight(wb + W_K, HIDDEN, HIDDEN)) + vec(rb + R_BK, HIDDEN)
        v = matmul(h, weight(wb + W_V, HIDDEN, HIDDEN)) + vec(rb + R_BV, HIDDEN)

        # head separation via multiplicative lane masks -> batched einsums.
        # no lane-unaligned slices / lane concats / transposes anywhere in attention.
        q3 = q[None, :, :] * head_mask                           # [NH, M, H]
        k3 = k[None, :, :] * head_mask
        v3 = v[None, :, :] * head_mask

        s3 = jnp.einsum("hqd,hkd->hqk", q3.astype(bf16), k3.astype(bf16),
                        preferred_element_type=f32) + bias3      # [NH, M, M]
        # single vectorized softmax for all (batch, head) pairs of this layer
        m3 = jnp.max(s3, axis=-1, keepdims=True)
        p3 = jnp.exp(s3 - m3)
        denom = jnp.sum(p3, axis=-1, keepdims=True)              # [NH, M, 1]
        ctx3 = jnp.einsum("hqk,hkd->hqd", p3.astype(bf16), v3.astype(bf16),
                          preferred_element_type=f32)            # [NH, M, H]
        ctx3 = ctx3 * pl.reciprocal(denom, approx=True)
        ctx = jnp.sum(ctx3, axis=0)                              # [M, H]: disjoint head cols

        # output projection + residual + post-LN (fused)
        attn = matmul(ctx, weight(wb + W_O, HIDDEN, HIDDEN)) + vec(rb + R_BO, HIDDEN)
        sa = layernorm(attn + h, vec(rb + R_LN1G, HIDDEN), vec(rb + R_LN1B, HIDDEN))

        # FFN: dense + GELU, then dense + residual + post-LN (fused)
        ff = matmul(sa, weight(wb + W_1, HIDDEN, FFN)) + vec(rb + R_B1, FFN)
        # TODO(synk): tanh-approx GELU; HF DistilBERT uses exact erf-GELU.
        ff = 0.5 * ff * (1.0 + jnp.tanh(gelu_c * (ff + 0.044715 * ff * ff * ff)))
        ff = matmul(ff, weight(wb + W_2, FFN, HIDDEN)) + vec(rb + R_B2, HIDDEN)
        h = layernorm(ff + sa, vec(rb + R_LN2G, HIDDEN), vec(rb + R_LN2B, HIDDEN))

    # ---- CLS pooling (row b*S per batch) + classifier + sigmoid, lane-dense output ----
    pooled = jnp.concatenate([h[b * S:b * S + 1, :] for b in range(B)], axis=0)  # [B, H]
    logits = matmul(pooled, w_ref[W_FC][:HIDDEN, :]) + vec_ref[R_FCB:R_FCB + 1, :]
    o_ref[...] = (1.0 / (1.0 + jnp.exp(-logits))).astype(o_ref.dtype)


# ---------------- wrapper ----------------
def _forward(packed, input_ids, attention_mask):
    Bn, _ = input_ids.shape
    ids = input_ids.reshape(-1).astype(jnp.int32)                     # [M] -> SMEM
    mask = attention_mask.reshape(1, -1).astype(jnp.float32)          # [1, M] -> VMEM

    smem = pl.BlockSpec(memory_space=pltpu.MemorySpace.SMEM)
    vmem = pl.BlockSpec(memory_space=pltpu.MemorySpace.VMEM)

    out = pl.pallas_call(
        _fused_forward_kernel,
        out_shape=jax.ShapeDtypeStruct((Bn, OUT_PAD), jnp.float32),
        in_specs=[smem, vmem, vmem, vmem, vmem],
        out_specs=vmem,
    )(ids, mask, packed["emb_tab"], packed["vec_slab"], packed["w_slab"])
    return out[:, :OUT_DIM]


multi_label_classifier = jax.jit(_forward)


# ---------------- one-time parameter packing (outside the hot path) ----------------
def pack_params(params):
    f32 = jnp.float32
    scale = 1.0 / math.sqrt(HEAD_DIM)

    # embedding table: word rows [0, VOCAB), position rows start at sublane-aligned WORD_PAD
    emb_tab = jnp.zeros((WORD_PAD + MAX_POS, HIDDEN), f32)
    emb_tab = emb_tab.at[:VOCAB].set(params["word_emb"])
    emb_tab = emb_tab.at[WORD_PAD:WORD_PAD + MAX_POS].set(params["pos_emb"])

    # lane-dense f32 vector slab (LN params, biases, constant masks)
    vec = jnp.zeros((VEC_ROWS, 128), f32)

    def put(slab, r, v):
        v = jnp.asarray(v, f32).reshape(1, -1)
        return slab.at[r:r + 1, :v.shape[1]].set(v)

    vec = put(vec, R_EMB_G, params["emb_ln_g"])
    vec = put(vec, R_EMB_B, params["emb_ln_b"])
    for l in range(N_LAYERS):
        rb = _layer_row(l)
        vec = put(vec, rb + R_BQ, params["bq"][l] * scale)   # pre-scaled with Wq
        vec = put(vec, rb + R_BK, params["bk"][l])
        vec = put(vec, rb + R_BV, params["bv"][l])
        vec = put(vec, rb + R_BO, params["bo"][l])
        vec = put(vec, rb + R_LN1G, params["ln1_g"][l])
        vec = put(vec, rb + R_LN1B, params["ln1_b"][l])
        vec = put(vec, rb + R_B1, params["b1"][l])
        vec = put(vec, rb + R_B2, params["b2"][l])
        vec = put(vec, rb + R_LN2G, params["ln2_g"][l])
        vec = put(vec, rb + R_LN2B, params["ln2_b"][l])
    vec = put(vec, R_FCB, params["fc_b"])

    lane = jnp.arange(128)
    for hh in range(N_HEADS):   # per-head lane masks
        row = ((lane >= hh * HEAD_DIM) & (lane < (hh + 1) * HEAD_DIM)).astype(f32)
        vec = vec.at[R_HEADM + hh, :].set(row)
    for i in range(M):          # cross-batch additive bias rows
        row = jnp.where((lane // S) == (i // S), 0.0, NEG_INF).astype(f32)
        vec = vec.at[R_BATCHB + i, :].set(row)

    # single bf16 weight slab: every matmul weight in a [64, 128] container
    wslab = jnp.zeros((W_ENTRIES, 64, 128), f32)

    def putw(slab, idx, wmat):
        return slab.at[idx, :wmat.shape[0], :wmat.shape[1]].set(wmat)

    for l in range(N_LAYERS):
        wb = l * 6
        wslab = putw(wslab, wb + W_Q, params["wq"][l] * scale)   # 1/sqrt(Dh) folded in
        wslab = putw(wslab, wb + W_K, params["wk"][l])
        wslab = putw(wslab, wb + W_V, params["wv"][l])
        wslab = putw(wslab, wb + W_O, params["wo"][l])
        wslab = putw(wslab, wb + W_1, params["w1"][l])
        wslab = putw(wslab, wb + W_2, params["w2"][l])
    wslab = putw(wslab, W_FC, params["fc_w"])

    return dict(emb_tab=emb_tab, vec_slab=vec, w_slab=wslab.astype(jnp.bfloat16))


# ---------------- pure-JAX reference (f32) for correctness check ----------------
def reference_forward(params, input_ids, attention_mask):
    Bn, Sn = input_ids.shape
    h = params["word_emb"][input_ids] + params["pos_emb"][jnp.arange(Sn)][None, :, :]

    def ln(x, g, b):
        mean = x.mean(-1, keepdims=True)
        var = ((x - mean) ** 2).mean(-1, keepdims=True)
        return (x - mean) / jnp.sqrt(var + LN_EPS) * g + b

    h = ln(h, params["emb_ln_g"], params["emb_ln_b"])
    bias = ((1.0 - attention_mask.astype(jnp.float32)) * NEG_INF)[:, None, None, :]

    for l in range(N_LAYERS):
        x = h.reshape(Bn * Sn, HIDDEN)
        q = x @ params["wq"][l] + params["bq"][l]
        k = x @ params["wk"][l] + params["bk"][l]
        v = x @ params["wv"][l] + params["bv"][l]

        def heads(t):
            return t.reshape(Bn, Sn, N_HEADS, HEAD_DIM).transpose(0, 2, 1, 3)

        qh, kh, vh = heads(q), heads(k), heads(v)
        s = jnp.einsum("bhqd,bhkd->bhqk", qh, kh) / math.sqrt(HEAD_DIM) + bias
        p = jax.nn.softmax(s, axis=-1)
        ctx = jnp.einsum("bhqk,bhkd->bhqd", p, vh).transpose(0, 2, 1, 3).reshape(Bn * Sn, HIDDEN)

        attn_out = ctx @ params["wo"][l] + params["bo"][l]
        sa = ln(attn_out + x, params["ln1_g"][l], params["ln1_b"][l])

        ff = sa @ params["w1"][l] + params["b1"][l]
        c = math.sqrt(2.0 / math.pi)
        ff = 0.5 * ff * (1.0 + jnp.tanh(c * (ff + 0.044715 * ff ** 3)))
        ff = ff @ params["w2"][l] + params["b2"][l]
        h = ln(ff + sa, params["ln2_g"][l], params["ln2_b"][l]).reshape(Bn, Sn, HIDDEN)

    pooled = h[:, 0, :]
    return jax.nn.sigmoid(pooled @ params["fc_w"] + params["fc_b"])


# ---------------- deterministic parameter init ----------------
def init_params(key):
    scale = 0.02
    keys = iter(jax.random.split(key, 64))

    def w(shape):
        return scale * jax.random.normal(next(keys), shape, dtype=jnp.float32)

    zeros = lambda shape: jnp.zeros(shape, jnp.float32)
    ones = lambda shape: jnp.ones(shape, jnp.float32)

    params = dict(
        word_emb=w((VOCAB, HIDDEN)),
        pos_emb=w((MAX_POS, HIDDEN)),
        emb_ln_g=ones((1, HIDDEN)), emb_ln_b=zeros((1, HIDDEN)),
        wq=jnp.stack([w((HIDDEN, HIDDEN)) for _ in range(N_LAYERS)]),
        wk=jnp.stack([w((HIDDEN, HIDDEN)) for _ in range(N_LAYERS)]),
        wv=jnp.stack([w((HIDDEN, HIDDEN)) for _ in range(N_LAYERS)]),
        bq=zeros((N_LAYERS, 1, HIDDEN)), bk=zeros((N_LAYERS, 1, HIDDEN)),
        bv=zeros((N_LAYERS, 1, HIDDEN)),
        wo=jnp.stack([w((HIDDEN, HIDDEN)) for _ in range(N_LAYERS)]),
        bo=zeros((N_LAYERS, 1, HIDDEN)),
        ln1_g=ones((N_LAYERS, 1, HIDDEN)), ln1_b=zeros((N_LAYERS, 1, HIDDEN)),
        w1=jnp.stack([w((HIDDEN, FFN)) for _ in range(N_LAYERS)]),
        b1=zeros((N_LAYERS, 1, FFN)),
        w2=jnp.stack([w((FFN, HIDDEN)) for _ in range(N_LAYERS)]),
        b2=zeros((N_LAYERS, 1, HIDDEN)),
        ln2_g=ones((N_LAYERS, 1, HIDDEN)), ln2_b=zeros((N_LAYERS, 1, HIDDEN)),
        fc_w=w((HIDDEN, OUT_DIM)),
        fc_b=zeros((OUT_DIM,)),
    )
    return params


if __name__ == "__main__":
    key = jax.random.PRNGKey(0)
    params = init_params(key)
    packed = pack_params(params)          # one-time packing, outside the hot path

    ids_key = jax.random.fold_in(key, 123)
    input_ids = jax.random.randint(ids_key, (B, S), 0, VOCAB, dtype=jnp.int32)
    attention_mask = jnp.array([[1] * S,
                                [1] * 5 + [0] * (S - 5)], dtype=jnp.int32)

    probs = jax.block_until_ready(multi_label_classifier(packed, input_ids, attention_mask))
    ref = jax.block_until_ready(reference_forward(params, input_ids, attention_mask))

    assert probs.shape == (B, OUT_DIM), probs.shape
    assert bool(jnp.all(jnp.isfinite(probs)))
    assert bool(jnp.all((probs >= 0.0) & (probs <= 1.0)))
    max_err = float(jnp.max(jnp.abs(probs - ref)))
    assert max_err < 5e-2, f"kernel vs reference mismatch: {max_err}"
    print("KERNEL_OK")
</pallas_src>

<mosaic_0001>
module attributes {stable_mosaic.version = 11 : i64} {
  func.func @_fused_forward_kernel(%arg0: memref<16xi32, #tpu.memory_space<smem>>, %arg1: memref<1x16xf32, #tpu.memory_space<vmem>>, %arg2: memref<72x32xf32, #tpu.memory_space<vmem>>, %arg3: memref<48x128xf32, #tpu.memory_space<vmem>>, %arg4: memref<13x64x128xbf16, #tpu.memory_space<vmem>>, %arg5: memref<2x128xf32, #tpu.memory_space<vmem>>) attributes {dimension_semantics = [], scalar_prefetch = 0 : i64, scratch_operands = 0 : i64, tpu.core_type = #tpu.core_type<tc>} {
    %c56 = arith.constant 56 : index
    %c0 = arith.constant 0 : index
    %0 = vector.load %arg2[%c56, %c0] : memref<72x32xf32, #tpu.memory_space<vmem>>, vector<8x32xf32>
    %1 = tpu.concatenate %0, %0 in 0 : vector<8x32xf32>, vector<8x32xf32> -> vector<16x32xf32>
    %c0_0 = arith.constant 0 : index
    %2 = memref.load %arg0[%c0_0] : memref<16xi32, #tpu.memory_space<smem>>
    %3 = arith.index_cast %2 : i32 to index
    %c0_1 = arith.constant 0 : index
    %4 = vector.load %arg2[%3, %c0_1] : memref<72x32xf32, #tpu.memory_space<vmem>>, vector<1x32xf32>
    %c1 = arith.constant 1 : index
    %5 = memref.load %arg0[%c1] : memref<16xi32, #tpu.memory_space<smem>>
    %6 = arith.index_cast %5 : i32 to index
    %c0_2 = arith.constant 0 : index
    %7 = vector.load %arg2[%6, %c0_2] : memref<72x32xf32, #tpu.memory_space<vmem>>, vector<1x32xf32>
    %c2 = arith.constant 2 : index
    %8 = memref.load %arg0[%c2] : memref<16xi32, #tpu.memory_space<smem>>
    %9 = arith.index_cast %8 : i32 to index
    %c0_3 = arith.constant 0 : index
    %10 = vector.load %arg2[%9, %c0_3] : memref<72x32xf32, #tpu.memory_space<vmem>>, vector<1x32xf32>
    %c3 = arith.constant 3 : index
    %11 = memref.load %arg0[%c3] : memref<16xi32, #tpu.memory_space<smem>>
    %12 = arith.index_cast %11 : i32 to index
    %c0_4 = arith.constant 0 : index
    %13 = vector.load %arg2[%12, %c0_4] : memref<72x32xf32, #tpu.memory_space<vmem>>, vector<1x32xf32>
    %c4 = arith.constant 4 : index
    %14 = memref.load %arg0[%c4] : memref<16xi32, #tpu.memory_space<smem>>
    %15 = arith.index_cast %14 : i32 to index
    %c0_5 = arith.constant 0 : index
    %16 = vector.load %arg2[%15, %c0_5] : memref<72x32xf32, #tpu.memory_space<vmem>>, vector<1x32xf32>
    %c5 = arith.constant 5 : index
    %17 = memref.load %arg0[%c5] : memref<16xi32, #tpu.memory_space<smem>>
    %18 = arith.index_cast %17 : i32 to index
    %c0_6 = arith.constant 0 : index
    %19 = vector.load %arg2[%18, %c0_6] : memref<72x32xf32, #tpu.memory_space<vmem>>, vector<1x32xf32>
    %c6 = arith.constant 6 : index
    %20 = memref.load %arg0[%c6] : memref<16xi32, #tpu.memory_space<smem>>
    %21 = arith.index_cast %20 : i32 to index
    %c0_7 = arith.constant 0 : index
    %22 = vector.load %arg2[%21, %c0_7] : memref<72x32xf32, #tpu.memory_space<vmem>>, vector<1x32xf32>
    %c7 = arith.constant 7 : index
    %23 = memref.load %arg0[%c7] : memref<16xi32, #tpu.memory_space<smem>>
    %24 = arith.index_cast %23 : i32 to index
    %c0_8 = arith.constant 0 : index
    %25 = vector.load %arg2[%24, %c0_8] : memref<72x32xf32, #tpu.memory_space<vmem>>, vector<1x32xf32>
    %c8 = arith.constant 8 : index
    %26 = memref.load %arg0[%c8] : memref<16xi32, #tpu.memory_space<smem>>
    %27 = arith.index_cast %26 : i32 to index
    %c0_9 = arith.constant 0 : index
    %28 = vector.load %arg2[%27, %c0_9] : memref<72x32xf32, #tpu.memory_space<vmem>>, vector<1x32xf32>
    %c9 = arith.constant 9 : index
    %29 = memref.load %arg0[%c9] : memref<16xi32, #tpu.memory_space<smem>>
    %30 = arith.index_cast %29 : i32 to index
    %c0_10 = arith.constant 0 : index
    %31 = vector.load %arg2[%30, %c0_10] : memref<72x32xf32, #tpu.memory_space<vmem>>, vector<1x32xf32>
    %c10 = arith.constant 10 : index
    %32 = memref.load %arg0[%c10] : memref<16xi32, #tpu.memory_space<smem>>
    %33 = arith.index_cast %32 : i32 to index
    %c0_11 = arith.constant 0 : index
    %34 = vector.load %arg2[%33, %c0_11] : memref<72x32xf32, #tpu.memory_space<vmem>>, vector<1x32xf32>
    %c11 = arith.constant 11 : index
    %35 = memref.load %arg0[%c11] : memref<16xi32, #tpu.memory_space<smem>>
    %36 = arith.index_cast %35 : i32 to index
    %c0_12 = arith.constant 0 : index
    %37 = vector.load %arg2[%36, %c0_12] : memref<72x32xf32, #tpu.memory_space<vmem>>, vector<1x32xf32>
    %c12 = arith.constant 12 : index
    %38 = memref.load %arg0[%c12] : memref<16xi32, #tpu.memory_space<smem>>
    %39 = arith.index_cast %38 : i32 to index
    %c0_13 = arith.constant 0 : index
    %40 = vector.load %arg2[%39, %c0_13] : memref<72x32xf32, #tpu.memory_space<vmem>>, vector<1x32xf32>
    %c13 = arith.constant 13 : index
    %41 = memref.load %arg0[%c13] : memref<16xi32, #tpu.memory_space<smem>>
    %42 = arith.index_cast %41 : i32 to index
    %c0_14 = arith.constant 0 : index
    %43 = vector.load %arg2[%42, %c0_14] : memref<72x32xf32, #tpu.memory_space<vmem>>, vector<1x32xf32>
    %c14 = arith.constant 14 : index
    %44 = memref.load %arg0[%c14] : memref<16xi32, #tpu.memory_space<smem>>
    %45 = arith.index_cast %44 : i32 to index
    %c0_15 = arith.constant 0 : index
    %46 = vector.load %arg2[%45, %c0_15] : memref<72x32xf32, #tpu.memory_space<vmem>>, vector<1x32xf32>
    %c15 = arith.constant 15 : index
    %47 = memref.load %arg0[%c15] : memref<16xi32, #tpu.memory_space<smem>>
    %48 = arith.index_cast %47 : i32 to index
    %c0_16 = arith.constant 0 : index
    %49 = vector.load %arg2[%48, %c0_16] : memref<72x32xf32, #tpu.memory_space<vmem>>, vector<1x32xf32>
    %50 = tpu.concatenate %4, %7, %10, %13, %16, %19, %22, %25, %28, %31, %34, %37, %40, %43, %46, %49 in 0 : vector<1x32xf32>, vector<1x32xf32>, vector<1x32xf32>, vector<1x32xf32>, vector<1x32xf32>, vector<1x32xf32>, vector<1x32xf32>, vector<1x32xf32>, vector<1x32xf32>, vector<1x32xf32>, vector<1x32xf32>, vector<1x32xf32>, vector<1x32xf32>, vector<1x32xf32>, vector<1x32xf32>, vector<1x32xf32> -> vector<16x32xf32>
    %51 = arith.addf %50, %1 : vector<16x32xf32>
    %c0_17 = arith.constant 0 : index
    %c0_18 = arith.constant 0 : index
    %52 = vector.load %arg3[%c0_17, %c0_18] : memref<48x128xf32, #tpu.memory_space<vmem>>, vector<1x32xf32>
    %c1_19 = arith.constant 1 : index
    %c0_20 = arith.constant 0 : index
    %53 = vector.load %arg3[%c1_19, %c0_20] : memref<48x128xf32, #tpu.memory_space<vmem>>, vector<1x32xf32>
    %cst = arith.constant dense<0.000000e+00> : vector<16xf32>
    %54 = vector.multi_reduction <add>, %51, %cst [1] : vector<16x32xf32> to vector<16xf32>
    %55 = vector.shape_cast %54 : vector<16xf32> to vector<16x1xf32>
    %cst_21 = arith.constant 3.200000e+01 : f32
    %56 = vector.broadcast %cst_21 : f32 to vector<16x1xf32>
    %57 = arith.divf %55, %56 : vector<16x1xf32>
    %58 = vector.broadcast %57 : vector<16x1xf32> to vector<16x32xf32>
    %59 = arith.subf %51, %58 : vector<16x32xf32>
    %60 = arith.mulf %59, %59 : vector<16x32xf32>
    %cst_22 = arith.constant dense<0.000000e+00> : vector<16xf32>
    %61 = vector.multi_reduction <add>, %60, %cst_22 [1] : vector<16x32xf32> to vector<16xf32>
    %62 = vector.shape_cast %61 : vector<16xf32> to vector<16x1xf32>
    %cst_23 = arith.constant 3.200000e+01 : f32
    %63 = vector.broadcast %cst_23 : f32 to vector<16x1xf32>
    %64 = arith.divf %62, %63 : vector<16x1xf32>
    %cst_24 = arith.constant 9.99999996E-13 : f32
    %65 = vector.broadcast %cst_24 : f32 to vector<16x1xf32>
    %66 = arith.addf %64, %65 : vector<16x1xf32>
    %67 = math.rsqrt %66 : vector<16x1xf32>
    %68 = vector.broadcast %67 : vector<16x1xf32> to vector<16x32xf32>
    %69 = arith.mulf %59, %68 : vector<16x32xf32>
    %70 = vector.broadcast %52 : vector<1x32xf32> to vector<16x32xf32>
    %71 = arith.mulf %69, %70 : vector<16x32xf32>
    %72 = vector.broadcast %53 : vector<1x32xf32> to vector<16x32xf32>
    %73 = arith.addf %71, %72 : vector<16x32xf32>
    %c32 = arith.constant 32 : index
    %c0_25 = arith.constant 0 : index
    %74 = vector.load %arg3[%c32, %c0_25] : memref<48x128xf32, #tpu.memory_space<vmem>>, vector<16x16xf32>
    %c0_26 = arith.constant 0 : index
    %c0_27 = arith.constant 0 : index
    %75 = vector.load %arg1[%c0_26, %c0_27] : memref<1x16xf32, #tpu.memory_space<vmem>>, vector<1x16xf32>
    %cst_28 = arith.constant 5.000000e-01 : f32
    %76 = vector.broadcast %cst_28 : f32 to vector<1x16xf32>
    %77 = arith.cmpf ogt, %75, %76 : vector<1x16xf32>
    %cst_29 = arith.constant -1.000000e+09 : f32
    %78 = vector.shape_cast %77 : vector<1x16xi1> to vector<1x16xi1>
    %79 = vector.broadcast %78 : vector<1x16xi1> to vector<16x16xi1>
    %80 = vector.broadcast %cst_29 : f32 to vector<16x16xf32>
    %81 = arith.select %79, %74, %80 : vector<16x16xi1>, vector<16x16xf32>
    %82 = vector.shape_cast %81 : vector<16x16xf32> to vector<1x16x16xf32>
    %83 = vector.shape_cast %82 : vector<1x16x16xf32> to vector<1x16x16xf32>
    %84 = vector.broadcast %83 : vector<1x16x16xf32> to vector<4x16x16xf32>
    %c24 = arith.constant 24 : index
    %c0_30 = arith.constant 0 : index
    %85 = vector.load %arg3[%c24, %c0_30] : memref<48x128xf32, #tpu.memory_space<vmem>>, vector<4x32xf32>
    %86 = vector.shape_cast %85 : vector<4x32xf32> to vector<4x1x32xf32>
    %c0_31 = arith.constant 0 : index
    %c0_32 = arith.constant 0 : index
    %c0_33 = arith.constant 0 : index
    %87 = vector.load %arg4[%c0_31, %c0_32, %c0_33] : memref<13x64x128xbf16, #tpu.memory_space<vmem>>, vector<1x64x128xbf16>
    %88 = vector.shape_cast %87 : vector<1x64x128xbf16> to vector<64x128xbf16>
    %89 = vector.extract_strided_slice %88 {offsets = [0, 0], sizes = [32, 32], strides = [1, 1]} : vector<64x128xbf16> to vector<32x32xbf16>
    %90 = arith.truncf %73 : vector<16x32xf32> to vector<16x32xbf16>
    %cst_34 = arith.constant dense<0.000000e+00> : vector<16x32xf32>
    %91 = tpu.matmul %90, %89, %cst_34 {dimension_numbers = #tpu.dot_dimension_numbers<[1], [0], [0], [1], [0, 0, 1, 1], [], []>} : vector<16x32xbf16>, vector<32x32xbf16>, vector<16x32xf32> -> vector<16x32xf32>
    %c2_35 = arith.constant 2 : index
    %c0_36 = arith.constant 0 : index
    %92 = vector.load %arg3[%c2_35, %c0_36] : memref<48x128xf32, #tpu.memory_space<vmem>>, vector<1x32xf32>
    %93 = vector.broadcast %92 : vector<1x32xf32> to vector<16x32xf32>
    %94 = arith.addf %91, %93 : vector<16x32xf32>
    %c1_37 = arith.constant 1 : index
    %c0_38 = arith.constant 0 : index
    %c0_39 = arith.constant 0 : index
    %95 = vector.load %arg4[%c1_37, %c0_38, %c0_39] : memref<13x64x128xbf16, #tpu.memory_space<vmem>>, vector<1x64x128xbf16>
    %96 = vector.shape_cast %95 : vector<1x64x128xbf16> to vector<64x128xbf16>
    %97 = vector.extract_strided_slice %96 {offsets = [0, 0], sizes = [32, 32], strides = [1, 1]} : vector<64x128xbf16> to vector<32x32xbf16>
    %98 = arith.truncf %73 : vector<16x32xf32> to vector<16x32xbf16>
    %cst_40 = arith.constant dense<0.000000e+00> : vector<16x32xf32>
    %99 = tpu.matmul %98, %97, %cst_40 {dimension_numbers = #tpu.dot_dimension_numbers<[1], [0], [0], [1], [0, 0, 1, 1], [], []>} : vector<16x32xbf16>, vector<32x32xbf16>, vector<16x32xf32> -> vector<16x32xf32>
    %c3_41 = arith.constant 3 : index
    %c0_42 = arith.constant 0 : index
    %100 = vector.load %arg3[%c3_41, %c0_42] : memref<48x128xf32, #tpu.memory_space<vmem>>, vector<1x32xf32>
    %101 = vector.broadcast %100 : vector<1x32xf32> to vector<16x32xf32>
    %102 = arith.addf %99, %101 : vector<16x32xf32>
    %c2_43 = arith.constant 2 : index
    %c0_44 = arith.constant 0 : index
    %c0_45 = arith.constant 0 : index
    %103 = vector.load %arg4[%c2_43, %c0_44, %c0_45] : memref<13x64x128xbf16, #tpu.memory_space<vmem>>, vector<1x64x128xbf16>
    %104 = vector.shape_cast %103 : vector<1x64x128xbf16> to vector<64x128xbf16>
    %105 = vector.extract_strided_slice %104 {offsets = [0, 0], sizes = [32, 32], strides = [1, 1]} : vector<64x128xbf16> to vector<32x32xbf16>
    %106 = arith.truncf %73 : vector<16x32xf32> to vector<16x32xbf16>
    %cst_46 = arith.constant dense<0.000000e+00> : vector<16x32xf32>
    %107 = tpu.matmul %106, %105, %cst_46 {dimension_numbers = #tpu.dot_dimension_numbers<[1], [0], [0], [1], [0, 0, 1, 1], [], []>} : vector<16x32xbf16>, vector<32x32xbf16>, vector<16x32xf32> -> vector<16x32xf32>
    %c4_47 = arith.constant 4 : index
    %c0_48 = arith.constant 0 : index
    %108 = vector.load %arg3[%c4_47, %c0_48] : memref<48x128xf32, #tpu.memory_space<vmem>>, vector<1x32xf32>
    %109 = vector.broadcast %108 : vector<1x32xf32> to vector<16x32xf32>
    %110 = arith.addf %107, %109 : vector<16x32xf32>
    %111 = vector.shape_cast %94 : vector<16x32xf32> to vector<1x16x32xf32>
    %112 = vector.broadcast %111 : vector<1x16x32xf32> to vector<4x16x32xf32>
    %113 = vector.broadcast %86 : vector<4x1x32xf32> to vector<4x16x32xf32>
    %114 = arith.mulf %112, %113 : vector<4x16x32xf32>
    %115 = vector.shape_cast %102 : vector<16x32xf32> to vector<1x16x32xf32>
    %116 = vector.broadcast %115 : vector<1x16x32xf32> to vector<4x16x32xf32>
    %117 = vector.broadcast %86 : vector<4x1x32xf32> to vector<4x16x32xf32>
    %118 = arith.mulf %116, %117 : vector<4x16x32xf32>
    %119 = vector.shape_cast %110 : vector<16x32xf32> to vector<1x16x32xf32>
    %120 = vector.broadcast %119 : vector<1x16x32xf32> to vector<4x16x32xf32>
    %121 = vector.broadcast %86 : vector<4x1x32xf32> to vector<4x16x32xf32>
    %122 = arith.mulf %120, %121 : vector<4x16x32xf32>
    %123 = arith.truncf %114 : vector<4x16x32xf32> to vector<4x16x32xbf16>
    %124 = arith.truncf %118 : vector<4x16x32xf32> to vector<4x16x32xbf16>
    "tpu.trace_start"() <{level = 10 : i32, message = "hqd,hkd->hqk"}> : () -> ()
    %cst_49 = arith.constant dense<0.000000e+00> : vector<4x16x16xf32>
    %125 = tpu.matmul %123, %124, %cst_49 {dimension_numbers = #tpu.dot_dimension_numbers<[2], [2], [1], [1], [0, 0, 0, 1, 1, 1], [0], [0]>} : vector<4x16x32xbf16>, vector<4x16x32xbf16>, vector<4x16x16xf32> -> vector<4x16x16xf32>
    "tpu.trace_stop"() : () -> ()
    %126 = arith.addf %125, %84 : vector<4x16x16xf32>
    %cst_50 = arith.constant dense<0xFF800000> : vector<4x16xf32>
    %127 = vector.multi_reduction <maximumf>, %126, %cst_50 [2] : vector<4x16x16xf32> to vector<4x16xf32>
    %128 = vector.shape_cast %127 : vector<4x16xf32> to vector<4x16x1xf32>
    %129 = vector.broadcast %128 : vector<4x16x1xf32> to vector<4x16x16xf32>
    %130 = arith.subf %126, %129 : vector<4x16x16xf32>
    %131 = math.exp %130 : vector<4x16x16xf32>
    %cst_51 = arith.constant dense<0.000000e+00> : vector<4x16xf32>
    %132 = vector.multi_reduction <add>, %131, %cst_51 [2] : vector<4x16x16xf32> to vector<4x16xf32>
    %133 = vector.shape_cast %132 : vector<4x16xf32> to vector<4x16x1xf32>
    %134 = arith.truncf %131 : vector<4x16x16xf32> to vector<4x16x16xbf16>
    %135 = arith.truncf %122 : vector<4x16x32xf32> to vector<4x16x32xbf16>
    "tpu.trace_start"() <{level = 10 : i32, message = "hqk,hkd->hqd"}> : () -> ()
    %cst_52 = arith.constant dense<0.000000e+00> : vector<4x16x32xf32>
    %136 = tpu.matmul %134, %135, %cst_52 {dimension_numbers = #tpu.dot_dimension_numbers<[2], [1], [1], [2], [0, 0, 0, 1, 1, 2], [0], [0]>} : vector<4x16x16xbf16>, vector<4x16x32xbf16>, vector<4x16x32xf32> -> vector<4x16x32xf32>
    "tpu.trace_stop"() : () -> ()
    %137 = tpu.reciprocal %133 {approx = true} : vector<4x16x1xf32> -> vector<4x16x1xf32>
    %138 = vector.broadcast %137 : vector<4x16x1xf32> to vector<4x16x32xf32>
    %139 = arith.mulf %136, %138 : vector<4x16x32xf32>
    %cst_53 = arith.constant dense<0.000000e+00> : vector<16x32xf32>
    %140 = vector.multi_reduction <add>, %139, %cst_53 [0] : vector<4x16x32xf32> to vector<16x32xf32>
    %c3_54 = arith.constant 3 : index
    %c0_55 = arith.constant 0 : index
    %c0_56 = arith.constant 0 : index
    %141 = vector.load %arg4[%c3_54, %c0_55, %c0_56] : memref<13x64x128xbf16, #tpu.memory_space<vmem>>, vector<1x64x128xbf16>
    %142 = vector.shape_cast %141 : vector<1x64x128xbf16> to vector<64x128xbf16>
    %143 = vector.extract_strided_slice %142 {offsets = [0, 0], sizes = [32, 32], strides = [1, 1]} : vector<64x128xbf16> to vector<32x32xbf16>
    %144 = arith.truncf %140 : vector<16x32xf32> to vector<16x32xbf16>
    %cst_57 = arith.constant dense<0.000000e+00> : vector<16x32xf32>
    %145 = tpu.matmul %144, %143, %cst_57 {dimension_numbers = #tpu.dot_dimension_numbers<[1], [0], [0], [1], [0, 0, 1, 1], [], []>} : vector<16x32xbf16>, vector<32x32xbf16>, vector<16x32xf32> -> vector<16x32xf32>
    %c5_58 = arith.constant 5 : index
    %c0_59 = arith.constant 0 : index
    %146 = vector.load %arg3[%c5_58, %c0_59] : memref<48x128xf32, #tpu.memory_space<vmem>>, vector<1x32xf32>
    %147 = vector.broadcast %146 : vector<1x32xf32> to vector<16x32xf32>
    %148 = arith.addf %145, %147 : vector<16x32xf32>
    %149 = arith.addf %148, %73 : vector<16x32xf32>
    %c6_60 = arith.constant 6 : index
    %c0_61 = arith.constant 0 : index
    %150 = vector.load %arg3[%c6_60, %c0_61] : memref<48x128xf32, #tpu.memory_space<vmem>>, vector<1x32xf32>
    %c7_62 = arith.constant 7 : index
    %c0_63 = arith.constant 0 : index
    %151 = vector.load %arg3[%c7_62, %c0_63] : memref<48x128xf32, #tpu.memory_space<vmem>>, vector<1x32xf32>
    %cst_64 = arith.constant dense<0.000000e+00> : vector<16xf32>
    %152 = vector.multi_reduction <add>, %149, %cst_64 [1] : vector<16x32xf32> to vector<16xf32>
    %153 = vector.shape_cast %152 : vector<16xf32> to vector<16x1xf32>
    %cst_65 = arith.constant 3.200000e+01 : f32
    %154 = vector.broadcast %cst_65 : f32 to vector<16x1xf32>
    %155 = arith.divf %153, %154 : vector<16x1xf32>
    %156 = vector.broadcast %155 : vector<16x1xf32> to vector<16x32xf32>
    %157 = arith.subf %149, %156 : vector<16x32xf32>
    %158 = arith.mulf %157, %157 : vector<16x32xf32>
    %cst_66 = arith.constant dense<0.000000e+00> : vector<16xf32>
    %159 = vector.multi_reduction <add>, %158, %cst_66 [1] : vector<16x32xf32> to vector<16xf32>
    %160 = vector.shape_cast %159 : vector<16xf32> to vector<16x1xf32>
    %cst_67 = arith.constant 3.200000e+01 : f32
    %161 = vector.broadcast %cst_67 : f32 to vector<16x1xf32>
    %162 = arith.divf %160, %161 : vector<16x1xf32>
    %cst_68 = arith.constant 9.99999996E-13 : f32
    %163 = vector.broadcast %cst_68 : f32 to vector<16x1xf32>
    %164 = arith.addf %162, %163 : vector<16x1xf32>
    %165 = math.rsqrt %164 : vector<16x1xf32>
    %166 = vector.broadcast %165 : vector<16x1xf32> to vector<16x32xf32>
    %167 = arith.mulf %157, %166 : vector<16x32xf32>
    %168 = vector.broadcast %150 : vector<1x32xf32> to vector<16x32xf32>
    %169 = arith.mulf %167, %168 : vector<16x32xf32>
    %170 = vector.broadcast %151 : vector<1x32xf32> to vector<16x32xf32>
    %171 = arith.addf %169, %170 : vector<16x32xf32>
    %c4_69 = arith.constant 4 : index
    %c0_70 = arith.constant 0 : index
    %c0_71 = arith.constant 0 : index
    %172 = vector.load %arg4[%c4_69, %c0_70, %c0_71] : memref<13x64x128xbf16, #tpu.memory_space<vmem>>, vector<1x64x128xbf16>
    %173 = vector.shape_cast %172 : vector<1x64x128xbf16> to vector<64x128xbf16>
    %174 = vector.extract_strided_slice %173 {offsets = [0, 0], sizes = [32, 64], strides = [1, 1]} : vector<64x128xbf16> to vector<32x64xbf16>
    %175 = arith.truncf %171 : vector<16x32xf32> to vector<16x32xbf16>
    %cst_72 = arith.constant dense<0.000000e+00> : vector<16x64xf32>
    %176 = tpu.matmul %175, %174, %cst_72 {dimension_numbers = #tpu.dot_dimension_numbers<[1], [0], [0], [1], [0, 0, 1, 1], [], []>} : vector<16x32xbf16>, vector<32x64xbf16>, vector<16x64xf32> -> vector<16x64xf32>
    %c8_73 = arith.constant 8 : index
    %c0_74 = arith.constant 0 : index
    %177 = vector.load %arg3[%c8_73, %c0_74] : memref<48x128xf32, #tpu.memory_space<vmem>>, vector<1x64xf32>
    %178 = vector.broadcast %177 : vector<1x64xf32> to vector<16x64xf32>
    %179 = arith.addf %176, %178 : vector<16x64xf32>
    %cst_75 = arith.constant 5.000000e-01 : f32
    %180 = vector.broadcast %cst_75 : f32 to vector<16x64xf32>
    %181 = arith.mulf %180, %179 : vector<16x64xf32>
    %cst_76 = arith.constant 4.471500e-02 : f32
    %182 = vector.broadcast %cst_76 : f32 to vector<16x64xf32>
    %183 = arith.mulf %182, %179 : vector<16x64xf32>
    %184 = arith.mulf %183, %179 : vector<16x64xf32>
    %185 = arith.mulf %184, %179 : vector<16x64xf32>
    %186 = arith.addf %179, %185 : vector<16x64xf32>
    %cst_77 = arith.constant 0.797884583 : f32
    %187 = vector.broadcast %cst_77 : f32 to vector<16x64xf32>
    %188 = arith.mulf %187, %186 : vector<16x64xf32>
    %189 = math.tanh %188 : vector<16x64xf32>
    %cst_78 = arith.constant 1.000000e+00 : f32
    %190 = vector.broadcast %cst_78 : f32 to vector<16x64xf32>
    %191 = arith.addf %190, %189 : vector<16x64xf32>
    %192 = arith.mulf %181, %191 : vector<16x64xf32>
    %c5_79 = arith.constant 5 : index
    %c0_80 = arith.constant 0 : index
    %c0_81 = arith.constant 0 : index
    %193 = vector.load %arg4[%c5_79, %c0_80, %c0_81] : memref<13x64x128xbf16, #tpu.memory_space<vmem>>, vector<1x64x128xbf16>
    %194 = vector.shape_cast %193 : vector<1x64x128xbf16> to vector<64x128xbf16>
    %195 = vector.extract_strided_slice %194 {offsets = [0, 0], sizes = [64, 32], strides = [1, 1]} : vector<64x128xbf16> to vector<64x32xbf16>
    %196 = arith.truncf %192 : vector<16x64xf32> to vector<16x64xbf16>
    %cst_82 = arith.constant dense<0.000000e+00> : vector<16x32xf32>
    %197 = tpu.matmul %196, %195, %cst_82 {dimension_numbers = #tpu.dot_dimension_numbers<[1], [0], [0], [1], [0, 0, 1, 1], [], []>} : vector<16x64xbf16>, vector<64x32xbf16>, vector<16x32xf32> -> vector<16x32xf32>
    %c9_83 = arith.constant 9 : index
    %c0_84 = arith.constant 0 : index
    %198 = vector.load %arg3[%c9_83, %c0_84] : memref<48x128xf32, #tpu.memory_space<vmem>>, vector<1x32xf32>
    %199 = vector.broadcast %198 : vector<1x32xf32> to vector<16x32xf32>
    %200 = arith.addf %197, %199 : vector<16x32xf32>
    %201 = arith.addf %200, %171 : vector<16x32xf32>
    %c10_85 = arith.constant 10 : index
    %c0_86 = arith.constant 0 : index
    %202 = vector.load %arg3[%c10_85, %c0_86] : memref<48x128xf32, #tpu.memory_space<vmem>>, vector<1x32xf32>
    %c11_87 = arith.constant 11 : index
    %c0_88 = arith.constant 0 : index
    %203 = vector.load %arg3[%c11_87, %c0_88] : memref<48x128xf32, #tpu.memory_space<vmem>>, vector<1x32xf32>
    %cst_89 = arith.constant dense<0.000000e+00> : vector<16xf32>
    %204 = vector.multi_reduction <add>, %201, %cst_89 [1] : vector<16x32xf32> to vector<16xf32>
    %205 = vector.shape_cast %204 : vector<16xf32> to vector<16x1xf32>
    %cst_90 = arith.constant 3.200000e+01 : f32
    %206 = vector.broadcast %cst_90 : f32 to vector<16x1xf32>
    %207 = arith.divf %205, %206 : vector<16x1xf32>
    %208 = vector.broadcast %207 : vector<16x1xf32> to vector<16x32xf32>
    %209 = arith.subf %201, %208 : vector<16x32xf32>
    %210 = arith.mulf %209, %209 : vector<16x32xf32>
    %cst_91 = arith.constant dense<0.000000e+00> : vector<16xf32>
    %211 = vector.multi_reduction <add>, %210, %cst_91 [1] : vector<16x32xf32> to vector<16xf32>
    %212 = vector.shape_cast %211 : vector<16xf32> to vector<16x1xf32>
    %cst_92 = arith.constant 3.200000e+01 : f32
    %213 = vector.broadcast %cst_92 : f32 to vector<16x1xf32>
    %214 = arith.divf %212, %213 : vector<16x1xf32>
    %cst_93 = arith.constant 9.99999996E-13 : f32
    %215 = vector.broadcast %cst_93 : f32 to vector<16x1xf32>
    %216 = arith.addf %214, %215 : vector<16x1xf32>
    %217 = math.rsqrt %216 : vector<16x1xf32>
    %218 = vector.broadcast %217 : vector<16x1xf32> to vector<16x32xf32>
    %219 = arith.mulf %209, %218 : vector<16x32xf32>
    %220 = vector.broadcast %202 : vector<1x32xf32> to vector<16x32xf32>
    %221 = arith.mulf %219, %220 : vector<16x32xf32>
    %222 = vector.broadcast %203 : vector<1x32xf32> to vector<16x32xf32>
    %223 = arith.addf %221, %222 : vector<16x32xf32>
    %c6_94 = arith.constant 6 : index
    %c0_95 = arith.constant 0 : index
    %c0_96 = arith.constant 0 : index
    %224 = vector.load %arg4[%c6_94, %c0_95, %c0_96] : memref<13x64x128xbf16, #tpu.memory_space<vmem>>, vector<1x64x128xbf16>
    %225 = vector.shape_cast %224 : vector<1x64x128xbf16> to vector<64x128xbf16>
    %226 = vector.extract_strided_slice %225 {offsets = [0, 0], sizes = [32, 32], strides = [1, 1]} : vector<64x128xbf16> to vector<32x32xbf16>
    %227 = arith.truncf %223 : vector<16x32xf32> to vector<16x32xbf16>
    %cst_97 = arith.constant dense<0.000000e+00> : vector<16x32xf32>
    %228 = tpu.matmul %227, %226, %cst_97 {dimension_numbers = #tpu.dot_dimension_numbers<[1], [0], [0], [1], [0, 0, 1, 1], [], []>} : vector<16x32xbf16>, vector<32x32xbf16>, vector<16x32xf32> -> vector<16x32xf32>
    %c12_98 = arith.constant 12 : index
    %c0_99 = arith.constant 0 : index
    %229 = vector.load %arg3[%c12_98, %c0_99] : memref<48x128xf32, #tpu.memory_space<vmem>>, vector<1x32xf32>
    %230 = vector.broadcast %229 : vector<1x32xf32> to vector<16x32xf32>
    %231 = arith.addf %228, %230 : vector<16x32xf32>
    %c7_100 = arith.constant 7 : index
    %c0_101 = arith.constant 0 : index
    %c0_102 = arith.constant 0 : index
    %232 = vector.load %arg4[%c7_100, %c0_101, %c0_102] : memref<13x64x128xbf16, #tpu.memory_space<vmem>>, vector<1x64x128xbf16>
    %233 = vector.shape_cast %232 : vector<1x64x128xbf16> to vector<64x128xbf16>
    %234 = vector.extract_strided_slice %233 {offsets = [0, 0], sizes = [32, 32], strides = [1, 1]} : vector<64x128xbf16> to vector<32x32xbf16>
    %235 = arith.truncf %223 : vector<16x32xf32> to vector<16x32xbf16>
    %cst_103 = arith.constant dense<0.000000e+00> : vector<16x32xf32>
    %236 = tpu.matmul %235, %234, %cst_103 {dimension_numbers = #tpu.dot_dimension_numbers<[1], [0], [0], [1], [0, 0, 1, 1], [], []>} : vector<16x32xbf16>, vector<32x32xbf16>, vector<16x32xf32> -> vector<16x32xf32>
    %c13_104 = arith.constant 13 : index
    %c0_105 = arith.constant 0 : index
    %237 = vector.load %arg3[%c13_104, %c0_105] : memref<48x128xf32, #tpu.memory_space<vmem>>, vector<1x32xf32>
    %238 = vector.broadcast %237 : vector<1x32xf32> to vector<16x32xf32>
    %239 = arith.addf %236, %238 : vector<16x32xf32>
    %c8_106 = arith.constant 8 : index
    %c0_107 = arith.constant 0 : index
    %c0_108 = arith.constant 0 : index
    %240 = vector.load %arg4[%c8_106, %c0_107, %c0_108] : memref<13x64x128xbf16, #tpu.memory_space<vmem>>, vector<1x64x128xbf16>
    %241 = vector.shape_cast %240 : vector<1x64x128xbf16> to vector<64x128xbf16>
    %242 = vector.extract_strided_slice %241 {offsets = [0, 0], sizes = [32, 32], strides = [1, 1]} : vector<64x128xbf16> to vector<32x32xbf16>
    %243 = arith.truncf %223 : vector<16x32xf32> to vector<16x32xbf16>
    %cst_109 = arith.constant dense<0.000000e+00> : vector<16x32xf32>
    %244 = tpu.matmul %243, %242, %cst_109 {dimension_numbers = #tpu.dot_dimension_numbers<[1], [0], [0], [1], [0, 0, 1, 1], [], []>} : vector<16x32xbf16>, vector<32x32xbf16>, vector<16x32xf32> -> vector<16x32xf32>
    %c14_110 = arith.constant 14 : index
    %c0_111 = arith.constant 0 : index
    %245 = vector.load %arg3[%c14_110, %c0_111] : memref<48x128xf32, #tpu.memory_space<vmem>>, vector<1x32xf32>
    %246 = vector.broadcast %245 : vector<1x32xf32> to vector<16x32xf32>
    %247 = arith.addf %244, %246 : vector<16x32xf32>
    %248 = vector.shape_cast %231 : vector<16x32xf32> to vector<1x16x32xf32>
    %249 = vector.broadcast %248 : vector<1x16x32xf32> to vector<4x16x32xf32>
    %250 = vector.broadcast %86 : vector<4x1x32xf32> to vector<4x16x32xf32>
    %251 = arith.mulf %249, %250 : vector<4x16x32xf32>
    %252 = vector.shape_cast %239 : vector<16x32xf32> to vector<1x16x32xf32>
    %253 = vector.broadcast %252 : vector<1x16x32xf32> to vector<4x16x32xf32>
    %254 = vector.broadcast %86 : vector<4x1x32xf32> to vector<4x16x32xf32>
    %255 = arith.mulf %253, %254 : vector<4x16x32xf32>
    %256 = vector.shape_cast %247 : vector<16x32xf32> to vector<1x16x32xf32>
    %257 = vector.broadcast %256 : vector<1x16x32xf32> to vector<4x16x32xf32>
    %258 = vector.broadcast %86 : vector<4x1x32xf32> to vector<4x16x32xf32>
    %259 = arith.mulf %257, %258 : vector<4x16x32xf32>
    %260 = arith.truncf %251 : vector<4x16x32xf32> to vector<4x16x32xbf16>
    %261 = arith.truncf %255 : vector<4x16x32xf32> to vector<4x16x32xbf16>
    "tpu.trace_start"() <{level = 10 : i32, message = "hqd,hkd->hqk"}> : () -> ()
    %cst_112 = arith.constant dense<0.000000e+00> : vector<4x16x16xf32>
    %262 = tpu.matmul %260, %261, %cst_112 {dimension_numbers = #tpu.dot_dimension_numbers<[2], [2], [1], [1], [0, 0, 0, 1, 1, 1], [0], [0]>} : vector<4x16x32xbf16>, vector<4x16x32xbf16>, vector<4x16x16xf32> -> vector<4x16x16xf32>
    "tpu.trace_stop"() : () -> ()
    %263 = arith.addf %262, %84 : vector<4x16x16xf32>
    %cst_113 = arith.constant dense<0xFF800000> : vector<4x16xf32>
    %264 = vector.multi_reduction <maximumf>, %263, %cst_113 [2] : vector<4x16x16xf32> to vector<4x16xf32>
    %265 = vector.shape_cast %264 : vector<4x16xf32> to vector<4x16x1xf32>
    %266 = vector.broadcast %265 : vector<4x16x1xf32> to vector<4x16x16xf32>
    %267 = arith.subf %263, %266 : vector<4x16x16xf32>
    %268 = math.exp %267 : vector<4x16x16xf32>
    %cst_114 = arith.constant dense<0.000000e+00> : vector<4x16xf32>
    %269 = vector.multi_reduction <add>, %268, %cst_114 [2] : vector<4x16x16xf32> to vector<4x16xf32>
    %270 = vector.shape_cast %269 : vector<4x16xf32> to vector<4x16x1xf32>
    %271 = arith.truncf %268 : vector<4x16x16xf32> to vector<4x16x16xbf16>
    %272 = arith.truncf %259 : vector<4x16x32xf32> to vector<4x16x32xbf16>
    "tpu.trace_start"() <{level = 10 : i32, message = "hqk,hkd->hqd"}> : () -> ()
    %cst_115 = arith.constant dense<0.000000e+00> : vector<4x16x32xf32>
    %273 = tpu.matmul %271, %272, %cst_115 {dimension_numbers = #tpu.dot_dimension_numbers<[2], [1], [1], [2], [0, 0, 0, 1, 1, 2], [0], [0]>} : vector<4x16x16xbf16>, vector<4x16x32xbf16>, vector<4x16x32xf32> -> vector<4x16x32xf32>
    "tpu.trace_stop"() : () -> ()
    %274 = tpu.reciprocal %270 {approx = true} : vector<4x16x1xf32> -> vector<4x16x1xf32>
    %275 = vector.broadcast %274 : vector<4x16x1xf32> to vector<4x16x32xf32>
    %276 = arith.mulf %273, %275 : vector<4x16x32xf32>
    %cst_116 = arith.constant dense<0.000000e+00> : vector<16x32xf32>
    %277 = vector.multi_reduction <add>, %276, %cst_116 [0] : vector<4x16x32xf32> to vector<16x32xf32>
    %c9_117 = arith.constant 9 : index
    %c0_118 = arith.constant 0 : index
    %c0_119 = arith.constant 0 : index
    %278 = vector.load %arg4[%c9_117, %c0_118, %c0_119] : memref<13x64x128xbf16, #tpu.memory_space<vmem>>, vector<1x64x128xbf16>
    %279 = vector.shape_cast %278 : vector<1x64x128xbf16> to vector<64x128xbf16>
    %280 = vector.extract_strided_slice %279 {offsets = [0, 0], sizes = [32, 32], strides = [1, 1]} : vector<64x128xbf16> to vector<32x32xbf16>
    %281 = arith.truncf %277 : vector<16x32xf32> to vector<16x32xbf16>
    %cst_120 = arith.constant dense<0.000000e+00> : vector<16x32xf32>
    %282 = tpu.matmul %281, %280, %cst_120 {dimension_numbers = #tpu.dot_dimension_numbers<[1], [0], [0], [1], [0, 0, 1, 1], [], []>} : vector<16x32xbf16>, vector<32x32xbf16>, vector<16x32xf32> -> vector<16x32xf32>
    %c15_121 = arith.constant 15 : index
    %c0_122 = arith.constant 0 : index
    %283 = vector.load %arg3[%c15_121, %c0_122] : memref<48x128xf32, #tpu.memory_space<vmem>>, vector<1x32xf32>
    %284 = vector.broadcast %283 : vector<1x32xf32> to vector<16x32xf32>
    %285 = arith.addf %282, %284 : vector<16x32xf32>
    %286 = arith.addf %285, %223 : vector<16x32xf32>
    %c16 = arith.constant 16 : index
    %c0_123 = arith.constant 0 : index
    %287 = vector.load %arg3[%c16, %c0_123] : memref<48x128xf32, #tpu.memory_space<vmem>>, vector<1x32xf32>
    %c17 = arith.constant 17 : index
    %c0_124 = arith.constant 0 : index
    %288 = vector.load %arg3[%c17, %c0_124] : memref<48x128xf32, #tpu.memory_space<vmem>>, vector<1x32xf32>
    %cst_125 = arith.constant dense<0.000000e+00> : vector<16xf32>
    %289 = vector.multi_reduction <add>, %286, %cst_125 [1] : vector<16x32xf32> to vector<16xf32>
    %290 = vector.shape_cast %289 : vector<16xf32> to vector<16x1xf32>
    %cst_126 = arith.constant 3.200000e+01 : f32
    %291 = vector.broadcast %cst_126 : f32 to vector<16x1xf32>
    %292 = arith.divf %290, %291 : vector<16x1xf32>
    %293 = vector.broadcast %292 : vector<16x1xf32> to vector<16x32xf32>
    %294 = arith.subf %286, %293 : vector<16x32xf32>
    %295 = arith.mulf %294, %294 : vector<16x32xf32>
    %cst_127 = arith.constant dense<0.000000e+00> : vector<16xf32>
    %296 = vector.multi_reduction <add>, %295, %cst_127 [1] : vector<16x32xf32> to vector<16xf32>
    %297 = vector.shape_cast %296 : vector<16xf32> to vector<16x1xf32>
    %cst_128 = arith.constant 3.200000e+01 : f32
    %298 = vector.broadcast %cst_128 : f32 to vector<16x1xf32>
    %299 = arith.divf %297, %298 : vector<16x1xf32>
    %cst_129 = arith.constant 9.99999996E-13 : f32
    %300 = vector.broadcast %cst_129 : f32 to vector<16x1xf32>
    %301 = arith.addf %299, %300 : vector<16x1xf32>
    %302 = math.rsqrt %301 : vector<16x1xf32>
    %303 = vector.broadcast %302 : vector<16x1xf32> to vector<16x32xf32>
    %304 = arith.mulf %294, %303 : vector<16x32xf32>
    %305 = vector.broadcast %287 : vector<1x32xf32> to vector<16x32xf32>
    %306 = arith.mulf %304, %305 : vector<16x32xf32>
    %307 = vector.broadcast %288 : vector<1x32xf32> to vector<16x32xf32>
    %308 = arith.addf %306, %307 : vector<16x32xf32>
    %c10_130 = arith.constant 10 : index
    %c0_131 = arith.constant 0 : index
    %c0_132 = arith.constant 0 : index
    %309 = vector.load %arg4[%c10_130, %c0_131, %c0_132] : memref<13x64x128xbf16, #tpu.memory_space<vmem>>, vector<1x64x128xbf16>
    %310 = vector.shape_cast %309 : vector<1x64x128xbf16> to vector<64x128xbf16>
    %311 = vector.extract_strided_slice %310 {offsets = [0, 0], sizes = [32, 64], strides = [1, 1]} : vector<64x128xbf16> to vector<32x64xbf16>
    %312 = arith.truncf %308 : vector<16x32xf32> to vector<16x32xbf16>
    %cst_133 = arith.constant dense<0.000000e+00> : vector<16x64xf32>
    %313 = tpu.matmul %312, %311, %cst_133 {dimension_numbers = #tpu.dot_dimension_numbers<[1], [0], [0], [1], [0, 0, 1, 1], [], []>} : vector<16x32xbf16>, vector<32x64xbf16>, vector<16x64xf32> -> vector<16x64xf32>
    %c18 = arith.constant 18 : index
    %c0_134 = arith.constant 0 : index
    %314 = vector.load %arg3[%c18, %c0_134] : memref<48x128xf32, #tpu.memory_space<vmem>>, vector<1x64xf32>
    %315 = vector.broadcast %314 : vector<1x64xf32> to vector<16x64xf32>
    %316 = arith.addf %313, %315 : vector<16x64xf32>
    %cst_135 = arith.constant 5.000000e-01 : f32
    %317 = vector.broadcast %cst_135 : f32 to vector<16x64xf32>
    %318 = arith.mulf %317, %316 : vector<16x64xf32>
    %cst_136 = arith.constant 4.471500e-02 : f32
    %319 = vector.broadcast %cst_136 : f32 to vector<16x64xf32>
    %320 = arith.mulf %319, %316 : vector<16x64xf32>
    %321 = arith.mulf %320, %316 : vector<16x64xf32>
    %322 = arith.mulf %321, %316 : vector<16x64xf32>
    %323 = arith.addf %316, %322 : vector<16x64xf32>
    %cst_137 = arith.constant 0.797884583 : f32
    %324 = vector.broadcast %cst_137 : f32 to vector<16x64xf32>
    %325 = arith.mulf %324, %323 : vector<16x64xf32>
    %326 = math.tanh %325 : vector<16x64xf32>
    %cst_138 = arith.constant 1.000000e+00 : f32
    %327 = vector.broadcast %cst_138 : f32 to vector<16x64xf32>
    %328 = arith.addf %327, %326 : vector<16x64xf32>
    %329 = arith.mulf %318, %328 : vector<16x64xf32>
    %c11_139 = arith.constant 11 : index
    %c0_140 = arith.constant 0 : index
    %c0_141 = arith.constant 0 : index
    %330 = vector.load %arg4[%c11_139, %c0_140, %c0_141] : memref<13x64x128xbf16, #tpu.memory_space<vmem>>, vector<1x64x128xbf16>
    %331 = vector.shape_cast %330 : vector<1x64x128xbf16> to vector<64x128xbf16>
    %332 = vector.extract_strided_slice %331 {offsets = [0, 0], sizes = [64, 32], strides = [1, 1]} : vector<64x128xbf16> to vector<64x32xbf16>
    %333 = arith.truncf %329 : vector<16x64xf32> to vector<16x64xbf16>
    %cst_142 = arith.constant dense<0.000000e+00> : vector<16x32xf32>
    %334 = tpu.matmul %333, %332, %cst_142 {dimension_numbers = #tpu.dot_dimension_numbers<[1], [0], [0], [1], [0, 0, 1, 1], [], []>} : vector<16x64xbf16>, vector<64x32xbf16>, vector<16x32xf32> -> vector<16x32xf32>
    %c19 = arith.constant 19 : index
    %c0_143 = arith.constant 0 : index
    %335 = vector.load %arg3[%c19, %c0_143] : memref<48x128xf32, #tpu.memory_space<vmem>>, vector<1x32xf32>
    %336 = vector.broadcast %335 : vector<1x32xf32> to vector<16x32xf32>
    %337 = arith.addf %334, %336 : vector<16x32xf32>
    %338 = arith.addf %337, %308 : vector<16x32xf32>
    %c20 = arith.constant 20 : index
    %c0_144 = arith.constant 0 : index
    %339 = vector.load %arg3[%c20, %c0_144] : memref<48x128xf32, #tpu.memory_space<vmem>>, vector<1x32xf32>
    %c21 = arith.constant 21 : index
    %c0_145 = arith.constant 0 : index
    %340 = vector.load %arg3[%c21, %c0_145] : memref<48x128xf32, #tpu.memory_space<vmem>>, vector<1x32xf32>
    %cst_146 = arith.constant dense<0.000000e+00> : vector<16xf32>
    %341 = vector.multi_reduction <add>, %338, %cst_146 [1] : vector<16x32xf32> to vector<16xf32>
    %342 = vector.shape_cast %341 : vector<16xf32> to vector<16x1xf32>
    %cst_147 = arith.constant 3.200000e+01 : f32
    %343 = vector.broadcast %cst_147 : f32 to vector<16x1xf32>
    %344 = arith.divf %342, %343 : vector<16x1xf32>
    %345 = vector.broadcast %344 : vector<16x1xf32> to vector<16x32xf32>
    %346 = arith.subf %338, %345 : vector<16x32xf32>
    %347 = arith.mulf %346, %346 : vector<16x32xf32>
    %cst_148 = arith.constant dense<0.000000e+00> : vector<16xf32>
    %348 = vector.multi_reduction <add>, %347, %cst_148 [1] : vector<16x32xf32> to vector<16xf32>
    %349 = vector.shape_cast %348 : vector<16xf32> to vector<16x1xf32>
    %cst_149 = arith.constant 3.200000e+01 : f32
    %350 = vector.broadcast %cst_149 : f32 to vector<16x1xf32>
    %351 = arith.divf %349, %350 : vector<16x1xf32>
    %cst_150 = arith.constant 9.99999996E-13 : f32
    %352 = vector.broadcast %cst_150 : f32 to vector<16x1xf32>
    %353 = arith.addf %351, %352 : vector<16x1xf32>
    %354 = math.rsqrt %353 : vector<16x1xf32>
    %355 = vector.broadcast %354 : vector<16x1xf32> to vector<16x32xf32>
    %356 = arith.mulf %346, %355 : vector<16x32xf32>
    %357 = vector.broadcast %339 : vector<1x32xf32> to vector<16x32xf32>
    %358 = arith.mulf %356, %357 : vector<16x32xf32>
    %359 = vector.broadcast %340 : vector<1x32xf32> to vector<16x32xf32>
    %360 = arith.addf %358, %359 : vector<16x32xf32>
    %361 = vector.extract_strided_slice %360 {offsets = [0, 0], sizes = [1, 32], strides = [1, 1]} : vector<16x32xf32> to vector<1x32xf32>
    %362 = vector.extract_strided_slice %360 {offsets = [8, 0], sizes = [1, 32], strides = [1, 1]} : vector<16x32xf32> to vector<1x32xf32>
    %363 = tpu.concatenate %361, %362 in 0 : vector<1x32xf32>, vector<1x32xf32> -> vector<2x32xf32>
    %c12_151 = arith.constant 12 : index
    %c0_152 = arith.constant 0 : index
    %c0_153 = arith.constant 0 : index
    %364 = vector.load %arg4[%c12_151, %c0_152, %c0_153] : memref<13x64x128xbf16, #tpu.memory_space<vmem>>, vector<1x64x128xbf16>
    %365 = vector.shape_cast %364 : vector<1x64x128xbf16> to vector<64x128xbf16>
    %366 = vector.extract_strided_slice %365 {offsets = [0, 0], sizes = [32, 128], strides = [1, 1]} : vector<64x128xbf16> to vector<32x128xbf16>
    %367 = arith.truncf %363 : vector<2x32xf32> to vector<2x32xbf16>
    %cst_154 = arith.constant dense<0.000000e+00> : vector<2x128xf32>
    %368 = tpu.matmul %367, %366, %cst_154 {dimension_numbers = #tpu.dot_dimension_numbers<[1], [0], [0], [1], [0, 0, 1, 1], [], []>} : vector<2x32xbf16>, vector<32x128xbf16>, vector<2x128xf32> -> vector<2x128xf32>
    %c22 = arith.constant 22 : index
    %c0_155 = arith.constant 0 : index
    %369 = vector.load %arg3[%c22, %c0_155] : memref<48x128xf32, #tpu.memory_space<vmem>>, vector<1x128xf32>
    %370 = vector.broadcast %369 : vector<1x128xf32> to vector<2x128xf32>
    %371 = arith.addf %368, %370 : vector<2x128xf32>
    %cst_156 = arith.constant 0.000000e+00 : f32
    %372 = vector.broadcast %cst_156 : f32 to vector<2x128xf32>
    %373 = arith.subf %372, %371 : vector<2x128xf32>
    %374 = math.exp %373 : vector<2x128xf32>
    %cst_157 = arith.constant 1.000000e+00 : f32
    %375 = vector.broadcast %cst_157 : f32 to vector<2x128xf32>
    %376 = arith.addf %375, %374 : vector<2x128xf32>
    %cst_158 = arith.constant 1.000000e+00 : f32
    %377 = vector.broadcast %cst_158 : f32 to vector<2x128xf32>
    %378 = arith.divf %377, %376 : vector<2x128xf32>
    %c0_159 = arith.constant 0 : index
    %c0_160 = arith.constant 0 : index
    %379 = vector.load %arg5[%c0_159, %c0_160] : memref<2x128xf32, #tpu.memory_space<vmem>>, vector<2x128xf32>
    tpu.vector_store %arg5[%c0_159, %c0_160], %378 {strides = array<i32>} : memref<2x128xf32, #tpu.memory_space<vmem>>, vector<2x128xf32>,
    return
  }
}

</mosaic_0001>

<llo_original>
// kernel: _forward.1
$region0: #{_forward.1}
  #allocation0 [shape = 'u32[]', space=smem, size = 0x4, offset = 0x4, fixed_abs, tag = 'smem constant byte address 0x4 - core index']
  #allocation1 [shape = 'u32[144,128]{1,0:T(1,128)}', space=vmem, size = 0x12000, scoped, tag = 'internal scratch']
  %s0 = inlined_call_operand.vmem [shape: s32[16], index: 0, kind: input, shape index: {}]
  %s1 = inlined_call_operand.vmem [shape: f32[1,16], index: 1, kind: input, shape index: {}]
  %s2 = inlined_call_operand.vmem [shape: f32[72,32], index: 2, kind: input, shape index: {}]
  %s3 = inlined_call_operand.vmem [shape: f32[48,128], index: 3, kind: input, shape index: {}]
  %s4 = inlined_call_operand.hbm [shape: bf16[13,64,128], index: 4, kind: input, shape index: {}]
  %s5 = inlined_call_operand.hbm [shape: f32[2,128], index: 5, kind: output, shape index: {}]
  %s6 = sld [smem:[#allocation0]]
  $region38: #{_forward.1} parent=0
    _
  %s8 = ssub.s32 1, %s6
  %s9 = scalar_select 0, %s8, %s6
  $region1: #{_forward.1} parent=0
    #allocation2 [shape = 'u8[512]{0}', space=smem, size = 0x200, scoped, tag = 'input window, operand 0, single buffered']
    #allocation3 [shape = 's32[1]{0}', space=sflag, size = 0x4, scoped, tag = 'scoped memory for _forward.1']
    #allocation4 [shape = 's32[1]{0}', space=sflag, size = 0x4, scoped, tag = 'scoped memory for _forward.1']
    #allocation5 [shape = 's32[1]{0}', space=sflag, size = 0x4, scoped, tag = 'scoped memory for _forward.1']
    #allocation6 [shape = 'u8[212992]{0}', space=vmem, size = 0x34000, scoped, tag = 'input window, operand 4, single buffered']
    #allocation7 [shape = 'u8[1024]{0}', space=vmem, size = 0x400, scoped, tag = 'output window, operand 0, single buffered']
    %10 = vsyncpa [#allocation5], 0
    %11 = vsyncpa [#allocation3], 0
    %12 = vsyncpa [#allocation4], 0
    // Predicated region
    $region2: #{_forward.1} parent=1 // pred_check
      _
    $region3: #{_forward.1} parent=1 // pred_check_branch
      %14 = sbr.rel (0) target = $region5
    $region4: #{_forward.1} parent=1 // pred_region
      %s16 = ssub.s32 16, 16
      %17 = vsyncadd [#allocation5], %s16
      %s19 = sshll.u32 %s0, 4
      %s20 = int_to_ptr.vmem [resolvable:$true] %s19
      %22 = dma.vmem_to_smem %s20, 16, [#allocation2], [#allocation5]
    $region5: #{_forward.1} parent=1 // pred_fallthru
      _
    // Predicated region
    $region6: #{_forward.1} parent=1 // pred_check
      _
    $region7: #{_forward.1} parent=1 // pred_check_branch
      %24 = sbr.rel (0) target = $region9
    $region8: #{_forward.1} parent=1 // pred_region
      _
    $region9: #{_forward.1} parent=1 // pred_fallthru
      _
    // Predicated region
    $region10: #{_forward.1} parent=1 // pred_check
      _
    $region11: #{_forward.1} parent=1 // pred_check_branch
      %26 = sbr.rel (0) target = $region13
    $region12: #{_forward.1} parent=1 // pred_region
      _
    $region13: #{_forward.1} parent=1 // pred_fallthru
      _
    // Predicated region
    $region14: #{_forward.1} parent=1 // pred_check
      _
    $region15: #{_forward.1} parent=1 // pred_check_branch
      %28 = sbr.rel (0) target = $region17
    $region16: #{_forward.1} parent=1 // pred_region
      _
    $region17: #{_forward.1} parent=1 // pred_fallthru
      _
    // Predicated region
    $region18: #{_forward.1} parent=1 // pred_check
      _
    $region19: #{_forward.1} parent=1 // pred_check_branch
      %30 = sbr.rel (0) target = $region21
    $region20: #{_forward.1} parent=1 // pred_region
      %s32 = ssub.s32 6656, 6656
      %33 = vsyncadd [#allocation3], %s32
      %s34 = sshll.u32 [#allocation6], 4
      %s35 = int_to_ptr.vmem [resolvable:$true] %s34
      %40 = dma.hbm_to_vmem [thread:$0]  %s4, 6656, %s35, [#allocation3], 64, 64, 4
    $region21: #{_forward.1} parent=1 // pred_fallthru
      _
    // Predicated region
    $region22: #{_forward.1} parent=1 // pred_check
      _
    $region23: #{_forward.1} parent=1 // pred_check_branch
      %42 = sbr.rel (0) target = $region25
    $region24: #{_forward.1} parent=1 // pred_region
      %43 = dma.done [#allocation5], 16
    $region25: #{_forward.1} parent=1 // pred_fallthru
      _
    // Predicated region
    $region26: #{_forward.1} parent=1 // pred_check
      _
    $region27: #{_forward.1} parent=1 // pred_check_branch
      %45 = sbr.rel (0) target = $region29
    $region28: #{_forward.1} parent=1 // pred_region
      %46 = dma.done [#allocation3], 6656
    $region29: #{_forward.1} parent=1 // pred_fallthru
      _
    %47 = sfence
    %v49 = vld [vmem:[%s2 + $0x38] sm:$0xff]
    %s50 = sld [smem:[#allocation2]]
    %s51 = scalar_lea.vmem %s2, %s50
    %v52 = vld [vmem:[%s51] sm:$0x1]
    %s53 = sld [smem:[#allocation2 + $0x1]]
    %s54 = scalar_lea.vmem %s2, %s53
    %v55 = vld [vmem:[%s54] sm:$0x1]
    %s56 = sld [smem:[#allocation2 + $0x2]]
    %s57 = scalar_lea.vmem %s2, %s56
    %v58 = vld [vmem:[%s57] sm:$0x1]
    %s59 = sld [smem:[#allocation2 + $0x3]]
    %s60 = scalar_lea.vmem %s2, %s59
    %v61 = vld [vmem:[%s60] sm:$0x1]
    %s62 = sld [smem:[#allocation2 + $0x4]]
    %s63 = scalar_lea.vmem %s2, %s62
    %v64 = vld [vmem:[%s63] sm:$0x1]
    %s65 = sld [smem:[#allocation2 + $0x5]]
    %s66 = scalar_lea.vmem %s2, %s65
    %v67 = vld [vmem:[%s66] sm:$0x1]
    %s68 = sld [smem:[#allocation2 + $0x6]]
    %s69 = scalar_lea.vmem %s2, %s68
    %v70 = vld [vmem:[%s69] sm:$0x1]
    %s71 = sld [smem:[#allocation2 + $0x7]]
    %s72 = scalar_lea.vmem %s2, %s71
    %v73 = vld [vmem:[%s72] sm:$0x1]
    %s74 = sld [smem:[#allocation2 + $0x8]]
    %s75 = scalar_lea.vmem %s2, %s74
    %v76 = vld [vmem:[%s75] sm:$0x1]
    %s77 = sld [smem:[#allocation2 + $0x9]]
    %s78 = scalar_lea.vmem %s2, %s77
    %v79 = vld [vmem:[%s78] sm:$0x1]
    %s80 = sld [smem:[#allocation2 + $0xa]]
    %s81 = scalar_lea.vmem %s2, %s80
    %v82 = vld [vmem:[%s81] sm:$0x1]
    %s83 = sld [smem:[#allocation2 + $0xb]]
    %s84 = scalar_lea.vmem %s2, %s83
    %v85 = vld [vmem:[%s84] sm:$0x1]
    %s86 = sld [smem:[#allocation2 + $0xc]]
    %s87 = scalar_lea.vmem %s2, %s86
    %v88 = vld [vmem:[%s87] sm:$0x1]
    %s89 = sld [smem:[#allocation2 + $0xd]]
    %s90 = scalar_lea.vmem %s2, %s89
    %v91 = vld [vmem:[%s90] sm:$0x1]
    %s92 = sld [smem:[#allocation2 + $0xe]]
    %s93 = scalar_lea.vmem %s2, %s92
    %v94 = vld [vmem:[%s93] sm:$0x1]
    %s95 = sld [smem:[#allocation2 + $0xf]]
    %s96 = scalar_lea.vmem %s2, %s95
    %v97 = vld [vmem:[%s96] sm:$0x1]
    %v99 = vrot.slane %v55, 7
    %v102 = vrot.slane %v58, 6
    %v105 = vrot.slane %v61, 5
    %v108 = vrot.slane %v64, 4
    %v111 = vrot.slane %v67, 3
    %v114 = vrot.slane %v70, 2
    %v117 = vrot.slane %v73, 1
    %v120 = vrot.slane %v79, 7
    %v123 = vrot.slane %v82, 6
    %v126 = vrot.slane %v85, 5
    %v129 = vrot.slane %v88, 4
    %v132 = vrot.slane %v91, 3
    %v135 = vrot.slane %v94, 2
    %v138 = vrot.slane %v97, 1
    %vm140 = vcmask 1040384
    %v141 = vsel %vm140, %v52, %v99
    %vm142 = vcmask 1041408
    %v143 = vsel %vm142, %v141, %v102
    %vm144 = vcmask 1042432
    %v145 = vsel %vm144, %v143, %v105
    %vm146 = vcmask 1043456
    %v147 = vsel %vm146, %v145, %v108
    %vm148 = vcmask 1044480
    %v149 = vsel %vm148, %v147, %v111
    %vm150 = vcmask 1045504
    %v151 = vsel %vm150, %v149, %v114
    %vm152 = vcmask 1046528
    %v153 = vsel %vm152, %v151, %v117
    %v154 = vsel %vm140, %v76, %v120
    %v155 = vsel %vm142, %v154, %v123
    %v156 = vsel %vm144, %v155, %v126
    %v157 = vsel %vm146, %v156, %v129
    %v158 = vsel %vm148, %v157, %v132
    %v159 = vsel %vm150, %v158, %v135
    %v160 = vsel %vm152, %v159, %v138
    %v161 = vadd.f32 %v153, %v49
    %v162 = vadd.f32 %v160, %v49
    %v163 = vld [vmem:[%s3] sm:$0x1]
    %v164 = vld [vmem:[%s3 + $0x1] sm:$0x1]
    %vm165 = vcmask 261120
    %v166 = vsel %vm165, %v161, 0.0
    %167 = vadd.xlane.f32.xlu0 %v166
    %v168 = vpop.xlane.xlu0 %167
    %v169 = vsel %vm165, %v162, 0.0
    %170 = vadd.xlane.f32.xlu0 %v169
    %v171 = vpop.xlane.xlu0 %170
    %v172 = vrcp.pop 32.0
    %v173 = vmul.f32 %v168, %v172
    %v174 = vmul.f32 %v171, %v172
    %v175 = vsub.f32 %v161, %v173
    %v176 = vsub.f32 %v162, %v174
    %v177 = vmul.f32 %v175, %v175
    %v178 = vmul.f32 %v176, %v176
    %v179 = vsel %vm165, %v177, 0.0
    %180 = vadd.xlane.f32.xlu0 %v179
    %v181 = vpop.xlane.xlu0 %180
    %v182 = vsel %vm165, %v178, 0.0
    %183 = vadd.xlane.f32.xlu0 %v182
    %v184 = vpop.xlane.xlu0 %183
    %v185 = vmul.f32 %v181, %v172
    %v186 = vmul.f32 %v184, %v172
    %v187 = vadd.f32 %v185, 1e-12
    %v188 = vadd.f32 %v186, 1e-12
    %v189 = vrsqrt.pop %v187
    %v190 = vrsqrt.pop %v188
    %v191 = vmul.f32 %v175, %v189
    %v192 = vmul.f32 %v176, %v190
    %v193 = vlaneseq
    %v194 = vshrl.u32 %v193, 7
    %v195 = vsub.s32 0, %v194
    %v196 = vrot.slane %v163, %v195
    %v197 = vmul.f32 %v191, %v196
    %v198 = vmul.f32 %v192, %v196
    %v199 = vlaneseq
    %v200 = vshrl.u32 %v199, 7
    %v201 = vsub.s32 0, %v200
    %v202 = vrot.slane %v164, %v201
    %v203 = vadd.f32 %v197, %v202
    %v204 = vadd.f32 %v198, %v202
    %v205 = vld [vmem:[%s3 + $0x20] sm:$0xff]
    %v206 = vld [vmem:[%s3 + $0x28] sm:$0xff]
    %v207 = vld [vmem:[%s1] sm:$0x1]
    %vm208 = vcmp.gt.f32.partialorder %v207, 0.5
    %v209 = vsel %vm208, 1, 0
    %v210 = vlaneseq
    %v211 = vshrl.u32 %v210, 7
    %v212 = vsub.s32 0, %v211
    %v213 = vrot.slane %v209, %v212
    %vm214 = vcmp.eq.s32.totalorder %v213, 1
    %v215 = vsel %vm214, %v205, -1e+09
    %v216 = vsel %vm214, %v206, -1e+09
    %v217 = vld [vmem:[%s3 + $0x18] sm:$0xf]
    %v220 = vunpack.c.l.s4 1966171168
    %v221 = vunpack.c.0.s8 %v220
    %v222 = vlaneseq
    %v223 = vshrl.u32 %v222, 7
    %v224 = vsub.s32 %v221, %v223
    %v225 = vrot.slane %v217, %v224
    %v226 = vcombine.high %v225, %v225
    %v228 = vunpack.c.l.s4 1966171168
    %v229 = vunpack.c.0.s8 %v228
    %v230 = vlaneseq
    %v231 = vshrl.u32 %v230, 7
    %v232 = vsub.s32 %v229, %v231
    %v233 = vrot.slane %v225, %v232
    %v235 = vunpack.c.l.s4 1966171168
    %v236 = vunpack.c.0.s8 %v235
    %v237 = vlaneseq
    %v238 = vshrl.u32 %v237, 7
    %v239 = vsub.s32 %v236, %v238
    %v240 = vrot.slane %v226, %v239
    %v241 = vcombine.high %v233, %v233
    %v242 = vcombine.high %v240, %v240
    %v243 = vld [vmem:[#allocation6] sm:$0xf]
    %v244 = vld [vmem:[#allocation6 + $0x4] sm:$0xf]
    %v245 = vld [vmem:[#allocation6 + $0x8] sm:$0xf]
    %v246 = vld [vmem:[#allocation6 + $0xc] sm:$0xf]
    %v247 = vpack.c.bf16 %v204, %v203
    %v248 = vld [vmem:[%s3 + $0x2] sm:$0x1]
    %v249 = vlaneseq
    %v250 = vshrl.u32 %v249, 7
    %v251 = vsub.s32 0, %v250
    %v252 = vrot.slane %v248, %v251
    %v257 = vunpack.c.l.b16 %v243
    %v258 = vunpack.c.l.b16 %v244
    %v259 = vunpack.c.l.b16 %v245
    %v260 = vunpack.c.l.b16 %v246
    %v261 = vpack.c.b16 %v258, %v257
    %v262 = vpack.c.b16 %v260, %v259
    %v266 = vsel %vm165, %v247, 0
    %268 = vmatprep.subr.bf16.mxu0 0
    %269 = vmatpush1.bf16.msra.mxu0 0
    %270 = vmatprep.subr.bf16.mxu0 0
    %271 = vmatpush1.bf16.msra.mxu0 0
    %272 = vmatprep.subr.bf16.mxu0 0
    %273 = vmatpush1.bf16.msra.mxu0 0
    %274 = vmatprep.subr.bf16.mxu0 0
    %275 = vmatpush1.bf16.msra.mxu0 0
    %276 = vmatprep.subr.bf16.mxu0 0
    %277 = vmatpush1.bf16.msra.mxu0 0
    %278 = vmatprep.subr.bf16.mxu0 0
    %279 = vmatpush1.bf16.msra.mxu0 0
    %280 = vmatprep.subr.bf16.mxu0 0
    %281 = vmatpush1.bf16.msra.mxu0 %v262
    %282 = vmatprep.subr.bf16.mxu0 0
    %283 = vmatpush1.bf16.msra.mxu0 %v261
    %284 = vmatprep.subr.bf16.mxu0 0
    %285 = vmatpush2.bf16.msra.mxu0 0
    %286 = vmatprep.subr.bf16.mxu0 0
    %287 = vmatpush2.bf16.msra.mxu0 0
    %288 = vmatprep.subr.bf16.mxu0 0
    %289 = vmatpush2.bf16.msra.mxu0 0
    %290 = vmatprep.subr.bf16.mxu0 0
    %291 = vmatpush2.bf16.msra.mxu0 0
    %292 = vmatprep.subr.bf16.mxu0 0
    %293 = vmatpush2.bf16.msra.mxu0 0
    %294 = vmatprep.subr.bf16.mxu0 0
    %295 = vmatpush2.bf16.msra.mxu0 0
    %296 = vmatprep.subr.bf16.mxu0 0
    %297 = vmatpush2.bf16.msra.mxu0 0
    %298 = vmatprep.subr.bf16.mxu0 0
    %299 = vmatpush2.bf16.msra.mxu0 0
    %300 = vmatprep.mubr.bf16.mxu0 0
    %301 = vmatmul.mubr.bf16.gmra.mxu0 %v266
    %v302 = vpop.f32.mrf.mxu0
    %v303 = vadd.f32 %v252, %v302
    %v304 = vpop.f32.mrf.mxu0
    %v305 = vpop.f32.mrf.mxu0
    %v306 = vadd.f32 %v252, %v305
    %v307 = vpop.f32.mrf.mxu0
    %308 = vdwg.mxu0
    %s309 = scalar_lea.vmem [#allocation6], 32
    %v310 = vld [vmem:[%s309] sm:$0xf]
    %v311 = vld [vmem:[%s309 + $0x4] sm:$0xf]
    %v312 = vld [vmem:[%s309 + $0x8] sm:$0xf]
    %v313 = vld [vmem:[%s309 + $0xc] sm:$0xf]
    %v314 = vld [vmem:[%s3 + $0x3] sm:$0x1]
    %v315 = vlaneseq
    %v316 = vshrl.u32 %v315, 7
    %v317 = vsub.s32 0, %v316
    %v318 = vrot.slane %v314, %v317
    %v323 = vunpack.c.l.b16 %v310
    %v324 = vunpack.c.l.b16 %v311
    %v325 = vunpack.c.l.b16 %v312
    %v326 = vunpack.c.l.b16 %v313
    %v327 = vpack.c.b16 %v324, %v323
    %v328 = vpack.c.b16 %v326, %v325
    %331 = vmatprep.subr.bf16.mxu0 0
    %332 = vmatpush1.bf16.msra.mxu0 0
    %333 = vmatprep.subr.bf16.mxu0 0
    %334 = vmatpush1.bf16.msra.mxu0 0
    %335 = vmatprep.subr.bf16.mxu0 0
    %336 = vmatpush1.bf16.msra.mxu0 0
    %337 = vmatprep.subr.bf16.mxu0 0
    %338 = vmatpush1.bf16.msra.mxu0 0
    %339 = vmatprep.subr.bf16.mxu0 0
    %340 = vmatpush1.bf16.msra.mxu0 0
    %341 = vmatprep.subr.bf16.mxu0 0
    %342 = vmatpush1.bf16.msra.mxu0 0
    %343 = vmatprep.subr.bf16.mxu0 0
    %344 = vmatpush1.bf16.msra.mxu0 %v328
    %345 = vmatprep.subr.bf16.mxu0 0
    %346 = vmatpush1.bf16.msra.mxu0 %v327
    %347 = vmatprep.subr.bf16.mxu0 0
    %348 = vmatpush2.bf16.msra.mxu0 0
    %349 = vmatprep.subr.bf16.mxu0 0
    %350 = vmatpush2.bf16.msra.mxu0 0
    %351 = vmatprep.subr.bf16.mxu0 0
    %352 = vmatpush2.bf16.msra.mxu0 0
    %353 = vmatprep.subr.bf16.mxu0 0
    %354 = vmatpush2.bf16.msra.mxu0 0
    %355 = vmatprep.subr.bf16.mxu0 0
    %356 = vmatpush2.bf16.msra.mxu0 0
    %357 = vmatprep.subr.bf16.mxu0 0
    %358 = vmatpush2.bf16.msra.mxu0 0
    %359 = vmatprep.subr.bf16.mxu0 0
    %360 = vmatpush2.bf16.msra.mxu0 0
    %361 = vmatprep.subr.bf16.mxu0 0
    %362 = vmatpush2.bf16.msra.mxu0 0
    %363 = vmatprep.mubr.bf16.mxu0 0
    %364 = vmatmul.mubr.bf16.gmra.mxu0 %v266
    %v365 = vpop.f32.mrf.mxu0
    %v366 = vadd.f32 %v318, %v365
    %v367 = vpop.f32.mrf.mxu0
    %v368 = vpop.f32.mrf.mxu0
    %v369 = vadd.f32 %v318, %v368
    %v370 = vpop.f32.mrf.mxu0
    %371 = vdwg.mxu0
    %s372 = scalar_lea.vmem [#allocation6], 64
    %v373 = vld [vmem:[%s372] sm:$0xf]
    %v374 = vld [vmem:[%s372 + $0x4] sm:$0xf]
    %v375 = vld [vmem:[%s372 + $0x8] sm:$0xf]
    %v376 = vld [vmem:[%s372 + $0xc] sm:$0xf]
    %v377 = vld [vmem:[%s3 + $0x4] sm:$0x1]
    %v378 = vlaneseq
    %v379 = vshrl.u32 %v378, 7
    %v380 = vsub.s32 0, %v379
    %v381 = vrot.slane %v377, %v380
    %v386 = vunpack.c.l.b16 %v373
    %v387 = vunpack.c.l.b16 %v374
    %v388 = vunpack.c.l.b16 %v375
    %v389 = vunpack.c.l.b16 %v376
    %v390 = vpack.c.b16 %v387, %v386
    %v391 = vpack.c.b16 %v389, %v388
    %394 = vmatprep.subr.bf16.mxu0 0
    %395 = vmatpush1.bf16.msra.mxu0 0
    %396 = vmatprep.subr.bf16.mxu0 0
    %397 = vmatpush1.bf16.msra.mxu0 0
    %398 = vmatprep.subr.bf16.mxu0 0
    %399 = vmatpush1.bf16.msra.mxu0 0
    %400 = vmatprep.subr.bf16.mxu0 0
    %401 = vmatpush1.bf16.msra.mxu0 0
    %402 = vmatprep.subr.bf16.mxu0 0
    %403 = vmatpush1.bf16.msra.mxu0 0
    %404 = vmatprep.subr.bf16.mxu0 0
    %405 = vmatpush1.bf16.msra.mxu0 0
    %406 = vmatprep.subr.bf16.mxu0 0
    %407 = vmatpush1.bf16.msra.mxu0 %v391
    %408 = vmatprep.subr.bf16.mxu0 0
    %409 = vmatpush1.bf16.msra.mxu0 %v390
    %410 = vmatprep.subr.bf16.mxu0 0
    %411 = vmatpush2.bf16.msra.mxu0 0
    %412 = vmatprep.subr.bf16.mxu0 0
    %413 = vmatpush2.bf16.msra.mxu0 0
    %414 = vmatprep.subr.bf16.mxu0 0
    %415 = vmatpush2.bf16.msra.mxu0 0
    %416 = vmatprep.subr.bf16.mxu0 0
    %417 = vmatpush2.bf16.msra.mxu0 0
    %418 = vmatprep.subr.bf16.mxu0 0
    %419 = vmatpush2.bf16.msra.mxu0 0
    %420 = vmatprep.subr.bf16.mxu0 0
    %421 = vmatpush2.bf16.msra.mxu0 0
    %422 = vmatprep.subr.bf16.mxu0 0
    %423 = vmatpush2.bf16.msra.mxu0 0
    %424 = vmatprep.subr.bf16.mxu0 0
    %425 = vmatpush2.bf16.msra.mxu0 0
    %426 = vmatprep.mubr.bf16.mxu0 0
    %427 = vmatmul.mubr.bf16.gmra.mxu0 %v266
    %v428 = vpop.f32.mrf.mxu0
    %v429 = vadd.f32 %v381, %v428
    %v430 = vpop.f32.mrf.mxu0
    %v431 = vpop.f32.mrf.mxu0
    %v432 = vadd.f32 %v381, %v431
    %v433 = vpop.f32.mrf.mxu0
    %434 = vdwg.mxu0
    %v435 = vlaneseq
    %v436 = vshrl.u32 %v435, 7
    %v437 = vsub.s32 0, %v436
    %v438 = vrot.slane %v233, %v437
    %v439 = vlaneseq
    %v440 = vshrl.u32 %v439, 7
    %v441 = vsub.s32 0, %v440
    %v442 = vrot.slane %v240, %v441
    %v443 = vlaneseq
    %v444 = vshrl.u32 %v443, 7
    %v445 = vsub.s32 0, %v444
    %v446 = vrot.slane %v241, %v445
    %v447 = vlaneseq
    %v448 = vshrl.u32 %v447, 7
    %v449 = vsub.s32 0, %v448
    %v450 = vrot.slane %v242, %v449
    %v455 = vmul.f32 %v303, %v438
    %v456 = vmul.f32 %v306, %v438
    %v457 = vmul.f32 %v303, %v442
    %v458 = vmul.f32 %v306, %v442
    %v459 = vmul.f32 %v303, %v446
    %v460 = vmul.f32 %v306, %v446
    %v461 = vmul.f32 %v303, %v450
    %v462 = vmul.f32 %v306, %v450
    %v463 = vmul.f32 %v366, %v438
    %v464 = vmul.f32 %v369, %v438
    %v465 = vmul.f32 %v366, %v442
    %v466 = vmul.f32 %v369, %v442
    %v467 = vmul.f32 %v366, %v446
    %v468 = vmul.f32 %v369, %v446
    %v469 = vmul.f32 %v366, %v450
    %v470 = vmul.f32 %v369, %v450
    %v471 = vmul.f32 %v429, %v438
    %v472 = vmul.f32 %v432, %v438
    %v473 = vmul.f32 %v429, %v442
    %v474 = vmul.f32 %v432, %v442
    %v475 = vmul.f32 %v429, %v446
    %v476 = vmul.f32 %v432, %v446
    %v477 = vmul.f32 %v429, %v450
    %v478 = vmul.f32 %v432, %v450
    %v479 = vpack.c.bf16 %v456, %v455
    %v480 = vpack.c.bf16 %v458, %v457
    %v481 = vpack.c.bf16 %v460, %v459
    %v482 = vpack.c.bf16 %v462, %v461
    %v483 = vpack.c.bf16 %v464, %v463
    %v484 = vpack.c.bf16 %v466, %v465
    %v485 = vpack.c.bf16 %v468, %v467
    %v486 = vpack.c.bf16 %v470, %v469
    %v488 = vsel %vm165, %v479, 0
    %v491 = vsel %vm165, %v483, 0
    %493 = vmatprep.subr.bf16.mxu0 0
    %494 = vmatpush1.bf16.xpose.msra.mxu0 0
    %495 = vmatprep.subr.bf16.mxu0 0
    %496 = vmatpush1.bf16.xpose.msra.mxu0 0
    %497 = vmatprep.subr.bf16.mxu0 0
    %498 = vmatpush1.bf16.xpose.msra.mxu0 0
    %499 = vmatprep.subr.bf16.mxu0 0
    %500 = vmatpush1.bf16.xpose.msra.mxu0 0
    %501 = vmatprep.subr.bf16.mxu0 0
    %502 = vmatpush1.bf16.xpose.msra.mxu0 0
    %503 = vmatprep.subr.bf16.mxu0 0
    %504 = vmatpush1.bf16.xpose.msra.mxu0 0
    %505 = vmatprep.subr.bf16.mxu0 0
    %506 = vmatpush1.bf16.xpose.msra.mxu0 0
    %507 = vmatprep.subr.bf16.mxu0 0
    %508 = vmatpush1.bf16.xpose.msra.mxu0 %v491
    %509 = vmatprep.subr.bf16.mxu0 0
    %510 = vmatpush2.bf16.xpose.msra.mxu0 0
    %511 = vmatprep.subr.bf16.mxu0 0
    %512 = vmatpush2.bf16.xpose.msra.mxu0 0
    %513 = vmatprep.subr.bf16.mxu0 0
    %514 = vmatpush2.bf16.xpose.msra.mxu0 0
    %515 = vmatprep.subr.bf16.mxu0 0
    %516 = vmatpush2.bf16.xpose.msra.mxu0 0
    %517 = vmatprep.subr.bf16.mxu0 0
    %518 = vmatpush2.bf16.xpose.msra.mxu0 0
    %519 = vmatprep.subr.bf16.mxu0 0
    %520 = vmatpush2.bf16.xpose.msra.mxu0 0
    %521 = vmatprep.subr.bf16.mxu0 0
    %522 = vmatpush2.bf16.xpose.msra.mxu0 0
    %523 = vmatprep.subr.bf16.mxu0 0
    %524 = vmatpush2.bf16.xpose.msra.mxu0 0
    %525 = vmatprep.mubr.bf16.mxu0 0
    %526 = vmatmul.mubr.bf16.gmra.mxu0 %v488
    %v527 = vpop.f32.mrf.mxu0
    %v528 = vadd.f32 %v215, %v527
    %v529 = vpop.f32.mrf.mxu0
    %v530 = vpop.f32.mrf.mxu0
    %v531 = vadd.f32 %v216, %v530
    %v532 = vpop.f32.mrf.mxu0
    %533 = vdwg.mxu0
    %v535 = vsel %vm165, %v480, 0
    %v538 = vsel %vm165, %v484, 0
    %540 = vmatprep.subr.bf16.mxu0 0
    %541 = vmatpush1.bf16.xpose.msra.mxu0 0
    %542 = vmatprep.subr.bf16.mxu0 0
    %543 = vmatpush1.bf16.xpose.msra.mxu0 0
    %544 = vmatprep.subr.bf16.mxu0 0
    %545 = vmatpush1.bf16.xpose.msra.mxu0 0
    %546 = vmatprep.subr.bf16.mxu0 0
    %547 = vmatpush1.bf16.xpose.msra.mxu0 0
    %548 = vmatprep.subr.bf16.mxu0 0
    %549 = vmatpush1.bf16.xpose.msra.mxu0 0
    %550 = vmatprep.subr.bf16.mxu0 0
    %551 = vmatpush1.bf16.xpose.msra.mxu0 0
    %552 = vmatprep.subr.bf16.mxu0 0
    %553 = vmatpush1.bf16.xpose.msra.mxu0 0
    %554 = vmatprep.subr.bf16.mxu0 0
    %555 = vmatpush1.bf16.xpose.msra.mxu0 %v538
    %556 = vmatprep.subr.bf16.mxu0 0
    %557 = vmatpush2.bf16.xpose.msra.mxu0 0
    %558 = vmatprep.subr.bf16.mxu0 0
    %559 = vmatpush2.bf16.xpose.msra.mxu0 0
    %560 = vmatprep.subr.bf16.mxu0 0
    %561 = vmatpush2.bf16.xpose.msra.mxu0 0
    %562 = vmatprep.subr.bf16.mxu0 0
    %563 = vmatpush2.bf16.xpose.msra.mxu0 0
    %564 = vmatprep.subr.bf16.mxu0 0
    %565 = vmatpush2.bf16.xpose.msra.mxu0 0
    %566 = vmatprep.subr.bf16.mxu0 0
    %567 = vmatpush2.bf16.xpose.msra.mxu0 0
    %568 = vmatprep.subr.bf16.mxu0 0
    %569 = vmatpush2.bf16.xpose.msra.mxu0 0
    %570 = vmatprep.subr.bf16.mxu0 0
    %571 = vmatpush2.bf16.xpose.msra.mxu0 0
    %572 = vmatprep.mubr.bf16.mxu0 0
    %573 = vmatmul.mubr.bf16.gmra.mxu0 %v535
    %v574 = vpop.f32.mrf.mxu0
    %v575 = vadd.f32 %v215, %v574
    %v576 = vpop.f32.mrf.mxu0
    %v577 = vpop.f32.mrf.mxu0
    %v578 = vadd.f32 %v216, %v577
    %v579 = vpop.f32.mrf.mxu0
    %580 = vdwg.mxu0
    %v582 = vsel %vm165, %v481, 0
    %v585 = vsel %vm165, %v485, 0
    %587 = vmatprep.subr.bf16.mxu0 0
    %588 = vmatpush1.bf16.xpose.msra.mxu0 0
    %589 = vmatprep.subr.bf16.mxu0 0
    %590 = vmatpush1.bf16.xpose.msra.mxu0 0
    %591 = vmatprep.subr.bf16.mxu0 0
    %592 = vmatpush1.bf16.xpose.msra.mxu0 0
    %593 = vmatprep.subr.bf16.mxu0 0
    %594 = vmatpush1.bf16.xpose.msra.mxu0 0
    %595 = vmatprep.subr.bf16.mxu0 0
    %596 = vmatpush1.bf16.xpose.msra.mxu0 0
    %597 = vmatprep.subr.bf16.mxu0 0
    %598 = vmatpush1.bf16.xpose.msra.mxu0 0
    %599 = vmatprep.subr.bf16.mxu0 0
    %600 = vmatpush1.bf16.xpose.msra.mxu0 0
    %601 = vmatprep.subr.bf16.mxu0 0
    %602 = vmatpush1.bf16.xpose.msra.mxu0 %v585
    %603 = vmatprep.subr.bf16.mxu0 0
    %604 = vmatpush2.bf16.xpose.msra.mxu0 0
    %605 = vmatprep.subr.bf16.mxu0 0
    %606 = vmatpush2.bf16.xpose.msra.mxu0 0
    %607 = vmatprep.subr.bf16.mxu0 0
    %608 = vmatpush2.bf16.xpose.msra.mxu0 0
    %609 = vmatprep.subr.bf16.mxu0 0
    %610 = vmatpush2.bf16.xpose.msra.mxu0 0
    %611 = vmatprep.subr.bf16.mxu0 0
    %612 = vmatpush2.bf16.xpose.msra.mxu0 0
    %613 = vmatprep.subr.bf16.mxu0 0
    %614 = vmatpush2.bf16.xpose.msra.mxu0 0
    %615 = vmatprep.subr.bf16.mxu0 0
    %616 = vmatpush2.bf16.xpose.msra.mxu0 0
    %617 = vmatprep.subr.bf16.mxu0 0
    %618 = vmatpush2.bf16.xpose.msra.mxu0 0
    %619 = vmatprep.mubr.bf16.mxu0 0
    %620 = vmatmul.mubr.bf16.gmra.mxu0 %v582
    %v621 = vpop.f32.mrf.mxu0
    %v622 = vadd.f32 %v215, %v621
    %v623 = vpop.f32.mrf.mxu0
    %v624 = vpop.f32.mrf.mxu0
    %v625 = vadd.f32 %v216, %v624
    %v626 = vpop.f32.mrf.mxu0
    %627 = vdwg.mxu0
    %v629 = vsel %vm165, %v482, 0
    %v632 = vsel %vm165, %v486, 0
    %634 = vmatprep.subr.bf16.mxu0 0
    %635 = vmatpush1.bf16.xpose.msra.mxu0 0
    %636 = vmatprep.subr.bf16.mxu0 0
    %637 = vmatpush1.bf16.xpose.msra.mxu0 0
    %638 = vmatprep.subr.bf16.mxu0 0
    %639 = vmatpush1.bf16.xpose.msra.mxu0 0
    %640 = vmatprep.subr.bf16.mxu0 0
    %641 = vmatpush1.bf16.xpose.msra.mxu0 0
    %642 = vmatprep.subr.bf16.mxu0 0
    %643 = vmatpush1.bf16.xpose.msra.mxu0 0
    %644 = vmatprep.subr.bf16.mxu0 0
    %645 = vmatpush1.bf16.xpose.msra.mxu0 0
    %646 = vmatprep.subr.bf16.mxu0 0
    %647 = vmatpush1.bf16.xpose.msra.mxu0 0
    %648 = vmatprep.subr.bf16.mxu0 0
    %649 = vmatpush1.bf16.xpose.msra.mxu0 %v632
    %650 = vmatprep.subr.bf16.mxu0 0
    %651 = vmatpush2.bf16.xpose.msra.mxu0 0
    %652 = vmatprep.subr.bf16.mxu0 0
    %653 = vmatpush2.bf16.xpose.msra.mxu0 0
    %654 = vmatprep.subr.bf16.mxu0 0
    %655 = vmatpush2.bf16.xpose.msra.mxu0 0
    %656 = vmatprep.subr.bf16.mxu0 0
    %657 = vmatpush2.bf16.xpose.msra.mxu0 0
    %658 = vmatprep.subr.bf16.mxu0 0
    %659 = vmatpush2.bf16.xpose.msra.mxu0 0
    %660 = vmatprep.subr.bf16.mxu0 0
    %661 = vmatpush2.bf16.xpose.msra.mxu0 0
    %662 = vmatprep.subr.bf16.mxu0 0
    %663 = vmatpush2.bf16.xpose.msra.mxu0 0
    %664 = vmatprep.subr.bf16.mxu0 0
    %665 = vmatpush2.bf16.xpose.msra.mxu0 0
    %666 = vmatprep.mubr.bf16.mxu0 0
    %667 = vmatmul.mubr.bf16.gmra.mxu0 %v629
    %v668 = vpop.f32.mrf.mxu0
    %v669 = vadd.f32 %v215, %v668
    %v670 = vpop.f32.mrf.mxu0
    %v671 = vpop.f32.mrf.mxu0
    %v672 = vadd.f32 %v216, %v671
    %v673 = vpop.f32.mrf.mxu0
    %674 = vdwg.mxu0
    %vm675 = vcmask 130048
    %v676 = vsel %vm675, %v528, -inf
    %677 = vmax.xlane.f32.xlu0 %v676
    %v678 = vpop.xlane.xlu0 %677
    %v679 = vsel %vm675, %v531, -inf
    %680 = vmax.xlane.f32.xlu0 %v679
    %v681 = vpop.xlane.xlu0 %680
    %v682 = vsel %vm675, %v575, -inf
    %683 = vmax.xlane.f32.xlu0 %v682
    %v684 = vpop.xlane.xlu0 %683
    %v685 = vsel %vm675, %v578, -inf
    %686 = vmax.xlane.f32.xlu0 %v685
    %v687 = vpop.xlane.xlu0 %686
    %v688 = vsel %vm675, %v622, -inf
    %689 = vmax.xlane.f32.xlu0 %v688
    %v690 = vpop.xlane.xlu0 %689
    %v691 = vsel %vm675, %v625, -inf
    %692 = vmax.xlane.f32.xlu0 %v691
    %v693 = vpop.xlane.xlu0 %692
    %v694 = vsel %vm675, %v669, -inf
    %695 = vmax.xlane.f32.xlu0 %v694
    %v696 = vpop.xlane.xlu0 %695
    %v697 = vsel %vm675, %v672, -inf
    %698 = vmax.xlane.f32.xlu0 %v697
    %v699 = vpop.xlane.xlu0 %698
    %v700 = vsub.f32 %v528, %v678
    %v701 = vsub.f32 %v531, %v681
    %v702 = vsub.f32 %v575, %v684
    %v703 = vsub.f32 %v578, %v687
    %v704 = vsub.f32 %v622, %v690
    %v705 = vsub.f32 %v625, %v693
    %v706 = vsub.f32 %v669, %v696
    %v707 = vsub.f32 %v672, %v699
    %v708 = vmul.f32 %v700, 1.442695
    %v709 = vpow.pop %v708
    %v710 = vmul.f32 %v701, 1.442695
    %v711 = vpow.pop %v710
    %v712 = vmul.f32 %v702, 1.442695
    %v713 = vpow.pop %v712
    %v714 = vmul.f32 %v703, 1.442695
    %v715 = vpow.pop %v714
    %v716 = vmul.f32 %v704, 1.442695
    %v717 = vpow.pop %v716
    %v718 = vmul.f32 %v705, 1.442695
    %v719 = vpow.pop %v718
    %v720 = vmul.f32 %v706, 1.442695
    %v721 = vpow.pop %v720
    %v722 = vmul.f32 %v707, 1.442695
    %v723 = vpow.pop %v722
    %v724 = vsel %vm675, %v709, 0.0
    %725 = vadd.xlane.f32.xlu0 %v724
    %v726 = vpop.xlane.xlu0 %725
    %v727 = vsel %vm675, %v711, 0.0
    %728 = vadd.xlane.f32.xlu0 %v727
    %v729 = vpop.xlane.xlu0 %728
    %v730 = vsel %vm675, %v713, 0.0
    %731 = vadd.xlane.f32.xlu0 %v730
    %v732 = vpop.xlane.xlu0 %731
    %v733 = vsel %vm675, %v715, 0.0
    %734 = vadd.xlane.f32.xlu0 %v733
    %v735 = vpop.xlane.xlu0 %734
    %v736 = vsel %vm675, %v717, 0.0
    %737 = vadd.xlane.f32.xlu0 %v736
    %v738 = vpop.xlane.xlu0 %737
    %v739 = vsel %vm675, %v719, 0.0
    %740 = vadd.xlane.f32.xlu0 %v739
    %v741 = vpop.xlane.xlu0 %740
    %v742 = vsel %vm675, %v721, 0.0
    %743 = vadd.xlane.f32.xlu0 %v742
    %v744 = vpop.xlane.xlu0 %743
    %v745 = vsel %vm675, %v723, 0.0
    %746 = vadd.xlane.f32.xlu0 %v745
    %v747 = vpop.xlane.xlu0 %746
    %v748 = vpack.c.bf16 %v711, %v709
    %v749 = vpack.c.bf16 %v715, %v713
    %v750 = vpack.c.bf16 %v719, %v717
    %v751 = vpack.c.bf16 %v723, %v721
    %v752 = vpack.c.bf16 %v472, %v471
    %v753 = vpack.c.bf16 %v474, %v473
    %v754 = vpack.c.bf16 %v476, %v475
    %v755 = vpack.c.bf16 %v478, %v477
    %v757 = vsel %vm675, %v748, 0
    %759 = vmatprep.subr.bf16.mxu0 0
    %760 = vmatpush1.bf16.msra.mxu0 0
    %761 = vmatprep.subr.bf16.mxu0 0
    %762 = vmatpush1.bf16.msra.mxu0 0
    %763 = vmatprep.subr.bf16.mxu0 0
    %764 = vmatpush1.bf16.msra.mxu0 0
    %765 = vmatprep.subr.bf16.mxu0 0
    %766 = vmatpush1.bf16.msra.mxu0 0
    %767 = vmatprep.subr.bf16.mxu0 0
    %768 = vmatpush1.bf16.msra.mxu0 0
    %769 = vmatprep.subr.bf16.mxu0 0
    %770 = vmatpush1.bf16.msra.mxu0 0
    %771 = vmatprep.subr.bf16.mxu0 0
    %772 = vmatpush1.bf16.msra.mxu0 0
    %773 = vmatprep.subr.bf16.mxu0 0
    %774 = vmatpush1.bf16.msra.mxu0 %v752
    %775 = vmatprep.subr.bf16.mxu0 0
    %776 = vmatpush2.bf16.msra.mxu0 0
    %777 = vmatprep.subr.bf16.mxu0 0
    %778 = vmatpush2.bf16.msra.mxu0 0
    %779 = vmatprep.subr.bf16.mxu0 0
    %780 = vmatpush2.bf16.msra.mxu0 0
    %781 = vmatprep.subr.bf16.mxu0 0
    %782 = vmatpush2.bf16.msra.mxu0 0
    %783 = vmatprep.subr.bf16.mxu0 0
    %784 = vmatpush2.bf16.msra.mxu0 0
    %785 = vmatprep.subr.bf16.mxu0 0
    %786 = vmatpush2.bf16.msra.mxu0 0
    %787 = vmatprep.subr.bf16.mxu0 0
    %788 = vmatpush2.bf16.msra.mxu0 0
    %789 = vmatprep.subr.bf16.mxu0 0
    %790 = vmatpush2.bf16.msra.mxu0 0
    %791 = vmatprep.mubr.bf16.mxu0 0
    %792 = vmatmul.mubr.bf16.gmra.mxu0 %v757
    %v793 = vpop.f32.mrf.mxu0
    %v794 = vadd.f32 0.0, %v793
    %v795 = vpop.f32.mrf.mxu0
    %v796 = vpop.f32.mrf.mxu0
    %v797 = vadd.f32 0.0, %v796
    %v798 = vpop.f32.mrf.mxu0
    %799 = vdwg.mxu0
    %v801 = vsel %vm675, %v749, 0
    %803 = vmatprep.subr.bf16.mxu0 0
    %804 = vmatpush1.bf16.msra.mxu0 0
    %805 = vmatprep.subr.bf16.mxu0 0
    %806 = vmatpush1.bf16.msra.mxu0 0
    %807 = vmatprep.subr.bf16.mxu0 0
    %808 = vmatpush1.bf16.msra.mxu0 0
    %809 = vmatprep.subr.bf16.mxu0 0
    %810 = vmatpush1.bf16.msra.mxu0 0
    %811 = vmatprep.subr.bf16.mxu0 0
    %812 = vmatpush1.bf16.msra.mxu0 0
    %813 = vmatprep.subr.bf16.mxu0 0
    %814 = vmatpush1.bf16.msra.mxu0 0
    %815 = vmatprep.subr.bf16.mxu0 0
    %816 = vmatpush1.bf16.msra.mxu0 0
    %817 = vmatprep.subr.bf16.mxu0 0
    %818 = vmatpush1.bf16.msra.mxu0 %v753
    %819 = vmatprep.subr.bf16.mxu0 0
    %820 = vmatpush2.bf16.msra.mxu0 0
    %821 = vmatprep.subr.bf16.mxu0 0
    %822 = vmatpush2.bf16.msra.mxu0 0
    %823 = vmatprep.subr.bf16.mxu0 0
    %824 = vmatpush2.bf16.msra.mxu0 0
    %825 = vmatprep.subr.bf16.mxu0 0
    %826 = vmatpush2.bf16.msra.mxu0 0
    %827 = vmatprep.subr.bf16.mxu0 0
    %828 = vmatpush2.bf16.msra.mxu0 0
    %829 = vmatprep.subr.bf16.mxu0 0
    %830 = vmatpush2.bf16.msra.mxu0 0
    %831 = vmatprep.subr.bf16.mxu0 0
    %832 = vmatpush2.bf16.msra.mxu0 0
    %833 = vmatprep.subr.bf16.mxu0 0
    %834 = vmatpush2.bf16.msra.mxu0 0
    %835 = vmatprep.mubr.bf16.mxu0 0
    %836 = vmatmul.mubr.bf16.gmra.mxu0 %v801
    %v837 = vpop.f32.mrf.mxu0
    %v838 = vadd.f32 0.0, %v837
    %v839 = vpop.f32.mrf.mxu0
    %v840 = vpop.f32.mrf.mxu0
    %v841 = vadd.f32 0.0, %v840
    %v842 = vpop.f32.mrf.mxu0
    %843 = vdwg.mxu0
    %v845 = vsel %vm675, %v750, 0
    %847 = vmatprep.subr.bf16.mxu0 0
    %848 = vmatpush1.bf16.msra.mxu0 0
    %849 = vmatprep.subr.bf16.mxu0 0
    %850 = vmatpush1.bf16.msra.mxu0 0
    %851 = vmatprep.subr.bf16.mxu0 0
    %852 = vmatpush1.bf16.msra.mxu0 0
    %853 = vmatprep.subr.bf16.mxu0 0
    %854 = vmatpush1.bf16.msra.mxu0 0
    %855 = vmatprep.subr.bf16.mxu0 0
    %856 = vmatpush1.bf16.msra.mxu0 0
    %857 = vmatprep.subr.bf16.mxu0 0
    %858 = vmatpush1.bf16.msra.mxu0 0
    %859 = vmatprep.subr.bf16.mxu0 0
    %860 = vmatpush1.bf16.msra.mxu0 0
    %861 = vmatprep.subr.bf16.mxu0 0
    %862 = vmatpush1.bf16.msra.mxu0 %v754
    %863 = vmatprep.subr.bf16.mxu0 0
    %864 = vmatpush2.bf16.msra.mxu0 0
    %865 = vmatprep.subr.bf16.mxu0 0
    %866 = vmatpush2.bf16.msra.mxu0 0
    %867 = vmatprep.subr.bf16.mxu0 0
    %868 = vmatpush2.bf16.msra.mxu0 0
    %869 = vmatprep.subr.bf16.mxu0 0
    %870 = vmatpush2.bf16.msra.mxu0 0
    %871 = vmatprep.subr.bf16.mxu0 0
    %872 = vmatpush2.bf16.msra.mxu0 0
    %873 = vmatprep.subr.bf16.mxu0 0
    %874 = vmatpush2.bf16.msra.mxu0 0
    %875 = vmatprep.subr.bf16.mxu0 0
    %876 = vmatpush2.bf16.msra.mxu0 0
    %877 = vmatprep.subr.bf16.mxu0 0
    %878 = vmatpush2.bf16.msra.mxu0 0
    %879 = vmatprep.mubr.bf16.mxu0 0
    %880 = vmatmul.mubr.bf16.gmra.mxu0 %v845
    %v881 = vpop.f32.mrf.mxu0
    %v882 = vadd.f32 0.0, %v881
    %v883 = vpop.f32.mrf.mxu0
    %v884 = vpop.f32.mrf.mxu0
    %v885 = vadd.f32 0.0, %v884
    %v886 = vpop.f32.mrf.mxu0
    %887 = vdwg.mxu0
    %v889 = vsel %vm675, %v751, 0
    %891 = vmatprep.subr.bf16.mxu0 0
    %892 = vmatpush1.bf16.msra.mxu0 0
    %893 = vmatprep.subr.bf16.mxu0 0
    %894 = vmatpush1.bf16.msra.mxu0 0
    %895 = vmatprep.subr.bf16.mxu0 0
    %896 = vmatpush1.bf16.msra.mxu0 0
    %897 = vmatprep.subr.bf16.mxu0 0
    %898 = vmatpush1.bf16.msra.mxu0 0
    %899 = vmatprep.subr.bf16.mxu0 0
    %900 = vmatpush1.bf16.msra.mxu0 0
    %901 = vmatprep.subr.bf16.mxu0 0
    %902 = vmatpush1.bf16.msra.mxu0 0
    %903 = vmatprep.subr.bf16.mxu0 0
    %904 = vmatpush1.bf16.msra.mxu0 0
    %905 = vmatprep.subr.bf16.mxu0 0
    %906 = vmatpush1.bf16.msra.mxu0 %v755
    %907 = vmatprep.subr.bf16.mxu0 0
    %908 = vmatpush2.bf16.msra.mxu0 0
    %909 = vmatprep.subr.bf16.mxu0 0
    %910 = vmatpush2.bf16.msra.mxu0 0
    %911 = vmatprep.subr.bf16.mxu0 0
    %912 = vmatpush2.bf16.msra.mxu0 0
    %913 = vmatprep.subr.bf16.mxu0 0
    %914 = vmatpush2.bf16.msra.mxu0 0
    %915 = vmatprep.subr.bf16.mxu0 0
    %916 = vmatpush2.bf16.msra.mxu0 0
    %917 = vmatprep.subr.bf16.mxu0 0
    %918 = vmatpush2.bf16.msra.mxu0 0
    %919 = vmatprep.subr.bf16.mxu0 0
    %920 = vmatpush2.bf16.msra.mxu0 0
    %921 = vmatprep.subr.bf16.mxu0 0
    %922 = vmatpush2.bf16.msra.mxu0 0
    %923 = vmatprep.mubr.bf16.mxu0 0
    %924 = vmatmul.mubr.bf16.gmra.mxu0 %v889
    %v925 = vpop.f32.mrf.mxu0
    %v926 = vadd.f32 0.0, %v925
    %v927 = vpop.f32.mrf.mxu0
    %v928 = vpop.f32.mrf.mxu0
    %v929 = vadd.f32 0.0, %v928
    %v930 = vpop.f32.mrf.mxu0
    %931 = vdwg.mxu0
    %v932 = vrcp.pop %v726
    %v933 = vrcp.pop %v729
    %v934 = vrcp.pop %v732
    %v935 = vrcp.pop %v735
    %v936 = vrcp.pop %v738
    %v937 = vrcp.pop %v741
    %v938 = vrcp.pop %v744
    %v939 = vrcp.pop %v747
    %v940 = vmul.f32 %v794, %v932
    %v941 = vmul.f32 %v797, %v933
    %v942 = vmul.f32 %v838, %v934
    %v943 = vmul.f32 %v841, %v935
    %v944 = vmul.f32 %v882, %v936
    %v945 = vmul.f32 %v885, %v937
    %v946 = vmul.f32 %v926, %v938
    %v947 = vmul.f32 %v929, %v939
    %v948 = vsel %vm165, %v940, 0.0
    %v949 = vsel %vm165, %v942, 0.0
    %v950 = vadd.f32 %v948, %v949
    %v951 = vsel %vm165, %v944, 0.0
    %v952 = vadd.f32 %v950, %v951
    %v953 = vsel %vm165, %v946, 0.0
    %v954 = vadd.f32 %v952, %v953
    %v955 = vsel %vm165, %v941, 0.0
    %v956 = vsel %vm165, %v943, 0.0
    %v957 = vadd.f32 %v955, %v956
    %v958 = vsel %vm165, %v945, 0.0
    %v959 = vadd.f32 %v957, %v958
    %v960 = vsel %vm165, %v947, 0.0
    %v961 = vadd.f32 %v959, %v960
    %s962 = scalar_lea.vmem [#allocation6], 96
    %v963 = vld [vmem:[%s962] sm:$0xf]
    %v964 = vld [vmem:[%s962 + $0x4] sm:$0xf]
    %v965 = vld [vmem:[%s962 + $0x8] sm:$0xf]
    %v966 = vld [vmem:[%s962 + $0xc] sm:$0xf]
    %v967 = vpack.c.bf16 %v961, %v954
    %v968 = vld [vmem:[%s3 + $0x5] sm:$0x1]
    %v969 = vlaneseq
    %v970 = vshrl.u32 %v969, 7
    %v971 = vsub.s32 0, %v970
    %v972 = vrot.slane %v968, %v971
    %v977 = vunpack.c.l.b16 %v963
    %v978 = vunpack.c.l.b16 %v964
    %v979 = vunpack.c.l.b16 %v965
    %v980 = vunpack.c.l.b16 %v966
    %v981 = vpack.c.b16 %v978, %v977
    %v982 = vpack.c.b16 %v980, %v979
    %v986 = vsel %vm165, %v967, 0
    %988 = vmatprep.subr.bf16.mxu0 0
    %989 = vmatpush1.bf16.msra.mxu0 0
    %990 = vmatprep.subr.bf16.mxu0 0
    %991 = vmatpush1.bf16.msra.mxu0 0
    %992 = vmatprep.subr.bf16.mxu0 0
    %993 = vmatpush1.bf16.msra.mxu0 0
    %994 = vmatprep.subr.bf16.mxu0 0
    %995 = vmatpush1.bf16.msra.mxu0 0
    %996 = vmatprep.subr.bf16.mxu0 0
    %997 = vmatpush1.bf16.msra.mxu0 0
    %998 = vmatprep.subr.bf16.mxu0 0
    %999 = vmatpush1.bf16.msra.mxu0 0
    %1000 = vmatprep.subr.bf16.mxu0 0
    %1001 = vmatpush1.bf16.msra.mxu0 %v982
    %1002 = vmatprep.subr.bf16.mxu0 0
    %1003 = vmatpush1.bf16.msra.mxu0 %v981
    %1004 = vmatprep.subr.bf16.mxu0 0
    %1005 = vmatpush2.bf16.msra.mxu0 0
    %1006 = vmatprep.subr.bf16.mxu0 0
    %1007 = vmatpush2.bf16.msra.mxu0 0
    %1008 = vmatprep.subr.bf16.mxu0 0
    %1009 = vmatpush2.bf16.msra.mxu0 0
    %1010 = vmatprep.subr.bf16.mxu0 0
    %1011 = vmatpush2.bf16.msra.mxu0 0
    %1012 = vmatprep.subr.bf16.mxu0 0
    %1013 = vmatpush2.bf16.msra.mxu0 0
    %1014 = vmatprep.subr.bf16.mxu0 0
    %1015 = vmatpush2.bf16.msra.mxu0 0
    %1016 = vmatprep.subr.bf16.mxu0 0
    %1017 = vmatpush2.bf16.msra.mxu0 0
    %1018 = vmatprep.subr.bf16.mxu0 0
    %1019 = vmatpush2.bf16.msra.mxu0 0
    %1020 = vmatprep.mubr.bf16.mxu0 0
    %1021 = vmatmul.mubr.bf16.gmra.mxu0 %v986
    %v1022 = vpop.f32.mrf.mxu0
    %v1023 = vadd.f32 %v972, %v1022
    %v1024 = vpop.f32.mrf.mxu0
    %v1025 = vpop.f32.mrf.mxu0
    %v1026 = vadd.f32 %v972, %v1025
    %v1027 = vpop.f32.mrf.mxu0
    %1028 = vdwg.mxu0
    %v1029 = vadd.f32 %v1023, %v203
    %v1030 = vadd.f32 %v1026, %v204
    %v1031 = vld [vmem:[%s3 + $0x6] sm:$0x1]
    %v1032 = vld [vmem:[%s3 + $0x7] sm:$0x1]
    %v1033 = vsel %vm165, %v1029, 0.0
    %1034 = vadd.xlane.f32.xlu0 %v1033
    %v1035 = vpop.xlane.xlu0 %1034
    %v1036 = vsel %vm165, %v1030, 0.0
    %1037 = vadd.xlane.f32.xlu0 %v1036
    %v1038 = vpop.xlane.xlu0 %1037
    %v1039 = vmul.f32 %v1035, %v172
    %v1040 = vmul.f32 %v1038, %v172
    %v1041 = vsub.f32 %v1029, %v1039
    %v1042 = vsub.f32 %v1030, %v1040
    %v1043 = vmul.f32 %v1041, %v1041
    %v1044 = vmul.f32 %v1042, %v1042
    %v1045 = vsel %vm165, %v1043, 0.0
    %1046 = vadd.xlane.f32.xlu0 %v1045
    %v1047 = vpop.xlane.xlu0 %1046
    %v1048 = vsel %vm165, %v1044, 0.0
    %1049 = vadd.xlane.f32.xlu0 %v1048
    %v1050 = vpop.xlane.xlu0 %1049
    %v1051 = vmul.f32 %v1047, %v172
    %v1052 = vmul.f32 %v1050, %v172
    %v1053 = vadd.f32 %v1051, 1e-12
    %v1054 = vadd.f32 %v1052, 1e-12
    %v1055 = vrsqrt.pop %v1053
    %v1056 = vrsqrt.pop %v1054
    %v1057 = vmul.f32 %v1041, %v1055
    %v1058 = vmul.f32 %v1042, %v1056
    %v1059 = vlaneseq
    %v1060 = vshrl.u32 %v1059, 7
    %v1061 = vsub.s32 0, %v1060
    %v1062 = vrot.slane %v1031, %v1061
    %v1063 = vmul.f32 %v1057, %v1062
    %v1064 = vmul.f32 %v1058, %v1062
    %v1065 = vlaneseq
    %v1066 = vshrl.u32 %v1065, 7
    %v1067 = vsub.s32 0, %v1066
    %v1068 = vrot.slane %v1032, %v1067
    %v1069 = vadd.f32 %v1063, %v1068
    %v1070 = vadd.f32 %v1064, %v1068
    %s1071 = scalar_lea.vmem [#allocation6], 128
    %v1072 = vld [vmem:[%s1071] sm:$0xf]
    %v1073 = vld [vmem:[%s1071 + $0x4] sm:$0xf]
    %v1074 = vld [vmem:[%s1071 + $0x8] sm:$0xf]
    %v1075 = vld [vmem:[%s1071 + $0xc] sm:$0xf]
    %v1076 = vpack.c.bf16 %v1070, %v1069
    %v1077 = vld [vmem:[%s3 + $0x8] sm:$0x1]
    %v1078 = vlaneseq
    %v1079 = vshrl.u32 %v1078, 7
    %v1080 = vsub.s32 0, %v1079
    %v1081 = vrot.slane %v1077, %v1080
    %v1086 = vunpack.c.l.b16 %v1072
    %v1087 = vunpack.c.l.b16 %v1073
    %v1088 = vunpack.c.l.b16 %v1074
    %v1089 = vunpack.c.l.b16 %v1075
    %v1090 = vpack.c.b16 %v1087, %v1086
    %v1091 = vpack.c.b16 %v1089, %v1088
    %v1095 = vsel %vm165, %v1076, 0
    %1097 = vmatprep.subr.bf16.mxu0 0
    %1098 = vmatpush1.bf16.msra.mxu0 0
    %1099 = vmatprep.subr.bf16.mxu0 0
    %1100 = vmatpush1.bf16.msra.mxu0 0
    %1101 = vmatprep.subr.bf16.mxu0 0
    %1102 = vmatpush1.bf16.msra.mxu0 0
    %1103 = vmatprep.subr.bf16.mxu0 0
    %1104 = vmatpush1.bf16.msra.mxu0 0
    %1105 = vmatprep.subr.bf16.mxu0 0
    %1106 = vmatpush1.bf16.msra.mxu0 0
    %1107 = vmatprep.subr.bf16.mxu0 0
    %1108 = vmatpush1.bf16.msra.mxu0 0
    %1109 = vmatprep.subr.bf16.mxu0 0
    %1110 = vmatpush1.bf16.msra.mxu0 %v1091
    %1111 = vmatprep.subr.bf16.mxu0 0
    %1112 = vmatpush1.bf16.msra.mxu0 %v1090
    %1113 = vmatprep.subr.bf16.mxu0 0
    %1114 = vmatpush2.bf16.msra.mxu0 0
    %1115 = vmatprep.subr.bf16.mxu0 0
    %1116 = vmatpush2.bf16.msra.mxu0 0
    %1117 = vmatprep.subr.bf16.mxu0 0
    %1118 = vmatpush2.bf16.msra.mxu0 0
    %1119 = vmatprep.subr.bf16.mxu0 0
    %1120 = vmatpush2.bf16.msra.mxu0 0
    %1121 = vmatprep.subr.bf16.mxu0 0
    %1122 = vmatpush2.bf16.msra.mxu0 0
    %1123 = vmatprep.subr.bf16.mxu0 0
    %1124 = vmatpush2.bf16.msra.mxu0 0
    %1125 = vmatprep.subr.bf16.mxu0 0
    %1126 = vmatpush2.bf16.msra.mxu0 0
    %1127 = vmatprep.subr.bf16.mxu0 0
    %1128 = vmatpush2.bf16.msra.mxu0 0
    %1129 = vmatprep.mubr.bf16.mxu0 0
    %1130 = vmatmul.mubr.bf16.gmra.mxu0 %v1095
    %v1131 = vpop.f32.mrf.mxu0
    %v1132 = vadd.f32 %v1081, %v1131
    %v1133 = vpop.f32.mrf.mxu0
    %v1134 = vpop.f32.mrf.mxu0
    %v1135 = vadd.f32 %v1081, %v1134
    %v1136 = vpop.f32.mrf.mxu0
    %1137 = vdwg.mxu0
    %v1138 = vmul.f32 %v1132, 0.5
    %v1139 = vmul.f32 %v1135, 0.5
    %v1140 = vmul.f32 %v1132, 0.044715
    %v1141 = vmul.f32 %v1135, 0.044715
    %v1142 = vmul.f32 %v1140, %v1132
    %v1143 = vmul.f32 %v1141, %v1135
    %v1144 = vmul.f32 %v1142, %v1132
    %v1145 = vmul.f32 %v1143, %v1135
    %v1146 = vadd.f32 %v1132, %v1144
    %v1147 = vadd.f32 %v1135, %v1145
    %v1148 = vmul.f32 %v1146, 0.7978846
    %v1149 = vmul.f32 %v1147, 0.7978846
    %v1150 = vtanh.pop %v1148
    %v1151 = vtanh.pop %v1149
    %v1152 = vadd.f32 %v1150, 1.0
    %v1153 = vadd.f32 %v1151, 1.0
    %v1154 = vmul.f32 %v1138, %v1152
    %v1155 = vmul.f32 %v1139, %v1153
    %s1156 = scalar_lea.vmem [#allocation6], 160
    %v1157 = vld [vmem:[%s1156] sm:$0xf]
    %v1158 = vld [vmem:[%s1156 + $0x4] sm:$0xf]
    %v1159 = vld [vmem:[%s1156 + $0x8] sm:$0xf]
    %v1160 = vld [vmem:[%s1156 + $0xc] sm:$0xf]
    %v1161 = vld [vmem:[%s1156 + $0x10] sm:$0xf]
    %v1162 = vld [vmem:[%s1156 + $0x14] sm:$0xf]
    %v1163 = vld [vmem:[%s1156 + $0x18] sm:$0xf]
    %v1164 = vld [vmem:[%s1156 + $0x1c] sm:$0xf]
    %v1165 = vpack.c.bf16 %v1155, %v1154
    %v1166 = vld [vmem:[%s3 + $0x9] sm:$0x1]
    %v1167 = vlaneseq
    %v1168 = vshrl.u32 %v1167, 7
    %v1169 = vsub.s32 0, %v1168
    %v1170 = vrot.slane %v1166, %v1169
    %v1179 = vunpack.c.l.b16 %v1157
    %v1180 = vunpack.c.l.b16 %v1158
    %v1181 = vunpack.c.l.b16 %v1159
    %v1182 = vunpack.c.l.b16 %v1160
    %v1183 = vunpack.c.l.b16 %v1161
    %v1184 = vunpack.c.l.b16 %v1162
    %v1185 = vunpack.c.l.b16 %v1163
    %v1186 = vunpack.c.l.b16 %v1164
    %v1187 = vpack.c.b16 %v1180, %v1179
    %v1188 = vpack.c.b16 %v1182, %v1181
    %v1189 = vpack.c.b16 %v1184, %v1183
    %v1190 = vpack.c.b16 %v1186, %v1185
    %vm1195 = vcmask 523264
    %v1197 = vsel %vm1195, %v1165, 0
    %1199 = vmatprep.subr.bf16.mxu0 0
    %1200 = vmatpush1.bf16.msra.mxu0 0
    %1201 = vmatprep.subr.bf16.mxu0 0
    %1202 = vmatpush1.bf16.msra.mxu0 0
    %1203 = vmatprep.subr.bf16.mxu0 0
    %1204 = vmatpush1.bf16.msra.mxu0 0
    %1205 = vmatprep.subr.bf16.mxu0 0
    %1206 = vmatpush1.bf16.msra.mxu0 0
    %1207 = vmatprep.subr.bf16.mxu0 0
    %1208 = vmatpush1.bf16.msra.mxu0 %v1190
    %1209 = vmatprep.subr.bf16.mxu0 0
    %1210 = vmatpush1.bf16.msra.mxu0 %v1189
    %1211 = vmatprep.subr.bf16.mxu0 0
    %1212 = vmatpush1.bf16.msra.mxu0 %v1188
    %1213 = vmatprep.subr.bf16.mxu0 0
    %1214 = vmatpush1.bf16.msra.mxu0 %v1187
    %1215 = vmatprep.subr.bf16.mxu0 0
    %1216 = vmatpush2.bf16.msra.mxu0 0
    %1217 = vmatprep.subr.bf16.mxu0 0
    %1218 = vmatpush2.bf16.msra.mxu0 0
    %1219 = vmatprep.subr.bf16.mxu0 0
    %1220 = vmatpush2.bf16.msra.mxu0 0
    %1221 = vmatprep.subr.bf16.mxu0 0
    %1222 = vmatpush2.bf16.msra.mxu0 0
    %1223 = vmatprep.subr.bf16.mxu0 0
    %1224 = vmatpush2.bf16.msra.mxu0 0
    %1225 = vmatprep.subr.bf16.mxu0 0
    %1226 = vmatpush2.bf16.msra.mxu0 0
    %1227 = vmatprep.subr.bf16.mxu0 0
    %1228 = vmatpush2.bf16.msra.mxu0 0
    %1229 = vmatprep.subr.bf16.mxu0 0
    %1230 = vmatpush2.bf16.msra.mxu0 0
    %1231 = vmatprep.mubr.bf16.mxu0 0
    %1232 = vmatmul.mubr.bf16.gmra.mxu0 %v1197
    %v1233 = vpop.f32.mrf.mxu0
    %v1234 = vadd.f32 %v1170, %v1233
    %v1235 = vpop.f32.mrf.mxu0
    %v1236 = vpop.f32.mrf.mxu0
    %v1237 = vadd.f32 %v1170, %v1236
    %v1238 = vpop.f32.mrf.mxu0
    %1239 = vdwg.mxu0
    %v1240 = vadd.f32 %v1234, %v1069
    %v1241 = vadd.f32 %v1237, %v1070
    %v1242 = vld [vmem:[%s3 + $0xa] sm:$0x1]
    %v1243 = vld [vmem:[%s3 + $0xb] sm:$0x1]
    %v1244 = vsel %vm165, %v1240, 0.0
    %1245 = vadd.xlane.f32.xlu0 %v1244
    %v1246 = vpop.xlane.xlu0 %1245
    %v1247 = vsel %vm165, %v1241, 0.0
    %1248 = vadd.xlane.f32.xlu0 %v1247
    %v1249 = vpop.xlane.xlu0 %1248
    %v1250 = vmul.f32 %v1246, %v172
    %v1251 = vmul.f32 %v1249, %v172
    %v1252 = vsub.f32 %v1240, %v1250
    %v1253 = vsub.f32 %v1241, %v1251
    %v1254 = vmul.f32 %v1252, %v1252
    %v1255 = vmul.f32 %v1253, %v1253
    %v1256 = vsel %vm165, %v1254, 0.0
    %1257 = vadd.xlane.f32.xlu0 %v1256
    %v1258 = vpop.xlane.xlu0 %1257
    %v1259 = vsel %vm165, %v1255, 0.0
    %1260 = vadd.xlane.f32.xlu0 %v1259
    %v1261 = vpop.xlane.xlu0 %1260
    %v1262 = vmul.f32 %v1258, %v172
    %v1263 = vmul.f32 %v1261, %v172
    %v1264 = vadd.f32 %v1262, 1e-12
    %v1265 = vadd.f32 %v1263, 1e-12
    %v1266 = vrsqrt.pop %v1264
    %v1267 = vrsqrt.pop %v1265
    %v1268 = vmul.f32 %v1252, %v1266
    %v1269 = vmul.f32 %v1253, %v1267
    %v1270 = vlaneseq
    %v1271 = vshrl.u32 %v1270, 7
    %v1272 = vsub.s32 0, %v1271
    %v1273 = vrot.slane %v1242, %v1272
    %v1274 = vmul.f32 %v1268, %v1273
    %v1275 = vmul.f32 %v1269, %v1273
    %v1276 = vlaneseq
    %v1277 = vshrl.u32 %v1276, 7
    %v1278 = vsub.s32 0, %v1277
    %v1279 = vrot.slane %v1243, %v1278
    %v1280 = vadd.f32 %v1274, %v1279
    %v1281 = vadd.f32 %v1275, %v1279
    %s1282 = scalar_lea.vmem [#allocation6], 192
    %v1283 = vld [vmem:[%s1282] sm:$0xf]
    %v1284 = vld [vmem:[%s1282 + $0x4] sm:$0xf]
    %v1285 = vld [vmem:[%s1282 + $0x8] sm:$0xf]
    %v1286 = vld [vmem:[%s1282 + $0xc] sm:$0xf]
    %v1287 = vpack.c.bf16 %v1281, %v1280
    %v1288 = vld [vmem:[%s3 + $0xc] sm:$0x1]
    %v1289 = vlaneseq
    %v1290 = vshrl.u32 %v1289, 7
    %v1291 = vsub.s32 0, %v1290
    %v1292 = vrot.slane %v1288, %v1291
    %v1297 = vunpack.c.l.b16 %v1283
    %v1298 = vunpack.c.l.b16 %v1284
    %v1299 = vunpack.c.l.b16 %v1285
    %v1300 = vunpack.c.l.b16 %v1286
    %v1301 = vpack.c.b16 %v1298, %v1297
    %v1302 = vpack.c.b16 %v1300, %v1299
    %v1306 = vsel %vm165, %v1287, 0
    %1308 = vmatprep.subr.bf16.mxu0 0
    %1309 = vmatpush1.bf16.msra.mxu0 0
    %1310 = vmatprep.subr.bf16.mxu0 0
    %1311 = vmatpush1.bf16.msra.mxu0 0
    %1312 = vmatprep.subr.bf16.mxu0 0
    %1313 = vmatpush1.bf16.msra.mxu0 0
    %1314 = vmatprep.subr.bf16.mxu0 0
    %1315 = vmatpush1.bf16.msra.mxu0 0
    %1316 = vmatprep.subr.bf16.mxu0 0
    %1317 = vmatpush1.bf16.msra.mxu0 0
    %1318 = vmatprep.subr.bf16.mxu0 0
    %1319 = vmatpush1.bf16.msra.mxu0 0
    %1320 = vmatprep.subr.bf16.mxu0 0
    %1321 = vmatpush1.bf16.msra.mxu0 %v1302
    %1322 = vmatprep.subr.bf16.mxu0 0
    %1323 = vmatpush1.bf16.msra.mxu0 %v1301
    %1324 = vmatprep.subr.bf16.mxu0 0
    %1325 = vmatpush2.bf16.msra.mxu0 0
    %1326 = vmatprep.subr.bf16.mxu0 0
    %1327 = vmatpush2.bf16.msra.mxu0 0
    %1328 = vmatprep.subr.bf16.mxu0 0
    %1329 = vmatpush2.bf16.msra.mxu0 0
    %1330 = vmatprep.subr.bf16.mxu0 0
    %1331 = vmatpush2.bf16.msra.mxu0 0
    %1332 = vmatprep.subr.bf16.mxu0 0
    %1333 = vmatpush2.bf16.msra.mxu0 0
    %1334 = vmatprep.subr.bf16.mxu0 0
    %1335 = vmatpush2.bf16.msra.mxu0 0
    %1336 = vmatprep.subr.bf16.mxu0 0
    %1337 = vmatpush2.bf16.msra.mxu0 0
    %1338 = vmatprep.subr.bf16.mxu0 0
    %1339 = vmatpush2.bf16.msra.mxu0 0
    %1340 = vmatprep.mubr.bf16.mxu0 0
    %1341 = vmatmul.mubr.bf16.gmra.mxu0 %v1306
    %v1342 = vpop.f32.mrf.mxu0
    %v1343 = vadd.f32 %v1292, %v1342
    %v1344 = vpop.f32.mrf.mxu0
    %v1345 = vpop.f32.mrf.mxu0
    %v1346 = vadd.f32 %v1292, %v1345
    %v1347 = vpop.f32.mrf.mxu0
    %1348 = vdwg.mxu0
    %s1349 = scalar_lea.vmem [#allocation6], 224
    %v1350 = vld [vmem:[%s1349] sm:$0xf]
    %v1351 = vld [vmem:[%s1349 + $0x4] sm:$0xf]
    %v1352 = vld [vmem:[%s1349 + $0x8] sm:$0xf]
    %v1353 = vld [vmem:[%s1349 + $0xc] sm:$0xf]
    %v1354 = vld [vmem:[%s3 + $0xd] sm:$0x1]
    %v1355 = vlaneseq
    %v1356 = vshrl.u32 %v1355, 7
    %v1357 = vsub.s32 0, %v1356
    %v1358 = vrot.slane %v1354, %v1357
    %v1363 = vunpack.c.l.b16 %v1350
    %v1364 = vunpack.c.l.b16 %v1351
    %v1365 = vunpack.c.l.b16 %v1352
    %v1366 = vunpack.c.l.b16 %v1353
    %v1367 = vpack.c.b16 %v1364, %v1363
    %v1368 = vpack.c.b16 %v1366, %v1365
    %1371 = vmatprep.subr.bf16.mxu0 0
    %1372 = vmatpush1.bf16.msra.mxu0 0
    %1373 = vmatprep.subr.bf16.mxu0 0
    %1374 = vmatpush1.bf16.msra.mxu0 0
    %1375 = vmatprep.subr.bf16.mxu0 0
    %1376 = vmatpush1.bf16.msra.mxu0 0
    %1377 = vmatprep.subr.bf16.mxu0 0
    %1378 = vmatpush1.bf16.msra.mxu0 0
    %1379 = vmatprep.subr.bf16.mxu0 0
    %1380 = vmatpush1.bf16.msra.mxu0 0
    %1381 = vmatprep.subr.bf16.mxu0 0
    %1382 = vmatpush1.bf16.msra.mxu0 0
    %1383 = vmatprep.subr.bf16.mxu0 0
    %1384 = vmatpush1.bf16.msra.mxu0 %v1368
    %1385 = vmatprep.subr.bf16.mxu0 0
    %1386 = vmatpush1.bf16.msra.mxu0 %v1367
    %1387 = vmatprep.subr.bf16.mxu0 0
    %1388 = vmatpush2.bf16.msra.mxu0 0
    %1389 = vmatprep.subr.bf16.mxu0 0
    %1390 = vmatpush2.bf16.msra.mxu0 0
    %1391 = vmatprep.subr.bf16.mxu0 0
    %1392 = vmatpush2.bf16.msra.mxu0 0
    %1393 = vmatprep.subr.bf16.mxu0 0
    %1394 = vmatpush2.bf16.msra.mxu0 0
    %1395 = vmatprep.subr.bf16.mxu0 0
    %1396 = vmatpush2.bf16.msra.mxu0 0
    %1397 = vmatprep.subr.bf16.mxu0 0
    %1398 = vmatpush2.bf16.msra.mxu0 0
    %1399 = vmatprep.subr.bf16.mxu0 0
    %1400 = vmatpush2.bf16.msra.mxu0 0
    %1401 = vmatprep.subr.bf16.mxu0 0
    %1402 = vmatpush2.bf16.msra.mxu0 0
    %1403 = vmatprep.mubr.bf16.mxu0 0
    %1404 = vmatmul.mubr.bf16.gmra.mxu0 %v1306
    %v1405 = vpop.f32.mrf.mxu0
    %v1406 = vadd.f32 %v1358, %v1405
    %v1407 = vpop.f32.mrf.mxu0
    %v1408 = vpop.f32.mrf.mxu0
    %v1409 = vadd.f32 %v1358, %v1408
    %v1410 = vpop.f32.mrf.mxu0
    %1411 = vdwg.mxu0
    %s1412 = scalar_lea.vmem [#allocation6], 256
    %v1413 = vld [vmem:[%s1412] sm:$0xf]
    %v1414 = vld [vmem:[%s1412 + $0x4] sm:$0xf]
    %v1415 = vld [vmem:[%s1412 + $0x8] sm:$0xf]
    %v1416 = vld [vmem:[%s1412 + $0xc] sm:$0xf]
    %v1417 = vld [vmem:[%s3 + $0xe] sm:$0x1]
    %v1418 = vlaneseq
    %v1419 = vshrl.u32 %v1418, 7
    %v1420 = vsub.s32 0, %v1419
    %v1421 = vrot.slane %v1417, %v1420
    %v1426 = vunpack.c.l.b16 %v1413
    %v1427 = vunpack.c.l.b16 %v1414
    %v1428 = vunpack.c.l.b16 %v1415
    %v1429 = vunpack.c.l.b16 %v1416
    %v1430 = vpack.c.b16 %v1427, %v1426
    %v1431 = vpack.c.b16 %v1429, %v1428
    %1434 = vmatprep.subr.bf16.mxu0 0
    %1435 = vmatpush1.bf16.msra.mxu0 0
    %1436 = vmatprep.subr.bf16.mxu0 0
    %1437 = vmatpush1.bf16.msra.mxu0 0
    %1438 = vmatprep.subr.bf16.mxu0 0
    %1439 = vmatpush1.bf16.msra.mxu0 0
    %1440 = vmatprep.subr.bf16.mxu0 0
    %1441 = vmatpush1.bf16.msra.mxu0 0
    %1442 = vmatprep.subr.bf16.mxu0 0
    %1443 = vmatpush1.bf16.msra.mxu0 0
    %1444 = vmatprep.subr.bf16.mxu0 0
    %1445 = vmatpush1.bf16.msra.mxu0 0
    %1446 = vmatprep.subr.bf16.mxu0 0
    %1447 = vmatpush1.bf16.msra.mxu0 %v1431
    %1448 = vmatprep.subr.bf16.mxu0 0
    %1449 = vmatpush1.bf16.msra.mxu0 %v1430
    %1450 = vmatprep.subr.bf16.mxu0 0
    %1451 = vmatpush2.bf16.msra.mxu0 0
    %1452 = vmatprep.subr.bf16.mxu0 0
    %1453 = vmatpush2.bf16.msra.mxu0 0
    %1454 = vmatprep.subr.bf16.mxu0 0
    %1455 = vmatpush2.bf16.msra.mxu0 0
    %1456 = vmatprep.subr.bf16.mxu0 0
    %1457 = vmatpush2.bf16.msra.mxu0 0
    %1458 = vmatprep.subr.bf16.mxu0 0
    %1459 = vmatpush2.bf16.msra.mxu0 0
    %1460 = vmatprep.subr.bf16.mxu0 0
    %1461 = vmatpush2.bf16.msra.mxu0 0
    %1462 = vmatprep.subr.bf16.mxu0 0
    %1463 = vmatpush2.bf16.msra.mxu0 0
    %1464 = vmatprep.subr.bf16.mxu0 0
    %1465 = vmatpush2.bf16.msra.mxu0 0
    %1466 = vmatprep.mubr.bf16.mxu0 0
    %1467 = vmatmul.mubr.bf16.gmra.mxu0 %v1306
    %v1468 = vpop.f32.mrf.mxu0
    %v1469 = vadd.f32 %v1421, %v1468
    %v1470 = vpop.f32.mrf.mxu0
    %v1471 = vpop.f32.mrf.mxu0
    %v1472 = vadd.f32 %v1421, %v1471
    %v1473 = vpop.f32.mrf.mxu0
    %1474 = vdwg.mxu0
    %v1475 = vmul.f32 %v1343, %v438
    %v1476 = vmul.f32 %v1346, %v438
    %v1477 = vmul.f32 %v1343, %v442
    %v1478 = vmul.f32 %v1346, %v442
    %v1479 = vmul.f32 %v1343, %v446
    %v1480 = vmul.f32 %v1346, %v446
    %v1481 = vmul.f32 %v1343, %v450
    %v1482 = vmul.f32 %v1346, %v450
    %v1483 = vmul.f32 %v1406, %v438
    %v1484 = vmul.f32 %v1409, %v438
    %v1485 = vmul.f32 %v1406, %v442
    %v1486 = vmul.f32 %v1409, %v442
    %v1487 = vmul.f32 %v1406, %v446
    %v1488 = vmul.f32 %v1409, %v446
    %v1489 = vmul.f32 %v1406, %v450
    %v1490 = vmul.f32 %v1409, %v450
    %v1491 = vmul.f32 %v1469, %v438
    %v1492 = vmul.f32 %v1472, %v438
    %v1493 = vmul.f32 %v1469, %v442
    %v1494 = vmul.f32 %v1472, %v442
    %v1495 = vmul.f32 %v1469, %v446
    %v1496 = vmul.f32 %v1472, %v446
    %v1497 = vmul.f32 %v1469, %v450
    %v1498 = vmul.f32 %v1472, %v450
    %v1499 = vpack.c.bf16 %v1476, %v1475
    %v1500 = vpack.c.bf16 %v1478, %v1477
    %v1501 = vpack.c.bf16 %v1480, %v1479
    %v1502 = vpack.c.bf16 %v1482, %v1481
    %v1503 = vpack.c.bf16 %v1484, %v1483
    %v1504 = vpack.c.bf16 %v1486, %v1485
    %v1505 = vpack.c.bf16 %v1488, %v1487
    %v1506 = vpack.c.bf16 %v1490, %v1489
    %v1508 = vsel %vm165, %v1499, 0
    %v1511 = vsel %vm165, %v1503, 0
    %1513 = vmatprep.subr.bf16.mxu0 0
    %1514 = vmatpush1.bf16.xpose.msra.mxu0 0
    %1515 = vmatprep.subr.bf16.mxu0 0
    %1516 = vmatpush1.bf16.xpose.msra.mxu0 0
    %1517 = vmatprep.subr.bf16.mxu0 0
    %1518 = vmatpush1.bf16.xpose.msra.mxu0 0
    %1519 = vmatprep.subr.bf16.mxu0 0
    %1520 = vmatpush1.bf16.xpose.msra.mxu0 0
    %1521 = vmatprep.subr.bf16.mxu0 0
    %1522 = vmatpush1.bf16.xpose.msra.mxu0 0
    %1523 = vmatprep.subr.bf16.mxu0 0
    %1524 = vmatpush1.bf16.xpose.msra.mxu0 0
    %1525 = vmatprep.subr.bf16.mxu0 0
    %1526 = vmatpush1.bf16.xpose.msra.mxu0 0
    %1527 = vmatprep.subr.bf16.mxu0 0
    %1528 = vmatpush1.bf16.xpose.msra.mxu0 %v1511
    %1529 = vmatprep.subr.bf16.mxu0 0
    %1530 = vmatpush2.bf16.xpose.msra.mxu0 0
    %1531 = vmatprep.subr.bf16.mxu0 0
    %1532 = vmatpush2.bf16.xpose.msra.mxu0 0
    %1533 = vmatprep.subr.bf16.mxu0 0
    %1534 = vmatpush2.bf16.xpose.msra.mxu0 0
    %1535 = vmatprep.subr.bf16.mxu0 0
    %1536 = vmatpush2.bf16.xpose.msra.mxu0 0
    %1537 = vmatprep.subr.bf16.mxu0 0
    %1538 = vmatpush2.bf16.xpose.msra.mxu0 0
    %1539 = vmatprep.subr.bf16.mxu0 0
    %1540 = vmatpush2.bf16.xpose.msra.mxu0 0
    %1541 = vmatprep.subr.bf16.mxu0 0
    %1542 = vmatpush2.bf16.xpose.msra.mxu0 0
    %1543 = vmatprep.subr.bf16.mxu0 0
    %1544 = vmatpush2.bf16.xpose.msra.mxu0 0
    %1545 = vmatprep.mubr.bf16.mxu0 0
    %1546 = vmatmul.mubr.bf16.gmra.mxu0 %v1508
    %v1547 = vpop.f32.mrf.mxu0
    %v1548 = vadd.f32 %v215, %v1547
    %v1549 = vpop.f32.mrf.mxu0
    %v1550 = vpop.f32.mrf.mxu0
    %v1551 = vadd.f32 %v216, %v1550
    %v1552 = vpop.f32.mrf.mxu0
    %1553 = vdwg.mxu0
    %v1555 = vsel %vm165, %v1500, 0
    %v1558 = vsel %vm165, %v1504, 0
    %1560 = vmatprep.subr.bf16.mxu0 0
    %1561 = vmatpush1.bf16.xpose.msra.mxu0 0
    %1562 = vmatprep.subr.bf16.mxu0 0
    %1563 = vmatpush1.bf16.xpose.msra.mxu0 0
    %1564 = vmatprep.subr.bf16.mxu0 0
    %1565 = vmatpush1.bf16.xpose.msra.mxu0 0
    %1566 = vmatprep.subr.bf16.mxu0 0
    %1567 = vmatpush1.bf16.xpose.msra.mxu0 0
    %1568 = vmatprep.subr.bf16.mxu0 0
    %1569 = vmatpush1.bf16.xpose.msra.mxu0 0
    %1570 = vmatprep.subr.bf16.mxu0 0
    %1571 = vmatpush1.bf16.xpose.msra.mxu0 0
    %1572 = vmatprep.subr.bf16.mxu0 0
    %1573 = vmatpush1.bf16.xpose.msra.mxu0 0
    %1574 = vmatprep.subr.bf16.mxu0 0
    %1575 = vmatpush1.bf16.xpose.msra.mxu0 %v1558
    %1576 = vmatprep.subr.bf16.mxu0 0
    %1577 = vmatpush2.bf16.xpose.msra.mxu0 0
    %1578 = vmatprep.subr.bf16.mxu0 0
    %1579 = vmatpush2.bf16.xpose.msra.mxu0 0
    %1580 = vmatprep.subr.bf16.mxu0 0
    %1581 = vmatpush2.bf16.xpose.msra.mxu0 0
    %1582 = vmatprep.subr.bf16.mxu0 0
    %1583 = vmatpush2.bf16.xpose.msra.mxu0 0
    %1584 = vmatprep.subr.bf16.mxu0 0
    %1585 = vmatpush2.bf16.xpose.msra.mxu0 0
    %1586 = vmatprep.subr.bf16.mxu0 0
    %1587 = vmatpush2.bf16.xpose.msra.mxu0 0
    %1588 = vmatprep.subr.bf16.mxu0 0
    %1589 = vmatpush2.bf16.xpose.msra.mxu0 0
    %1590 = vmatprep.subr.bf16.mxu0 0
    %1591 = vmatpush2.bf16.xpose.msra.mxu0 0
    %1592 = vmatprep.mubr.bf16.mxu0 0
    %1593 = vmatmul.mubr.bf16.gmra.mxu0 %v1555
    %v1594 = vpop.f32.mrf.mxu0
    %v1595 = vadd.f32 %v215, %v1594
    %v1596 = vpop.f32.mrf.mxu0
    %v1597 = vpop.f32.mrf.mxu0
    %v1598 = vadd.f32 %v216, %v1597
    %v1599 = vpop.f32.mrf.mxu0
    %1600 = vdwg.mxu0
    %v1602 = vsel %vm165, %v1501, 0
    %v1605 = vsel %vm165, %v1505, 0
    %1607 = vmatprep.subr.bf16.mxu0 0
    %1608 = vmatpush1.bf16.xpose.msra.mxu0 0
    %1609 = vmatprep.subr.bf16.mxu0 0
    %1610 = vmatpush1.bf16.xpose.msra.mxu0 0
    %1611 = vmatprep.subr.bf16.mxu0 0
    %1612 = vmatpush1.bf16.xpose.msra.mxu0 0
    %1613 = vmatprep.subr.bf16.mxu0 0
    %1614 = vmatpush1.bf16.xpose.msra.mxu0 0
    %1615 = vmatprep.subr.bf16.mxu0 0
    %1616 = vmatpush1.bf16.xpose.msra.mxu0 0
    %1617 = vmatprep.subr.bf16.mxu0 0
    %1618 = vmatpush1.bf16.xpose.msra.mxu0 0
    %1619 = vmatprep.subr.bf16.mxu0 0
    %1620 = vmatpush1.bf16.xpose.msra.mxu0 0
    %1621 = vmatprep.subr.bf16.mxu0 0
    %1622 = vmatpush1.bf16.xpose.msra.mxu0 %v1605
    %1623 = vmatprep.subr.bf16.mxu0 0
    %1624 = vmatpush2.bf16.xpose.msra.mxu0 0
    %1625 = vmatprep.subr.bf16.mxu0 0
    %1626 = vmatpush2.bf16.xpose.msra.mxu0 0
    %1627 = vmatprep.subr.bf16.mxu0 0
    %1628 = vmatpush2.bf16.xpose.msra.mxu0 0
    %1629 = vmatprep.subr.bf16.mxu0 0
    %1630 = vmatpush2.bf16.xpose.msra.mxu0 0
    %1631 = vmatprep.subr.bf16.mxu0 0
    %1632 = vmatpush2.bf16.xpose.msra.mxu0 0
    %1633 = vmatprep.subr.bf16.mxu0 0
    %1634 = vmatpush2.bf16.xpose.msra.mxu0 0
    %1635 = vmatprep.subr.bf16.mxu0 0
    %1636 = vmatpush2.bf16.xpose.msra.mxu0 0
    %1637 = vmatprep.subr.bf16.mxu0 0
    %1638 = vmatpush2.bf16.xpose.msra.mxu0 0
    %1639 = vmatprep.mubr.bf16.mxu0 0
    %1640 = vmatmul.mubr.bf16.gmra.mxu0 %v1602
    %v1641 = vpop.f32.mrf.mxu0
    %v1642 = vadd.f32 %v215, %v1641
    %v1643 = vpop.f32.mrf.mxu0
    %v1644 = vpop.f32.mrf.mxu0
    %v1645 = vadd.f32 %v216, %v1644
    %v1646 = vpop.f32.mrf.mxu0
    %1647 = vdwg.mxu0
    %v1649 = vsel %vm165, %v1502, 0
    %v1652 = vsel %vm165, %v1506, 0
    %1654 = vmatprep.subr.bf16.mxu0 0
    %1655 = vmatpush1.bf16.xpose.msra.mxu0 0
    %1656 = vmatprep.subr.bf16.mxu0 0
    %1657 = vmatpush1.bf16.xpose.msra.mxu0 0
    %1658 = vmatprep.subr.bf16.mxu0 0
    %1659 = vmatpush1.bf16.xpose.msra.mxu0 0
    %1660 = vmatprep.subr.bf16.mxu0 0
    %1661 = vmatpush1.bf16.xpose.msra.mxu0 0
    %1662 = vmatprep.subr.bf16.mxu0 0
    %1663 = vmatpush1.bf16.xpose.msra.mxu0 0
    %1664 = vmatprep.subr.bf16.mxu0 0
    %1665 = vmatpush1.bf16.xpose.msra.mxu0 0
    %1666 = vmatprep.subr.bf16.mxu0 0
    %1667 = vmatpush1.bf16.xpose.msra.mxu0 0
    %1668 = vmatprep.subr.bf16.mxu0 0
    %1669 = vmatpush1.bf16.xpose.msra.mxu0 %v1652
    %1670 = vmatprep.subr.bf16.mxu0 0
    %1671 = vmatpush2.bf16.xpose.msra.mxu0 0
    %1672 = vmatprep.subr.bf16.mxu0 0
    %1673 = vmatpush2.bf16.xpose.msra.mxu0 0
    %1674 = vmatprep.subr.bf16.mxu0 0
    %1675 = vmatpush2.bf16.xpose.msra.mxu0 0
    %1676 = vmatprep.subr.bf16.mxu0 0
    %1677 = vmatpush2.bf16.xpose.msra.mxu0 0
    %1678 = vmatprep.subr.bf16.mxu0 0
    %1679 = vmatpush2.bf16.xpose.msra.mxu0 0
    %1680 = vmatprep.subr.bf16.mxu0 0
    %1681 = vmatpush2.bf16.xpose.msra.mxu0 0
    %1682 = vmatprep.subr.bf16.mxu0 0
    %1683 = vmatpush2.bf16.xpose.msra.mxu0 0
    %1684 = vmatprep.subr.bf16.mxu0 0
    %1685 = vmatpush2.bf16.xpose.msra.mxu0 0
    %1686 = vmatprep.mubr.bf16.mxu0 0
    %1687 = vmatmul.mubr.bf16.gmra.mxu0 %v1649
    %v1688 = vpop.f32.mrf.mxu0
    %v1689 = vadd.f32 %v215, %v1688
    %v1690 = vpop.f32.mrf.mxu0
    %v1691 = vpop.f32.mrf.mxu0
    %v1692 = vadd.f32 %v216, %v1691
    %v1693 = vpop.f32.mrf.mxu0
    %1694 = vdwg.mxu0
    %v1695 = vsel %vm675, %v1548, -inf
    %1696 = vmax.xlane.f32.xlu0 %v1695
    %v1697 = vpop.xlane.xlu0 %1696
    %v1698 = vsel %vm675, %v1551, -inf
    %1699 = vmax.xlane.f32.xlu0 %v1698
    %v1700 = vpop.xlane.xlu0 %1699
    %v1701 = vsel %vm675, %v1595, -inf
    %1702 = vmax.xlane.f32.xlu0 %v1701
    %v1703 = vpop.xlane.xlu0 %1702
    %v1704 = vsel %vm675, %v1598, -inf
    %1705 = vmax.xlane.f32.xlu0 %v1704
    %v1706 = vpop.xlane.xlu0 %1705
    %v1707 = vsel %vm675, %v1642, -inf
    %1708 = vmax.xlane.f32.xlu0 %v1707
    %v1709 = vpop.xlane.xlu0 %1708
    %v1710 = vsel %vm675, %v1645, -inf
    %1711 = vmax.xlane.f32.xlu0 %v1710
    %v1712 = vpop.xlane.xlu0 %1711
    %v1713 = vsel %vm675, %v1689, -inf
    %1714 = vmax.xlane.f32.xlu0 %v1713
    %v1715 = vpop.xlane.xlu0 %1714
    %v1716 = vsel %vm675, %v1692, -inf
    %1717 = vmax.xlane.f32.xlu0 %v1716
    %v1718 = vpop.xlane.xlu0 %1717
    %v1719 = vsub.f32 %v1548, %v1697
    %v1720 = vsub.f32 %v1551, %v1700
    %v1721 = vsub.f32 %v1595, %v1703
    %v1722 = vsub.f32 %v1598, %v1706
    %v1723 = vsub.f32 %v1642, %v1709
    %v1724 = vsub.f32 %v1645, %v1712
    %v1725 = vsub.f32 %v1689, %v1715
    %v1726 = vsub.f32 %v1692, %v1718
    %v1727 = vmul.f32 %v1719, 1.442695
    %v1728 = vpow.pop %v1727
    %v1729 = vmul.f32 %v1720, 1.442695
    %v1730 = vpow.pop %v1729
    %v1731 = vmul.f32 %v1721, 1.442695
    %v1732 = vpow.pop %v1731
    %v1733 = vmul.f32 %v1722, 1.442695
    %v1734 = vpow.pop %v1733
    %v1735 = vmul.f32 %v1723, 1.442695
    %v1736 = vpow.pop %v1735
    %v1737 = vmul.f32 %v1724, 1.442695
    %v1738 = vpow.pop %v1737
    %v1739 = vmul.f32 %v1725, 1.442695
    %v1740 = vpow.pop %v1739
    %v1741 = vmul.f32 %v1726, 1.442695
    %v1742 = vpow.pop %v1741
    %v1743 = vsel %vm675, %v1728, 0.0
    %1744 = vadd.xlane.f32.xlu0 %v1743
    %v1745 = vpop.xlane.xlu0 %1744
    %v1746 = vsel %vm675, %v1730, 0.0
    %1747 = vadd.xlane.f32.xlu0 %v1746
    %v1748 = vpop.xlane.xlu0 %1747
    %v1749 = vsel %vm675, %v1732, 0.0
    %1750 = vadd.xlane.f32.xlu0 %v1749
    %v1751 = vpop.xlane.xlu0 %1750
    %v1752 = vsel %vm675, %v1734, 0.0
    %1753 = vadd.xlane.f32.xlu0 %v1752
    %v1754 = vpop.xlane.xlu0 %1753
    %v1755 = vsel %vm675, %v1736, 0.0
    %1756 = vadd.xlane.f32.xlu0 %v1755
    %v1757 = vpop.xlane.xlu0 %1756
    %v1758 = vsel %vm675, %v1738, 0.0
    %1759 = vadd.xlane.f32.xlu0 %v1758
    %v1760 = vpop.xlane.xlu0 %1759
    %v1761 = vsel %vm675, %v1740, 0.0
    %1762 = vadd.xlane.f32.xlu0 %v1761
    %v1763 = vpop.xlane.xlu0 %1762
    %v1764 = vsel %vm675, %v1742, 0.0
    %1765 = vadd.xlane.f32.xlu0 %v1764
    %v1766 = vpop.xlane.xlu0 %1765
    %v1767 = vpack.c.bf16 %v1730, %v1728
    %v1768 = vpack.c.bf16 %v1734, %v1732
    %v1769 = vpack.c.bf16 %v1738, %v1736
    %v1770 = vpack.c.bf16 %v1742, %v1740
    %v1771 = vpack.c.bf16 %v1492, %v1491
    %v1772 = vpack.c.bf16 %v1494, %v1493
    %v1773 = vpack.c.bf16 %v1496, %v1495
    %v1774 = vpack.c.bf16 %v1498, %v1497
    %v1776 = vsel %vm675, %v1767, 0
    %1778 = vmatprep.subr.bf16.mxu0 0
    %1779 = vmatpush1.bf16.msra.mxu0 0
    %1780 = vmatprep.subr.bf16.mxu0 0
    %1781 = vmatpush1.bf16.msra.mxu0 0
    %1782 = vmatprep.subr.bf16.mxu0 0
    %1783 = vmatpush1.bf16.msra.mxu0 0
    %1784 = vmatprep.subr.bf16.mxu0 0
    %1785 = vmatpush1.bf16.msra.mxu0 0
    %1786 = vmatprep.subr.bf16.mxu0 0
    %1787 = vmatpush1.bf16.msra.mxu0 0
    %1788 = vmatprep.subr.bf16.mxu0 0
    %1789 = vmatpush1.bf16.msra.mxu0 0
    %1790 = vmatprep.subr.bf16.mxu0 0
    %1791 = vmatpush1.bf16.msra.mxu0 0
    %1792 = vmatprep.subr.bf16.mxu0 0
    %1793 = vmatpush1.bf16.msra.mxu0 %v1771
    %1794 = vmatprep.subr.bf16.mxu0 0
    %1795 = vmatpush2.bf16.msra.mxu0 0
    %1796 = vmatprep.subr.bf16.mxu0 0
    %1797 = vmatpush2.bf16.msra.mxu0 0
    %1798 = vmatprep.subr.bf16.mxu0 0
    %1799 = vmatpush2.bf16.msra.mxu0 0
    %1800 = vmatprep.subr.bf16.mxu0 0
    %1801 = vmatpush2.bf16.msra.mxu0 0
    %1802 = vmatprep.subr.bf16.mxu0 0
    %1803 = vmatpush2.bf16.msra.mxu0 0
    %1804 = vmatprep.subr.bf16.mxu0 0
    %1805 = vmatpush2.bf16.msra.mxu0 0
    %1806 = vmatprep.subr.bf16.mxu0 0
    %1807 = vmatpush2.bf16.msra.mxu0 0
    %1808 = vmatprep.subr.bf16.mxu0 0
    %1809 = vmatpush2.bf16.msra.mxu0 0
    %1810 = vmatprep.mubr.bf16.mxu0 0
    %1811 = vmatmul.mubr.bf16.gmra.mxu0 %v1776
    %v1812 = vpop.f32.mrf.mxu0
    %v1813 = vadd.f32 0.0, %v1812
    %v1814 = vpop.f32.mrf.mxu0
    %v1815 = vpop.f32.mrf.mxu0
    %v1816 = vadd.f32 0.0, %v1815
    %v1817 = vpop.f32.mrf.mxu0
    %1818 = vdwg.mxu0
    %v1820 = vsel %vm675, %v1768, 0
    %1822 = vmatprep.subr.bf16.mxu0 0
    %1823 = vmatpush1.bf16.msra.mxu0 0
    %1824 = vmatprep.subr.bf16.mxu0 0
    %1825 = vmatpush1.bf16.msra.mxu0 0
    %1826 = vmatprep.subr.bf16.mxu0 0
    %1827 = vmatpush1.bf16.msra.mxu0 0
    %1828 = vmatprep.subr.bf16.mxu0 0
    %1829 = vmatpush1.bf16.msra.mxu0 0
    %1830 = vmatprep.subr.bf16.mxu0 0
    %1831 = vmatpush1.bf16.msra.mxu0 0
    %1832 = vmatprep.subr.bf16.mxu0 0
    %1833 = vmatpush1.bf16.msra.mxu0 0
    %1834 = vmatprep.subr.bf16.mxu0 0
    %1835 = vmatpush1.bf16.msra.mxu0 0
    %1836 = vmatprep.subr.bf16.mxu0 0
    %1837 = vmatpush1.bf16.msra.mxu0 %v1772
    %1838 = vmatprep.subr.bf16.mxu0 0
    %1839 = vmatpush2.bf16.msra.mxu0 0
    %1840 = vmatprep.subr.bf16.mxu0 0
    %1841 = vmatpush2.bf16.msra.mxu0 0
    %1842 = vmatprep.subr.bf16.mxu0 0
    %1843 = vmatpush2.bf16.msra.mxu0 0
    %1844 = vmatprep.subr.bf16.mxu0 0
    %1845 = vmatpush2.bf16.msra.mxu0 0
    %1846 = vmatprep.subr.bf16.mxu0 0
    %1847 = vmatpush2.bf16.msra.mxu0 0
    %1848 = vmatprep.subr.bf16.mxu0 0
    %1849 = vmatpush2.bf16.msra.mxu0 0
    %1850 = vmatprep.subr.bf16.mxu0 0
    %1851 = vmatpush2.bf16.msra.mxu0 0
    %1852 = vmatprep.subr.bf16.mxu0 0
    %1853 = vmatpush2.bf16.msra.mxu0 0
    %1854 = vmatprep.mubr.bf16.mxu0 0
    %1855 = vmatmul.mubr.bf16.gmra.mxu0 %v1820
    %v1856 = vpop.f32.mrf.mxu0
    %v1857 = vadd.f32 0.0, %v1856
    %v1858 = vpop.f32.mrf.mxu0
    %v1859 = vpop.f32.mrf.mxu0
    %v1860 = vadd.f32 0.0, %v1859
    %v1861 = vpop.f32.mrf.mxu0
    %1862 = vdwg.mxu0
    %v1864 = vsel %vm675, %v1769, 0
    %1866 = vmatprep.subr.bf16.mxu0 0
    %1867 = vmatpush1.bf16.msra.mxu0 0
    %1868 = vmatprep.subr.bf16.mxu0 0
    %1869 = vmatpush1.bf16.msra.mxu0 0
    %1870 = vmatprep.subr.bf16.mxu0 0
    %1871 = vmatpush1.bf16.msra.mxu0 0
    %1872 = vmatprep.subr.bf16.mxu0 0
    %1873 = vmatpush1.bf16.msra.mxu0 0
    %1874 = vmatprep.subr.bf16.mxu0 0
    %1875 = vmatpush1.bf16.msra.mxu0 0
    %1876 = vmatprep.subr.bf16.mxu0 0
    %1877 = vmatpush1.bf16.msra.mxu0 0
    %1878 = vmatprep.subr.bf16.mxu0 0
    %1879 = vmatpush1.bf16.msra.mxu0 0
    %1880 = vmatprep.subr.bf16.mxu0 0
    %1881 = vmatpush1.bf16.msra.mxu0 %v1773
    %1882 = vmatprep.subr.bf16.mxu0 0
    %1883 = vmatpush2.bf16.msra.mxu0 0
    %1884 = vmatprep.subr.bf16.mxu0 0
    %1885 = vmatpush2.bf16.msra.mxu0 0
    %1886 = vmatprep.subr.bf16.mxu0 0
    %1887 = vmatpush2.bf16.msra.mxu0 0
    %1888 = vmatprep.subr.bf16.mxu0 0
    %1889 = vmatpush2.bf16.msra.mxu0 0
    %1890 = vmatprep.subr.bf16.mxu0 0
    %1891 = vmatpush2.bf16.msra.mxu0 0
    %1892 = vmatprep.subr.bf16.mxu0 0
    %1893 = vmatpush2.bf16.msra.mxu0 0
    %1894 = vmatprep.subr.bf16.mxu0 0
    %1895 = vmatpush2.bf16.msra.mxu0 0
    %1896 = vmatprep.subr.bf16.mxu0 0
    %1897 = vmatpush2.bf16.msra.mxu0 0
    %1898 = vmatprep.mubr.bf16.mxu0 0
    %1899 = vmatmul.mubr.bf16.gmra.mxu0 %v1864
    %v1900 = vpop.f32.mrf.mxu0
    %v1901 = vadd.f32 0.0, %v1900
    %v1902 = vpop.f32.mrf.mxu0
    %v1903 = vpop.f32.mrf.mxu0
    %v1904 = vadd.f32 0.0, %v1903
    %v1905 = vpop.f32.mrf.mxu0
    %1906 = vdwg.mxu0
    %v1908 = vsel %vm675, %v1770, 0
    %1910 = vmatprep.subr.bf16.mxu0 0
    %1911 = vmatpush1.bf16.msra.mxu0 0
    %1912 = vmatprep.subr.bf16.mxu0 0
    %1913 = vmatpush1.bf16.msra.mxu0 0
    %1914 = vmatprep.subr.bf16.mxu0 0
    %1915 = vmatpush1.bf16.msra.mxu0 0
    %1916 = vmatprep.subr.bf16.mxu0 0
    %1917 = vmatpush1.bf16.msra.mxu0 0
    %1918 = vmatprep.subr.bf16.mxu0 0
    %1919 = vmatpush1.bf16.msra.mxu0 0
    %1920 = vmatprep.subr.bf16.mxu0 0
    %1921 = vmatpush1.bf16.msra.mxu0 0
    %1922 = vmatprep.subr.bf16.mxu0 0
    %1923 = vmatpush1.bf16.msra.mxu0 0
    %1924 = vmatprep.subr.bf16.mxu0 0
    %1925 = vmatpush1.bf16.msra.mxu0 %v1774
    %1926 = vmatprep.subr.bf16.mxu0 0
    %1927 = vmatpush2.bf16.msra.mxu0 0
    %1928 = vmatprep.subr.bf16.mxu0 0
    %1929 = vmatpush2.bf16.msra.mxu0 0
    %1930 = vmatprep.subr.bf16.mxu0 0
    %1931 = vmatpush2.bf16.msra.mxu0 0
    %1932 = vmatprep.subr.bf16.mxu0 0
    %1933 = vmatpush2.bf16.msra.mxu0 0
    %1934 = vmatprep.subr.bf16.mxu0 0
    %1935 = vmatpush2.bf16.msra.mxu0 0
    %1936 = vmatprep.subr.bf16.mxu0 0
    %1937 = vmatpush2.bf16.msra.mxu0 0
    %1938 = vmatprep.subr.bf16.mxu0 0
    %1939 = vmatpush2.bf16.msra.mxu0 0
    %1940 = vmatprep.subr.bf16.mxu0 0
    %1941 = vmatpush2.bf16.msra.mxu0 0
    %1942 = vmatprep.mubr.bf16.mxu0 0
    %1943 = vmatmul.mubr.bf16.gmra.mxu0 %v1908
    %v1944 = vpop.f32.mrf.mxu0
    %v1945 = vadd.f32 0.0, %v1944
    %v1946 = vpop.f32.mrf.mxu0
    %v1947 = vpop.f32.mrf.mxu0
    %v1948 = vadd.f32 0.0, %v1947
    %v1949 = vpop.f32.mrf.mxu0
    %1950 = vdwg.mxu0
    %v1951 = vrcp.pop %v1745
    %v1952 = vrcp.pop %v1748
    %v1953 = vrcp.pop %v1751
    %v1954 = vrcp.pop %v1754
    %v1955 = vrcp.pop %v1757
    %v1956 = vrcp.pop %v1760
    %v1957 = vrcp.pop %v1763
    %v1958 = vrcp.pop %v1766
    %v1959 = vmul.f32 %v1813, %v1951
    %v1960 = vmul.f32 %v1816, %v1952
    %v1961 = vmul.f32 %v1857, %v1953
    %v1962 = vmul.f32 %v1860, %v1954
    %v1963 = vmul.f32 %v1901, %v1955
    %v1964 = vmul.f32 %v1904, %v1956
    %v1965 = vmul.f32 %v1945, %v1957
    %v1966 = vmul.f32 %v1948, %v1958
    %v1967 = vsel %vm165, %v1959, 0.0
    %v1968 = vsel %vm165, %v1961, 0.0
    %v1969 = vadd.f32 %v1967, %v1968
    %v1970 = vsel %vm165, %v1963, 0.0
    %v1971 = vadd.f32 %v1969, %v1970
    %v1972 = vsel %vm165, %v1965, 0.0
    %v1973 = vadd.f32 %v1971, %v1972
    %v1974 = vsel %vm165, %v1960, 0.0
    %v1975 = vsel %vm165, %v1962, 0.0
    %v1976 = vadd.f32 %v1974, %v1975
    %v1977 = vsel %vm165, %v1964, 0.0
    %v1978 = vadd.f32 %v1976, %v1977
    %v1979 = vsel %vm165, %v1966, 0.0
    %v1980 = vadd.f32 %v1978, %v1979
    %s1981 = scalar_lea.vmem [#allocation6], 288
    %v1982 = vld [vmem:[%s1981] sm:$0xf]
    %v1983 = vld [vmem:[%s1981 + $0x4] sm:$0xf]
    %v1984 = vld [vmem:[%s1981 + $0x8] sm:$0xf]
    %v1985 = vld [vmem:[%s1981 + $0xc] sm:$0xf]
    %v1986 = vpack.c.bf16 %v1980, %v1973
    %v1987 = vld [vmem:[%s3 + $0xf] sm:$0x1]
    %v1988 = vlaneseq
    %v1989 = vshrl.u32 %v1988, 7
    %v1990 = vsub.s32 0, %v1989
    %v1991 = vrot.slane %v1987, %v1990
    %v1996 = vunpack.c.l.b16 %v1982
    %v1997 = vunpack.c.l.b16 %v1983
    %v1998 = vunpack.c.l.b16 %v1984
    %v1999 = vunpack.c.l.b16 %v1985
    %v2000 = vpack.c.b16 %v1997, %v1996
    %v2001 = vpack.c.b16 %v1999, %v1998
    %v2005 = vsel %vm165, %v1986, 0
    %2007 = vmatprep.subr.bf16.mxu0 0
    %2008 = vmatpush1.bf16.msra.mxu0 0
    %2009 = vmatprep.subr.bf16.mxu0 0
    %2010 = vmatpush1.bf16.msra.mxu0 0
    %2011 = vmatprep.subr.bf16.mxu0 0
    %2012 = vmatpush1.bf16.msra.mxu0 0
    %2013 = vmatprep.subr.bf16.mxu0 0
    %2014 = vmatpush1.bf16.msra.mxu0 0
    %2015 = vmatprep.subr.bf16.mxu0 0
    %2016 = vmatpush1.bf16.msra.mxu0 0
    %2017 = vmatprep.subr.bf16.mxu0 0
    %2018 = vmatpush1.bf16.msra.mxu0 0
    %2019 = vmatprep.subr.bf16.mxu0 0
    %2020 = vmatpush1.bf16.msra.mxu0 %v2001
    %2021 = vmatprep.subr.bf16.mxu0 0
    %2022 = vmatpush1.bf16.msra.mxu0 %v2000
    %2023 = vmatprep.subr.bf16.mxu0 0
    %2024 = vmatpush2.bf16.msra.mxu0 0
    %2025 = vmatprep.subr.bf16.mxu0 0
    %2026 = vmatpush2.bf16.msra.mxu0 0
    %2027 = vmatprep.subr.bf16.mxu0 0
    %2028 = vmatpush2.bf16.msra.mxu0 0
    %2029 = vmatprep.subr.bf16.mxu0 0
    %2030 = vmatpush2.bf16.msra.mxu0 0
    %2031 = vmatprep.subr.bf16.mxu0 0
    %2032 = vmatpush2.bf16.msra.mxu0 0
    %2033 = vmatprep.subr.bf16.mxu0 0
    %2034 = vmatpush2.bf16.msra.mxu0 0
    %2035 = vmatprep.subr.bf16.mxu0 0
    %2036 = vmatpush2.bf16.msra.mxu0 0
    %2037 = vmatprep.subr.bf16.mxu0 0
    %2038 = vmatpush2.bf16.msra.mxu0 0
    %2039 = vmatprep.mubr.bf16.mxu0 0
    %2040 = vmatmul.mubr.bf16.gmra.mxu0 %v2005
    %v2041 = vpop.f32.mrf.mxu0
    %v2042 = vadd.f32 %v1991, %v2041
    %v2043 = vpop.f32.mrf.mxu0
    %v2044 = vpop.f32.mrf.mxu0
    %v2045 = vadd.f32 %v1991, %v2044
    %v2046 = vpop.f32.mrf.mxu0
    %2047 = vdwg.mxu0
    %v2048 = vadd.f32 %v2042, %v1280
    %v2049 = vadd.f32 %v2045, %v1281
    %v2050 = vld [vmem:[%s3 + $0x10] sm:$0x1]
    %v2051 = vld [vmem:[%s3 + $0x11] sm:$0x1]
    %v2052 = vsel %vm165, %v2048, 0.0
    %2053 = vadd.xlane.f32.xlu0 %v2052
    %v2054 = vpop.xlane.xlu0 %2053
    %v2055 = vsel %vm165, %v2049, 0.0
    %2056 = vadd.xlane.f32.xlu0 %v2055
    %v2057 = vpop.xlane.xlu0 %2056
    %v2058 = vmul.f32 %v2054, %v172
    %v2059 = vmul.f32 %v2057, %v172
    %v2060 = vsub.f32 %v2048, %v2058
    %v2061 = vsub.f32 %v2049, %v2059
    %v2062 = vmul.f32 %v2060, %v2060
    %v2063 = vmul.f32 %v2061, %v2061
    %v2064 = vsel %vm165, %v2062, 0.0
    %2065 = vadd.xlane.f32.xlu0 %v2064
    %v2066 = vpop.xlane.xlu0 %2065
    %v2067 = vsel %vm165, %v2063, 0.0
    %2068 = vadd.xlane.f32.xlu0 %v2067
    %v2069 = vpop.xlane.xlu0 %2068
    %v2070 = vmul.f32 %v2066, %v172
    %v2071 = vmul.f32 %v2069, %v172
    %v2072 = vadd.f32 %v2070, 1e-12
    %v2073 = vadd.f32 %v2071, 1e-12
    %v2074 = vrsqrt.pop %v2072
    %v2075 = vrsqrt.pop %v2073
    %v2076 = vmul.f32 %v2060, %v2074
    %v2077 = vmul.f32 %v2061, %v2075
    %v2078 = vlaneseq
    %v2079 = vshrl.u32 %v2078, 7
    %v2080 = vsub.s32 0, %v2079
    %v2081 = vrot.slane %v2050, %v2080
    %v2082 = vmul.f32 %v2076, %v2081
    %v2083 = vmul.f32 %v2077, %v2081
    %v2084 = vlaneseq
    %v2085 = vshrl.u32 %v2084, 7
    %v2086 = vsub.s32 0, %v2085
    %v2087 = vrot.slane %v2051, %v2086
    %v2088 = vadd.f32 %v2082, %v2087
    %v2089 = vadd.f32 %v2083, %v2087
    %s2090 = scalar_lea.vmem [#allocation6], 320
    %v2091 = vld [vmem:[%s2090] sm:$0xf]
    %v2092 = vld [vmem:[%s2090 + $0x4] sm:$0xf]
    %v2093 = vld [vmem:[%s2090 + $0x8] sm:$0xf]
    %v2094 = vld [vmem:[%s2090 + $0xc] sm:$0xf]
    %v2095 = vpack.c.bf16 %v2089, %v2088
    %v2096 = vld [vmem:[%s3 + $0x12] sm:$0x1]
    %v2097 = vlaneseq
    %v2098 = vshrl.u32 %v2097, 7
    %v2099 = vsub.s32 0, %v2098
    %v2100 = vrot.slane %v2096, %v2099
    %v2105 = vunpack.c.l.b16 %v2091
    %v2106 = vunpack.c.l.b16 %v2092
    %v2107 = vunpack.c.l.b16 %v2093
    %v2108 = vunpack.c.l.b16 %v2094
    %v2109 = vpack.c.b16 %v2106, %v2105
    %v2110 = vpack.c.b16 %v2108, %v2107
    %v2114 = vsel %vm165, %v2095, 0
    %2116 = vmatprep.subr.bf16.mxu0 0
    %2117 = vmatpush1.bf16.msra.mxu0 0
    %2118 = vmatprep.subr.bf16.mxu0 0
    %2119 = vmatpush1.bf16.msra.mxu0 0
    %2120 = vmatprep.subr.bf16.mxu0 0
    %2121 = vmatpush1.bf16.msra.mxu0 0
    %2122 = vmatprep.subr.bf16.mxu0 0
    %2123 = vmatpush1.bf16.msra.mxu0 0
    %2124 = vmatprep.subr.bf16.mxu0 0
    %2125 = vmatpush1.bf16.msra.mxu0 0
    %2126 = vmatprep.subr.bf16.mxu0 0
    %2127 = vmatpush1.bf16.msra.mxu0 0
    %2128 = vmatprep.subr.bf16.mxu0 0
    %2129 = vmatpush1.bf16.msra.mxu0 %v2110
    %2130 = vmatprep.subr.bf16.mxu0 0
    %2131 = vmatpush1.bf16.msra.mxu0 %v2109
    %2132 = vmatprep.subr.bf16.mxu0 0
    %2133 = vmatpush2.bf16.msra.mxu0 0
    %2134 = vmatprep.subr.bf16.mxu0 0
    %2135 = vmatpush2.bf16.msra.mxu0 0
    %2136 = vmatprep.subr.bf16.mxu0 0
    %2137 = vmatpush2.bf16.msra.mxu0 0
    %2138 = vmatprep.subr.bf16.mxu0 0
    %2139 = vmatpush2.bf16.msra.mxu0 0
    %2140 = vmatprep.subr.bf16.mxu0 0
    %2141 = vmatpush2.bf16.msra.mxu0 0
    %2142 = vmatprep.subr.bf16.mxu0 0
    %2143 = vmatpush2.bf16.msra.mxu0 0
    %2144 = vmatprep.subr.bf16.mxu0 0
    %2145 = vmatpush2.bf16.msra.mxu0 0
    %2146 = vmatprep.subr.bf16.mxu0 0
    %2147 = vmatpush2.bf16.msra.mxu0 0
    %2148 = vmatprep.mubr.bf16.mxu0 0
    %2149 = vmatmul.mubr.bf16.gmra.mxu0 %v2114
    %v2150 = vpop.f32.mrf.mxu0
    %v2151 = vadd.f32 %v2100, %v2150
    %v2152 = vpop.f32.mrf.mxu0
    %v2153 = vpop.f32.mrf.mxu0
    %v2154 = vadd.f32 %v2100, %v2153
    %v2155 = vpop.f32.mrf.mxu0
    %2156 = vdwg.mxu0
    %v2157 = vmul.f32 %v2151, 0.5
    %v2158 = vmul.f32 %v2154, 0.5
    %v2159 = vmul.f32 %v2151, 0.044715
    %v2160 = vmul.f32 %v2154, 0.044715
    %v2161 = vmul.f32 %v2159, %v2151
    %v2162 = vmul.f32 %v2160, %v2154
    %v2163 = vmul.f32 %v2161, %v2151
    %v2164 = vmul.f32 %v2162, %v2154
    %v2165 = vadd.f32 %v2151, %v2163
    %v2166 = vadd.f32 %v2154, %v2164
    %v2167 = vmul.f32 %v2165, 0.7978846
    %v2168 = vmul.f32 %v2166, 0.7978846
    %v2169 = vtanh.pop %v2167
    %v2170 = vtanh.pop %v2168
    %v2171 = vadd.f32 %v2169, 1.0
    %v2172 = vadd.f32 %v2170, 1.0
    %v2173 = vmul.f32 %v2157, %v2171
    %v2174 = vmul.f32 %v2158, %v2172
    %s2175 = scalar_lea.vmem [#allocation6], 352
    %v2176 = vld [vmem:[%s2175] sm:$0xf]
    %v2177 = vld [vmem:[%s2175 + $0x4] sm:$0xf]
    %v2178 = vld [vmem:[%s2175 + $0x8] sm:$0xf]
    %v2179 = vld [vmem:[%s2175 + $0xc] sm:$0xf]
    %v2180 = vld [vmem:[%s2175 + $0x10] sm:$0xf]
    %v2181 = vld [vmem:[%s2175 + $0x14] sm:$0xf]
    %v2182 = vld [vmem:[%s2175 + $0x18] sm:$0xf]
    %v2183 = vld [vmem:[%s2175 + $0x1c] sm:$0xf]
    %v2184 = vpack.c.bf16 %v2174, %v2173
    %v2185 = vld [vmem:[%s3 + $0x13] sm:$0x1]
    %v2186 = vlaneseq
    %v2187 = vshrl.u32 %v2186, 7
    %v2188 = vsub.s32 0, %v2187
    %v2189 = vrot.slane %v2185, %v2188
    %v2198 = vunpack.c.l.b16 %v2176
    %v2199 = vunpack.c.l.b16 %v2177
    %v2200 = vunpack.c.l.b16 %v2178
    %v2201 = vunpack.c.l.b16 %v2179
    %v2202 = vunpack.c.l.b16 %v2180
    %v2203 = vunpack.c.l.b16 %v2181
    %v2204 = vunpack.c.l.b16 %v2182
    %v2205 = vunpack.c.l.b16 %v2183
    %v2206 = vpack.c.b16 %v2199, %v2198
    %v2207 = vpack.c.b16 %v2201, %v2200
    %v2208 = vpack.c.b16 %v2203, %v2202
    %v2209 = vpack.c.b16 %v2205, %v2204
    %v2215 = vsel %vm1195, %v2184, 0
    %2217 = vmatprep.subr.bf16.mxu0 0
    %2218 = vmatpush1.bf16.msra.mxu0 0
    %2219 = vmatprep.subr.bf16.mxu0 0
    %2220 = vmatpush1.bf16.msra.mxu0 0
    %2221 = vmatprep.subr.bf16.mxu0 0
    %2222 = vmatpush1.bf16.msra.mxu0 0
    %2223 = vmatprep.subr.bf16.mxu0 0
    %2224 = vmatpush1.bf16.msra.mxu0 0
    %2225 = vmatprep.subr.bf16.mxu0 0
    %2226 = vmatpush1.bf16.msra.mxu0 %v2209
    %2227 = vmatprep.subr.bf16.mxu0 0
    %2228 = vmatpush1.bf16.msra.mxu0 %v2208
    %2229 = vmatprep.subr.bf16.mxu0 0
    %2230 = vmatpush1.bf16.msra.mxu0 %v2207
    %2231 = vmatprep.subr.bf16.mxu0 0
    %2232 = vmatpush1.bf16.msra.mxu0 %v2206
    %2233 = vmatprep.subr.bf16.mxu0 0
    %2234 = vmatpush2.bf16.msra.mxu0 0
    %2235 = vmatprep.subr.bf16.mxu0 0
    %2236 = vmatpush2.bf16.msra.mxu0 0
    %2237 = vmatprep.subr.bf16.mxu0 0
    %2238 = vmatpush2.bf16.msra.mxu0 0
    %2239 = vmatprep.subr.bf16.mxu0 0
    %2240 = vmatpush2.bf16.msra.mxu0 0
    %2241 = vmatprep.subr.bf16.mxu0 0
    %2242 = vmatpush2.bf16.msra.mxu0 0
    %2243 = vmatprep.subr.bf16.mxu0 0
    %2244 = vmatpush2.bf16.msra.mxu0 0
    %2245 = vmatprep.subr.bf16.mxu0 0
    %2246 = vmatpush2.bf16.msra.mxu0 0
    %2247 = vmatprep.subr.bf16.mxu0 0
    %2248 = vmatpush2.bf16.msra.mxu0 0
    %2249 = vmatprep.mubr.bf16.mxu0 0
    %2250 = vmatmul.mubr.bf16.gmra.mxu0 %v2215
    %v2251 = vpop.f32.mrf.mxu0
    %v2252 = vadd.f32 %v2189, %v2251
    %v2253 = vpop.f32.mrf.mxu0
    %v2254 = vpop.f32.mrf.mxu0
    %v2255 = vadd.f32 %v2189, %v2254
    %v2256 = vpop.f32.mrf.mxu0
    %2257 = vdwg.mxu0
    %v2258 = vadd.f32 %v2252, %v2088
    %v2259 = vadd.f32 %v2255, %v2089
    %v2260 = vld [vmem:[%s3 + $0x14] sm:$0x1]
    %v2261 = vld [vmem:[%s3 + $0x15] sm:$0x1]
    %v2262 = vsel %vm165, %v2258, 0.0
    %2263 = vadd.xlane.f32.xlu0 %v2262
    %v2264 = vpop.xlane.xlu0 %2263
    %v2265 = vsel %vm165, %v2259, 0.0
    %2266 = vadd.xlane.f32.xlu0 %v2265
    %v2267 = vpop.xlane.xlu0 %2266
    %v2268 = vmul.f32 %v2264, %v172
    %v2269 = vmul.f32 %v2267, %v172
    %v2270 = vsub.f32 %v2258, %v2268
    %v2271 = vsub.f32 %v2259, %v2269
    %v2272 = vmul.f32 %v2270, %v2270
    %v2273 = vmul.f32 %v2271, %v2271
    %v2274 = vsel %vm165, %v2272, 0.0
    %2275 = vadd.xlane.f32.xlu0 %v2274
    %v2276 = vpop.xlane.xlu0 %2275
    %v2277 = vsel %vm165, %v2273, 0.0
    %2278 = vadd.xlane.f32.xlu0 %v2277
    %v2279 = vpop.xlane.xlu0 %2278
    %v2280 = vmul.f32 %v2276, %v172
    %v2281 = vmul.f32 %v2279, %v172
    %v2282 = vadd.f32 %v2280, 1e-12
    %v2283 = vadd.f32 %v2281, 1e-12
    %v2284 = vrsqrt.pop %v2282
    %v2285 = vrsqrt.pop %v2283
    %v2286 = vmul.f32 %v2270, %v2284
    %v2287 = vmul.f32 %v2271, %v2285
    %v2288 = vlaneseq
    %v2289 = vshrl.u32 %v2288, 7
    %v2290 = vsub.s32 0, %v2289
    %v2291 = vrot.slane %v2260, %v2290
    %v2292 = vmul.f32 %v2286, %v2291
    %v2293 = vmul.f32 %v2287, %v2291
    %v2294 = vlaneseq
    %v2295 = vshrl.u32 %v2294, 7
    %v2296 = vsub.s32 0, %v2295
    %v2297 = vrot.slane %v2261, %v2296
    %v2298 = vadd.f32 %v2292, %v2297
    %v2299 = vadd.f32 %v2293, %v2297
    %v2301 = vrot.slane %v2299, 7
    %v2303 = vsel %vm140, %v2298, %v2301
    %s2304 = scalar_lea.vmem [#allocation6], 384
    %v2305 = vld [vmem:[%s2304] sm:$0xf]
    %v2306 = vld [vmem:[%s2304 + $0x4] sm:$0xf]
    %v2307 = vld [vmem:[%s2304 + $0x8] sm:$0xf]
    %v2308 = vld [vmem:[%s2304 + $0xc] sm:$0xf]
    %v2309 = vpack.c.bf16 %v2303, %v2303
    %v2310 = vld [vmem:[%s3 + $0x16] sm:$0x1]
    %v2311 = vlaneseq
    %v2312 = vshrl.u32 %v2311, 7
    %v2313 = vsub.s32 0, %v2312
    %v2314 = vrot.slane %v2310, %v2313
    %v2319 = vunpack.c.l.b16 %v2305
    %v2320 = vunpack.c.l.b16 %v2306
    %v2321 = vunpack.c.l.b16 %v2307
    %v2322 = vunpack.c.l.b16 %v2308
    %v2323 = vpack.c.b16 %v2320, %v2319
    %v2324 = vpack.c.b16 %v2322, %v2321
    %v2328 = vsel %vm165, %v2309, 0
    %2330 = vmatprep.subr.bf16.mxu0 0
    %2331 = vmatpush1.bf16.msra.mxu0 0
    %2332 = vmatprep.subr.bf16.mxu0 0
    %2333 = vmatpush1.bf16.msra.mxu0 0
    %2334 = vmatprep.subr.bf16.mxu0 0
    %2335 = vmatpush1.bf16.msra.mxu0 0
    %2336 = vmatprep.subr.bf16.mxu0 0
    %2337 = vmatpush1.bf16.msra.mxu0 0
    %2338 = vmatprep.subr.bf16.mxu0 0
    %2339 = vmatpush1.bf16.msra.mxu0 0
    %2340 = vmatprep.subr.bf16.mxu0 0
    %2341 = vmatpush1.bf16.msra.mxu0 0
    %2342 = vmatprep.subr.bf16.mxu0 0
    %2343 = vmatpush1.bf16.msra.mxu0 %v2324
    %2344 = vmatprep.subr.bf16.mxu0 0
    %2345 = vmatpush1.bf16.msra.mxu0 %v2323
    %2346 = vmatprep.subr.bf16.mxu0 0
    %2347 = vmatpush2.bf16.msra.mxu0 0
    %2348 = vmatprep.subr.bf16.mxu0 0
    %2349 = vmatpush2.bf16.msra.mxu0 0
    %2350 = vmatprep.subr.bf16.mxu0 0
    %2351 = vmatpush2.bf16.msra.mxu0 0
    %2352 = vmatprep.subr.bf16.mxu0 0
    %2353 = vmatpush2.bf16.msra.mxu0 0
    %2354 = vmatprep.subr.bf16.mxu0 0
    %2355 = vmatpush2.bf16.msra.mxu0 0
    %2356 = vmatprep.subr.bf16.mxu0 0
    %2357 = vmatpush2.bf16.msra.mxu0 0
    %2358 = vmatprep.subr.bf16.mxu0 0
    %2359 = vmatpush2.bf16.msra.mxu0 0
    %2360 = vmatprep.subr.bf16.mxu0 0
    %2361 = vmatpush2.bf16.msra.mxu0 0
    %2362 = vmatprep.mubr.bf16.mxu0 0
    %2363 = vmatmul.mubr.bf16.gmra.mxu0 %v2328
    %v2364 = vpop.f32.mrf.mxu0
    %v2365 = vadd.f32 %v2314, %v2364
    %v2366 = vpop.f32.mrf.mxu0
    %v2367 = vpop.f32.mrf.mxu0
    %v2368 = vpop.f32.mrf.mxu0
    %2369 = vdwg.mxu0
    %v2370 = vsub.f32 0.0, %v2365
    %v2371 = vmul.f32 %v2370, 1.442695
    %v2372 = vpow.pop %v2371
    %v2373 = vadd.f32 %v2372, 1.0
    %v2374 = vrcp.pop %v2373
    %v2375 = vmul.f32 1.0, %v2374
    %2376 = vst [vmem:[#allocation7] sm:$0x3] %v2375
    // Predicated region
    $region30: #{_forward.1} parent=1 // pred_check
      _
    $region31: #{_forward.1} parent=1 // pred_check_branch
      %2378 = sbr.rel (0) target = $region33
    $region32: #{_forward.1} parent=1 // pred_region
      %s2380 = ssub.s32 32, 32
      %2381 = vsyncadd [#allocation4], %s2380
      %s2383 = sshll.u32 [#allocation7], 4
      %s2384 = int_to_ptr.vmem [resolvable:$true] %s2383
      %2386 = dma.vmem_to_hbm [thread:$0]  %s2384, 32, %s5, [#allocation4]
    $region33: #{_forward.1} parent=1 // pred_fallthru
      _
    // Predicated region
    $region34: #{_forward.1} parent=1 // pred_check
      _
    $region35: #{_forward.1} parent=1 // pred_check_branch
      %2388 = sbr.rel (0) target = $region37
    $region36: #{_forward.1} parent=1 // pred_region
      %2389 = dma.done [#allocation4], 32
    $region37: #{_forward.1} parent=1 // pred_fallthru
      _
    %2390 = vsyncpa [#allocation3], 1
    %2391 = vsyncpa [#allocation4], 1
    %2392 = vsyncpa [#allocation5], 1

</llo_original>
